<compile_context>
chip_gen: v5e
topology: v5e:2x2
jax: 0.10.0
libtpu: 0.0.40
codegen_flags: <defaults>
</compile_context>

<pallas_src>
import functools

import jax
import jax.numpy as jnp
from jax.experimental import pallas as pl
from jax.experimental.pallas import tpu as pltpu


# ---------------------------------------------------------------------------
# Small helpers
# ---------------------------------------------------------------------------
def _full_spec(shape):
    """Whole-array block; block index 0 along every dim, for any grid rank."""
    nd = len(shape)
    return pl.BlockSpec(shape, lambda *_, _nd=nd: (0,) * _nd)


def _gru_cell_update(x_b16, h_f32, wih_ref, whh_ref, bih_ref, bhh_ref):
    """PyTorch GRU / GRUCell update, gate order (r, z, n).

    Weights are laid out per-gate ([3, in, H] / [3, H, H], bf16) so no lane
    slicing of a packed 3H matrix is needed; biases are [3, 1, H] f32.  The
    matmuls run on the MXU in bf16 with f32 accumulation; all element-wise
    gate math stays in f32 (v5e has no bf16 VPU/EUP path).
    """
    hb = h_f32.astype(jnp.bfloat16)

    def gate(g):
        gi = jnp.dot(x_b16, wih_ref[g], preferred_element_type=jnp.float32) + bih_ref[g]
        gh = jnp.dot(hb, whh_ref[g], preferred_element_type=jnp.float32) + bhh_ref[g]
        return gi, gh

    gi_r, gh_r = gate(0)
    gi_z, gh_z = gate(1)
    gi_n, gh_n = gate(2)
    r = jax.nn.sigmoid(gi_r + gh_r)
    z = jax.nn.sigmoid(gi_z + gh_z)
    n = jnp.tanh(gi_n + r * gh_n)
    return (1.0 - z) * n + z * h_f32


# ---------------------------------------------------------------------------
# Kernel 1/2: conv-as-matmul (+ bias + ReLU) on the MXU
# ---------------------------------------------------------------------------
def _matmul_bias_kernel(a_ref, b_ref, bias_ref, o_ref, *, relu):
    y = jnp.dot(a_ref[...], b_ref[...], preferred_element_type=jnp.float32)
    y = y + bias_ref[...]
    if relu:
        y = jnp.maximum(y, 0.0)
    o_ref[...] = y


def pallas_matmul_bias(a, b, bias, relu=False):
    """(M,K)@(K,N) + bias [+ReLU]; bf16 operands, f32 accumulation, one block."""
    M, K = a.shape
    K2, N = b.shape
    assert K == K2
    args = (a.astype(jnp.bfloat16), b.astype(jnp.bfloat16),
            bias.reshape(1, N).astype(jnp.float32))
    return pl.pallas_call(
        functools.partial(_matmul_bias_kernel, relu=relu),
        grid=(1,),
        in_specs=[_full_spec(x.shape) for x in args],
        out_specs=pl.BlockSpec((M, N), lambda i: (0, 0)),
        out_shape=jax.ShapeDtypeStruct((M, N), jnp.float32),
    )(*args)


# ---------------------------------------------------------------------------
# Kernel 3: fused GRU-over-time + mean pool + output FC (single launch)
# ---------------------------------------------------------------------------
def _crnn_gru_kernel(x_ref, wih_ref, whh_ref, bih_ref, bhh_ref, fcw_ref, fcb_ref,
                     out_ref, h_sc, sum_sc, *, inv_t):
    t = pl.program_id(0)

    @pl.when(t == 0)
    def _init():
        h_sc[...] = jnp.zeros_like(h_sc)
        sum_sc[...] = jnp.zeros_like(sum_sc)

    h_new = _gru_cell_update(x_ref[0], h_sc[...],
                             wih_ref, whh_ref, bih_ref, bhh_ref)
    h_sc[...] = h_new
    sum_sc[...] = sum_sc[...] + h_new

    @pl.when(t == pl.num_programs(0) - 1)
    def _finalize():
        pooled = (sum_sc[...] * inv_t).astype(jnp.bfloat16)   # mean over time
        out_ref[...] = (jnp.dot(pooled, fcw_ref[...],
                                preferred_element_type=jnp.float32)
                        + fcb_ref[...])


def pallas_crnn_gru_fc(xseq, w_ih, w_hh, b_ih, b_hh, fc_w, fc_b):
    """GRU over T steps + mean-pool + FC in ONE pallas_call.

    xseq: [T, B, F_in].  Weights/biases keep a constant block index over the
    time grid axis so they are DMA'd into VMEM exactly once; only the
    [1, B, F_in] input slice moves per step.  Hidden state and pool-sum are
    VMEM scratch.
    """
    T, B, F_in = xseq.shape
    H = w_hh.shape[-1]
    E = fc_w.shape[-1]
    args = (
        xseq.astype(jnp.bfloat16),
        w_ih.astype(jnp.bfloat16),
        w_hh.astype(jnp.bfloat16),
        b_ih.reshape(3, 1, H).astype(jnp.float32),
        b_hh.reshape(3, 1, H).astype(jnp.float32),
        fc_w.astype(jnp.bfloat16),
        fc_b.reshape(1, E).astype(jnp.float32),
    )
    in_specs = [pl.BlockSpec((1, B, F_in), lambda t: (t, 0, 0))]
    in_specs += [_full_spec(x.shape) for x in args[1:]]
    return pl.pallas_call(
        functools.partial(_crnn_gru_kernel, inv_t=1.0 / T),
        grid=(T,),
        in_specs=in_specs,
        out_specs=pl.BlockSpec((B, E), lambda t: (0, 0)),
        out_shape=jax.ShapeDtypeStruct((B, E), jnp.float32),
        scratch_shapes=[pltpu.VMEM((B, H), jnp.float32),   # hidden state
                        pltpu.VMEM((B, H), jnp.float32)],  # running sum
    )(*args)


# ---------------------------------------------------------------------------
# Kernel 4: fused GGNN (3 layers propagate + GRUCell) + final score matmul
# ---------------------------------------------------------------------------
def _ggnn_score_kernel(adj_ref, h0_ref, wl_ref, wih_ref, whh_ref, bih_ref, bhh_ref,
                       spec_ref, out_ref, *, num_layers):
    adj = adj_ref[...]                                   # [N, N] bf16
    h = h0_ref[...]                                      # [N, D] f32
    for layer in range(num_layers):                      # static unroll (L=3)
        hw = jnp.dot(h.astype(jnp.bfloat16), wl_ref[layer],
                     preferred_element_type=jnp.float32)           # h @ W_l
        m = jnp.dot(adj, hw.astype(jnp.bfloat16),
                    preferred_element_type=jnp.float32)            # A_w @ (hW)
        h = _gru_cell_update(m.astype(jnp.bfloat16), h,
                             wih_ref, whh_ref, bih_ref, bhh_ref)
    # out = spec_out @ graph_out.T via transposed-contraction dot_general
    out_ref[...] = jax.lax.dot_general(
        spec_ref[...], h.astype(jnp.bfloat16),
        dimension_numbers=(((1,), (1,)), ((), ())),
        preferred_element_type=jnp.float32)


def pallas_ggnn_score(adj, h0, wl, w_ih, w_hh, b_ih, b_hh, spec_out, num_layers=3):
    N, D = h0.shape
    B = spec_out.shape[0]
    args = (
        adj.astype(jnp.bfloat16),
        h0.astype(jnp.float32),
        wl.astype(jnp.bfloat16),
        w_ih.astype(jnp.bfloat16),
        w_hh.astype(jnp.bfloat16),
        b_ih.reshape(3, 1, D).astype(jnp.float32),
        b_hh.reshape(3, 1, D).astype(jnp.float32),
        spec_out.astype(jnp.bfloat16),
    )
    return pl.pallas_call(
        functools.partial(_ggnn_score_kernel, num_layers=num_layers),
        grid=(1,),
        in_specs=[_full_spec(x.shape) for x in args],
        out_specs=pl.BlockSpec((B, N), lambda i: (0, 0)),
        out_shape=jax.ShapeDtypeStruct((B, N), jnp.float32),
    )(*args)


# ---------------------------------------------------------------------------
# Glue: im2col, conv block, CRNN, full model
# ---------------------------------------------------------------------------
def im2col_nchw(x, kh, kw, pad):
    """x: [B, C, H, W] -> patches [B*H*W, C*kh*kw] (cols ordered c, kh, kw)."""
    B, C, H, W = x.shape
    xp = jnp.pad(x, ((0, 0), (0, 0), (pad, pad), (pad, pad)))
    cols = []
    for i in range(kh):
        for j in range(kw):
            cols.append(xp[:, :, i:i + H, j:j + W])          # [B, C, H, W]
    patches = jnp.stack(cols, axis=2)                        # [B, C, kh*kw, H, W]
    patches = patches.transpose(0, 3, 4, 1, 2)               # [B, H, W, C, kh*kw]
    return patches.reshape(B * H * W, C * kh * kw)


# TODO(synk): at realistic spectrogram sizes, replace the JAX-side im2col with
# an in-kernel shifted-window conv + fused 2x2 maxpool and row-tiled BlockSpecs
# (parallel grid axis, vmem_limit_bytes); kept as glue here because the whole
# activation fits in VMEM and this keeps the Mosaic lowering simple/robust.
def conv3x3_relu_pool(x_nchw, w, b):
    """Conv2d(3x3, pad=1) + ReLU + MaxPool2d(2x2); conv MACs run in Pallas."""
    B, Ci, H, W = x_nchw.shape
    assert H % 2 == 0 and W % 2 == 0, "2x2 maxpool needs even spatial dims"
    Co = w.shape[0]
    patches = im2col_nchw(x_nchw, 3, 3, 1)                   # [B*H*W, Ci*9]
    w2 = w.reshape(Co, Ci * 9).T                             # [Ci*9, Co]
    y = pallas_matmul_bias(patches, w2, b, relu=True)        # fused matmul+bias+ReLU
    y = y.reshape(B, H, W, Co)                               # NHWC
    y = y.reshape(B, H // 2, 2, W // 2, 2, Co).max(axis=(2, 4))
    return jnp.transpose(y, (0, 3, 1, 2))                    # back to NCHW


def crnn_forward(spec, params):
    # spec: [B, 1, T, F] (NCHW)
    x = conv3x3_relu_pool(spec, params["conv1_w"], params["conv1_b"])
    x = conv3x3_relu_pool(x, params["conv2_w"], params["conv2_b"])
    B, C, T, F = x.shape
    xseq = jnp.transpose(x, (2, 0, 1, 3)).reshape(T, B, C * F)   # [T, B, C*F]
    spec_out = pallas_crnn_gru_fc(xseq,
                                  params["gru_w_ih"], params["gru_w_hh"],
                                  params["gru_b_ih"], params["gru_b_hh"],
                                  params["fc_w"], params["fc_b"])
    return spec_out                                              # [B, emb_dim]


def crnn_ggnn_forward(spec, graph_x, edge_index, edge_attr, params):
    spec_out = crnn_forward(spec, params)                        # [B, emb_dim]
    N, Fin = graph_x.shape
    D = params["ggnn_weight"].shape[-1]
    h0 = jnp.pad(graph_x.astype(jnp.float32), ((0, 0), (0, D - Fin)))
    # Dense weighted adjacency: A[target, source] += edge_attr (source_to_target)
    adj = jnp.zeros((N, N), jnp.float32).at[edge_index[1], edge_index[0]].add(
        edge_attr.astype(jnp.float32))
    out = pallas_ggnn_score(adj, h0, params["ggnn_weight"],
                            params["ggnn_w_ih"], params["ggnn_w_hh"],
                            params["ggnn_b_ih"], params["ggnn_b_hh"],
                            spec_out, num_layers=params["ggnn_weight"].shape[0])
    return out                                                    # [B, N]


# ---------------------------------------------------------------------------
# Deterministic parameter init (synthetic, no checkpoint load)
# ---------------------------------------------------------------------------
def init_params(key, emb_dim=32, c1=8, c2=16, feat=64, hidden=32, num_layers=3):
    ks = jax.random.split(key, 15)

    def nrm(k, shape, scale=0.1):
        return (scale * jax.random.normal(k, shape)).astype(jnp.float32)

    return {
        # CRNN conv blocks (PyTorch Conv2d weight layout [Co, Ci, kh, kw])
        "conv1_w": nrm(ks[0], (c1, 1, 3, 3)),
        "conv1_b": nrm(ks[1], (c1,)),
        "conv2_w": nrm(ks[2], (c2, c1, 3, 3)),
        "conv2_b": nrm(ks[3], (c2,)),
        # CRNN GRU, per-gate layout [3 (r,z,n), in, H]
        "gru_w_ih": nrm(ks[4], (3, feat, hidden)),
        "gru_w_hh": nrm(ks[5], (3, hidden, hidden)),
        "gru_b_ih": nrm(ks[6], (3, hidden)),
        "gru_b_hh": nrm(ks[7], (3, hidden)),
        # CRNN output projection
        "fc_w": nrm(ks[8], (hidden, emb_dim)),
        "fc_b": nrm(ks[9], (emb_dim,)),
        # GGNN: GatedGraphConv weight [L, D, D] + GRUCell params (per-gate)
        "ggnn_weight": nrm(ks[10], (num_layers, emb_dim, emb_dim)),
        "ggnn_w_ih": nrm(ks[11], (3, emb_dim, emb_dim)),
        "ggnn_w_hh": nrm(ks[12], (3, emb_dim, emb_dim)),
        "ggnn_b_ih": nrm(ks[13], (3, emb_dim)),
        "ggnn_b_hh": nrm(ks[14], (3, emb_dim)),
    }


# ---------------------------------------------------------------------------
if __name__ == "__main__":
    key = jax.random.PRNGKey(0)
    k_spec, k_gx, k_ei, k_ea, k_params = jax.random.split(key, 5)

    B, T, F = 2, 16, 16          # spectrogram: batch, time, mel bins
    N, E = 10, 24                # graph: nodes, edges
    node_feat = 16
    emb_dim = 32

    spec = jax.random.normal(k_spec, (B, 1, T, F), jnp.float32)       # NCHW
    graph_x = jax.random.normal(k_gx, (N, node_feat), jnp.float32)
    edge_index = jax.random.randint(k_ei, (2, E), 0, N)
    edge_attr = jax.random.uniform(k_ea, (E,), jnp.float32)

    params = init_params(k_params, emb_dim=emb_dim)

    fwd = jax.jit(functools.partial(crnn_ggnn_forward, params=params))
    out = fwd(spec, graph_x, edge_index, edge_attr)
    out = jax.block_until_ready(out)

    assert out.shape == (B, N), out.shape
    assert bool(jnp.all(jnp.isfinite(out)))
    print("KERNEL_OK")
</pallas_src>

<mosaic_0001>
module attributes {stable_mosaic.version = 11 : i64} {
  func.func @_matmul_bias_kernel(%arg0: i32, %arg1: memref<512x9xbf16, #tpu.memory_space<vmem>>, %arg2: memref<9x8xbf16, #tpu.memory_space<vmem>>, %arg3: memref<1x8xf32, #tpu.memory_space<vmem>>, %arg4: memref<512x8xf32, #tpu.memory_space<vmem>>) attributes {dimension_semantics = [#tpu.dimension_semantics<arbitrary>], iteration_bounds = array<i64: 1>, scalar_prefetch = 0 : i64, scratch_operands = 0 : i64, tpu.core_type = #tpu.core_type<tc>, window_params = [{pipeline_mode = #tpu.pipeline_mode<synchronous>, transform_indices = @transform_0, window_bounds = array<i64: 512, 9>}, {pipeline_mode = #tpu.pipeline_mode<synchronous>, transform_indices = @transform_1, window_bounds = array<i64: 9, 8>}, {pipeline_mode = #tpu.pipeline_mode<synchronous>, transform_indices = @transform_2, window_bounds = array<i64: 1, 8>}, {pipeline_mode = #tpu.pipeline_mode<synchronous>, transform_indices = @transform_3, window_bounds = array<i64: 512, 8>}]} {
    %c0 = arith.constant 0 : index
    %c0_0 = arith.constant 0 : index
    %0 = vector.load %arg1[%c0, %c0_0] : memref<512x9xbf16, #tpu.memory_space<vmem>>, vector<512x9xbf16>
    %c0_1 = arith.constant 0 : index
    %c0_2 = arith.constant 0 : index
    %1 = vector.load %arg2[%c0_1, %c0_2] : memref<9x8xbf16, #tpu.memory_space<vmem>>, vector<9x8xbf16>
    %cst = arith.constant dense<0.000000e+00> : vector<512x8xf32>
    %2 = tpu.matmul %0, %1, %cst {dimension_numbers = #tpu.dot_dimension_numbers<[1], [0], [0], [1], [0, 0, 1, 1], [], []>} : vector<512x9xbf16>, vector<9x8xbf16>, vector<512x8xf32> -> vector<512x8xf32>
    %c0_3 = arith.constant 0 : index
    %c0_4 = arith.constant 0 : index
    %3 = vector.load %arg3[%c0_3, %c0_4] : memref<1x8xf32, #tpu.memory_space<vmem>>, vector<1x8xf32>
    %4 = vector.broadcast %3 : vector<1x8xf32> to vector<512x8xf32>
    %5 = arith.addf %2, %4 : vector<512x8xf32>
    %cst_5 = arith.constant 0.000000e+00 : f32
    %6 = vector.broadcast %cst_5 : f32 to vector<512x8xf32>
    %7 = arith.maximumf %5, %6 : vector<512x8xf32>
    %c0_6 = arith.constant 0 : index
    %c0_7 = arith.constant 0 : index
    %8 = vector.load %arg4[%c0_6, %c0_7] : memref<512x8xf32, #tpu.memory_space<vmem>>, vector<512x8xf32>
    tpu.vector_store %arg4[%c0_6, %c0_7], %7 {strides = array<i32>} : memref<512x8xf32, #tpu.memory_space<vmem>>, vector<512x8xf32>,
    return
  }
  func.func @transform_0(%arg0: i32) -> (i32, i32) {
    %c0_i32 = arith.constant 0 : i32
    %c0_i32_0 = arith.constant 0 : i32
    %c0_i32_1 = arith.constant 0 : i32
    return %c0_i32, %c0_i32_0 : i32, i32
  }
  func.func @transform_1(%arg0: i32) -> (i32, i32) {
    %c0_i32 = arith.constant 0 : i32
    %c0_i32_0 = arith.constant 0 : i32
    %c0_i32_1 = arith.constant 0 : i32
    return %c0_i32, %c0_i32_0 : i32, i32
  }
  func.func @transform_2(%arg0: i32) -> (i32, i32) {
    %c0_i32 = arith.constant 0 : i32
    %c0_i32_0 = arith.constant 0 : i32
    %c0_i32_1 = arith.constant 0 : i32
    return %c0_i32, %c0_i32_0 : i32, i32
  }
  func.func @transform_3(%arg0: i32) -> (i32, i32) {
    %c0_i32 = arith.constant 0 : i32
    %c0_i32_0 = arith.constant 0 : i32
    %c0_i32_1 = arith.constant 0 : i32
    return %c0_i32, %c0_i32_0 : i32, i32
  }
}

module attributes {stable_mosaic.version = 11 : i64} {
  func.func @_matmul_bias_kernel(%arg0: i32, %arg1: memref<128x72xbf16, #tpu.memory_space<vmem>>, %arg2: memref<72x16xbf16, #tpu.memory_space<vmem>>, %arg3: memref<1x16xf32, #tpu.memory_space<vmem>>, %arg4: memref<128x16xf32, #tpu.memory_space<vmem>>) attributes {dimension_semantics = [#tpu.dimension_semantics<arbitrary>], iteration_bounds = array<i64: 1>, scalar_prefetch = 0 : i64, scratch_operands = 0 : i64, tpu.core_type = #tpu.core_type<tc>, window_params = [{pipeline_mode = #tpu.pipeline_mode<synchronous>, transform_indices = @transform_0, window_bounds = array<i64: 128, 72>}, {pipeline_mode = #tpu.pipeline_mode<synchronous>, transform_indices = @transform_1, window_bounds = array<i64: 72, 16>}, {pipeline_mode = #tpu.pipeline_mode<synchronous>, transform_indices = @transform_2, window_bounds = array<i64: 1, 16>}, {pipeline_mode = #tpu.pipeline_mode<synchronous>, transform_indices = @transform_3, window_bounds = array<i64: 128, 16>}]} {
    %c0 = arith.constant 0 : index
    %c0_0 = arith.constant 0 : index
    %0 = vector.load %arg1[%c0, %c0_0] : memref<128x72xbf16, #tpu.memory_space<vmem>>, vector<128x72xbf16>
    %c0_1 = arith.constant 0 : index
    %c0_2 = arith.constant 0 : index
    %1 = vector.load %arg2[%c0_1, %c0_2] : memref<72x16xbf16, #tpu.memory_space<vmem>>, vector<72x16xbf16>
    %cst = arith.constant dense<0.000000e+00> : vector<128x16xf32>
    %2 = tpu.matmul %0, %1, %cst {dimension_numbers = #tpu.dot_dimension_numbers<[1], [0], [0], [1], [0, 0, 1, 1], [], []>} : vector<128x72xbf16>, vector<72x16xbf16>, vector<128x16xf32> -> vector<128x16xf32>
    %c0_3 = arith.constant 0 : index
    %c0_4 = arith.constant 0 : index
    %3 = vector.load %arg3[%c0_3, %c0_4] : memref<1x16xf32, #tpu.memory_space<vmem>>, vector<1x16xf32>
    %4 = vector.broadcast %3 : vector<1x16xf32> to vector<128x16xf32>
    %5 = arith.addf %2, %4 : vector<128x16xf32>
    %cst_5 = arith.constant 0.000000e+00 : f32
    %6 = vector.broadcast %cst_5 : f32 to vector<128x16xf32>
    %7 = arith.maximumf %5, %6 : vector<128x16xf32>
    %c0_6 = arith.constant 0 : index
    %c0_7 = arith.constant 0 : index
    %8 = vector.load %arg4[%c0_6, %c0_7] : memref<128x16xf32, #tpu.memory_space<vmem>>, vector<128x16xf32>
    tpu.vector_store %arg4[%c0_6, %c0_7], %7 {strides = array<i32>} : memref<128x16xf32, #tpu.memory_space<vmem>>, vector<128x16xf32>,
    return
  }
  func.func @transform_0(%arg0: i32) -> (i32, i32) {
    %c0_i32 = arith.constant 0 : i32
    %c0_i32_0 = arith.constant 0 : i32
    %c0_i32_1 = arith.constant 0 : i32
    return %c0_i32, %c0_i32_0 : i32, i32
  }
  func.func @transform_1(%arg0: i32) -> (i32, i32) {
    %c0_i32 = arith.constant 0 : i32
    %c0_i32_0 = arith.constant 0 : i32
    %c0_i32_1 = arith.constant 0 : i32
    return %c0_i32, %c0_i32_0 : i32, i32
  }
  func.func @transform_2(%arg0: i32) -> (i32, i32) {
    %c0_i32 = arith.constant 0 : i32
    %c0_i32_0 = arith.constant 0 : i32
    %c0_i32_1 = arith.constant 0 : i32
    return %c0_i32, %c0_i32_0 : i32, i32
  }
  func.func @transform_3(%arg0: i32) -> (i32, i32) {
    %c0_i32 = arith.constant 0 : i32
    %c0_i32_0 = arith.constant 0 : i32
    %c0_i32_1 = arith.constant 0 : i32
    return %c0_i32, %c0_i32_0 : i32, i32
  }
}

module attributes {stable_mosaic.version = 11 : i64} {
  func.func @_crnn_gru_kernel(%arg0: i32, %arg1: memref<1x2x64xbf16, #tpu.memory_space<vmem>>, %arg2: memref<3x64x32xbf16, #tpu.memory_space<vmem>>, %arg3: memref<3x32x32xbf16, #tpu.memory_space<vmem>>, %arg4: memref<3x1x32xf32, #tpu.memory_space<vmem>>, %arg5: memref<3x1x32xf32, #tpu.memory_space<vmem>>, %arg6: memref<32x32xbf16, #tpu.memory_space<vmem>>, %arg7: memref<1x32xf32, #tpu.memory_space<vmem>>, %arg8: memref<2x32xf32, #tpu.memory_space<vmem>>, %arg9: memref<2x32xf32, #tpu.memory_space<vmem>>, %arg10: memref<2x32xf32, #tpu.memory_space<vmem>>) attributes {dimension_semantics = [#tpu.dimension_semantics<arbitrary>], iteration_bounds = array<i64: 4>, scalar_prefetch = 0 : i64, scratch_operands = 2 : i64, tpu.core_type = #tpu.core_type<tc>, window_params = [{transform_indices = @transform_0, window_bounds = array<i64: 1, 2, 64>}, {pipeline_mode = #tpu.pipeline_mode<synchronous>, transform_indices = @transform_1, window_bounds = array<i64: 3, 64, 32>}, {pipeline_mode = #tpu.pipeline_mode<synchronous>, transform_indices = @transform_2, window_bounds = array<i64: 3, 32, 32>}, {pipeline_mode = #tpu.pipeline_mode<synchronous>, transform_indices = @transform_3, window_bounds = array<i64: 3, 1, 32>}, {pipeline_mode = #tpu.pipeline_mode<synchronous>, transform_indices = @transform_4, window_bounds = array<i64: 3, 1, 32>}, {pipeline_mode = #tpu.pipeline_mode<synchronous>, transform_indices = @transform_5, window_bounds = array<i64: 32, 32>}, {pipeline_mode = #tpu.pipeline_mode<synchronous>, transform_indices = @transform_6, window_bounds = array<i64: 1, 32>}, {pipeline_mode = #tpu.pipeline_mode<synchronous>, transform_indices = @transform_7, window_bounds = array<i64: 2, 32>}]} {
    %c0_i32 = arith.constant 0 : i32
    %0 = arith.cmpi eq, %arg0, %c0_i32 : i32
    %1 = arith.extui %0 : i1 to i32
    %c0_i32_0 = arith.constant 0 : i32
    %2 = arith.cmpi ne, %1, %c0_i32_0 : i32
    scf.if %2 {
      %cst_54 = arith.constant 0.000000e+00 : f32
      %76 = vector.broadcast %cst_54 : f32 to vector<2x32xf32>
      %c0_55 = arith.constant 0 : index
      %c0_56 = arith.constant 0 : index
      %77 = vector.load %arg9[%c0_55, %c0_56] : memref<2x32xf32, #tpu.memory_space<vmem>>, vector<2x32xf32>
      tpu.vector_store %arg9[%c0_55, %c0_56], %76 {strides = array<i32>} : memref<2x32xf32, #tpu.memory_space<vmem>>, vector<2x32xf32>,
      %cst_57 = arith.constant 0.000000e+00 : f32
      %78 = vector.broadcast %cst_57 : f32 to vector<2x32xf32>
      %c0_58 = arith.constant 0 : index
      %c0_59 = arith.constant 0 : index
      %79 = vector.load %arg10[%c0_58, %c0_59] : memref<2x32xf32, #tpu.memory_space<vmem>>, vector<2x32xf32>
      tpu.vector_store %arg10[%c0_58, %c0_59], %78 {strides = array<i32>} : memref<2x32xf32, #tpu.memory_space<vmem>>, vector<2x32xf32>,
    } else {
    }
    %c0 = arith.constant 0 : index
    %c0_1 = arith.constant 0 : index
    %c0_2 = arith.constant 0 : index
    %3 = vector.load %arg1[%c0, %c0_1, %c0_2] : memref<1x2x64xbf16, #tpu.memory_space<vmem>>, vector<1x2x64xbf16>
    %4 = vector.shape_cast %3 : vector<1x2x64xbf16> to vector<2x64xbf16>
    %c0_3 = arith.constant 0 : index
    %c0_4 = arith.constant 0 : index
    %5 = vector.load %arg9[%c0_3, %c0_4] : memref<2x32xf32, #tpu.memory_space<vmem>>, vector<2x32xf32>
    %6 = arith.truncf %5 : vector<2x32xf32> to vector<2x32xbf16>
    %c0_5 = arith.constant 0 : index
    %c0_6 = arith.constant 0 : index
    %c0_7 = arith.constant 0 : index
    %7 = vector.load %arg2[%c0_5, %c0_6, %c0_7] : memref<3x64x32xbf16, #tpu.memory_space<vmem>>, vector<1x64x32xbf16>
    %8 = vector.shape_cast %7 : vector<1x64x32xbf16> to vector<64x32xbf16>
    %cst = arith.constant dense<0.000000e+00> : vector<2x32xf32>
    %9 = tpu.matmul %4, %8, %cst {dimension_numbers = #tpu.dot_dimension_numbers<[1], [0], [0], [1], [0, 0, 1, 1], [], []>} : vector<2x64xbf16>, vector<64x32xbf16>, vector<2x32xf32> -> vector<2x32xf32>
    %c0_8 = arith.constant 0 : index
    %c0_9 = arith.constant 0 : index
    %c0_10 = arith.constant 0 : index
    %10 = vector.load %arg4[%c0_8, %c0_9, %c0_10] : memref<3x1x32xf32, #tpu.memory_space<vmem>>, vector<1x1x32xf32>
    %11 = vector.shape_cast %10 : vector<1x1x32xf32> to vector<1x32xf32>
    %12 = vector.broadcast %11 : vector<1x32xf32> to vector<2x32xf32>
    %13 = arith.addf %9, %12 : vector<2x32xf32>
    %c0_11 = arith.constant 0 : index
    %c0_12 = arith.constant 0 : index
    %c0_13 = arith.constant 0 : index
    %14 = vector.load %arg3[%c0_11, %c0_12, %c0_13] : memref<3x32x32xbf16, #tpu.memory_space<vmem>>, vector<1x32x32xbf16>
    %15 = vector.shape_cast %14 : vector<1x32x32xbf16> to vector<32x32xbf16>
    %cst_14 = arith.constant dense<0.000000e+00> : vector<2x32xf32>
    %16 = tpu.matmul %6, %15, %cst_14 {dimension_numbers = #tpu.dot_dimension_numbers<[1], [0], [0], [1], [0, 0, 1, 1], [], []>} : vector<2x32xbf16>, vector<32x32xbf16>, vector<2x32xf32> -> vector<2x32xf32>
    %c0_15 = arith.constant 0 : index
    %c0_16 = arith.constant 0 : index
    %c0_17 = arith.constant 0 : index
    %17 = vector.load %arg5[%c0_15, %c0_16, %c0_17] : memref<3x1x32xf32, #tpu.memory_space<vmem>>, vector<1x1x32xf32>
    %18 = vector.shape_cast %17 : vector<1x1x32xf32> to vector<1x32xf32>
    %19 = vector.broadcast %18 : vector<1x32xf32> to vector<2x32xf32>
    %20 = arith.addf %16, %19 : vector<2x32xf32>
    %c1 = arith.constant 1 : index
    %c0_18 = arith.constant 0 : index
    %c0_19 = arith.constant 0 : index
    %21 = vector.load %arg2[%c1, %c0_18, %c0_19] : memref<3x64x32xbf16, #tpu.memory_space<vmem>>, vector<1x64x32xbf16>
    %22 = vector.shape_cast %21 : vector<1x64x32xbf16> to vector<64x32xbf16>
    %cst_20 = arith.constant dense<0.000000e+00> : vector<2x32xf32>
    %23 = tpu.matmul %4, %22, %cst_20 {dimension_numbers = #tpu.dot_dimension_numbers<[1], [0], [0], [1], [0, 0, 1, 1], [], []>} : vector<2x64xbf16>, vector<64x32xbf16>, vector<2x32xf32> -> vector<2x32xf32>
    %c1_21 = arith.constant 1 : index
    %c0_22 = arith.constant 0 : index
    %c0_23 = arith.constant 0 : index
    %24 = vector.load %arg4[%c1_21, %c0_22, %c0_23] : memref<3x1x32xf32, #tpu.memory_space<vmem>>, vector<1x1x32xf32>
    %25 = vector.shape_cast %24 : vector<1x1x32xf32> to vector<1x32xf32>
    %26 = vector.broadcast %25 : vector<1x32xf32> to vector<2x32xf32>
    %27 = arith.addf %23, %26 : vector<2x32xf32>
    %c1_24 = arith.constant 1 : index
    %c0_25 = arith.constant 0 : index
    %c0_26 = arith.constant 0 : index
    %28 = vector.load %arg3[%c1_24, %c0_25, %c0_26] : memref<3x32x32xbf16, #tpu.memory_space<vmem>>, vector<1x32x32xbf16>
    %29 = vector.shape_cast %28 : vector<1x32x32xbf16> to vector<32x32xbf16>
    %cst_27 = arith.constant dense<0.000000e+00> : vector<2x32xf32>
    %30 = tpu.matmul %6, %29, %cst_27 {dimension_numbers = #tpu.dot_dimension_numbers<[1], [0], [0], [1], [0, 0, 1, 1], [], []>} : vector<2x32xbf16>, vector<32x32xbf16>, vector<2x32xf32> -> vector<2x32xf32>
    %c1_28 = arith.constant 1 : index
    %c0_29 = arith.constant 0 : index
    %c0_30 = arith.constant 0 : index
    %31 = vector.load %arg5[%c1_28, %c0_29, %c0_30] : memref<3x1x32xf32, #tpu.memory_space<vmem>>, vector<1x1x32xf32>
    %32 = vector.shape_cast %31 : vector<1x1x32xf32> to vector<1x32xf32>
    %33 = vector.broadcast %32 : vector<1x32xf32> to vector<2x32xf32>
    %34 = arith.addf %30, %33 : vector<2x32xf32>
    %c2 = arith.constant 2 : index
    %c0_31 = arith.constant 0 : index
    %c0_32 = arith.constant 0 : index
    %35 = vector.load %arg2[%c2, %c0_31, %c0_32] : memref<3x64x32xbf16, #tpu.memory_space<vmem>>, vector<1x64x32xbf16>
    %36 = vector.shape_cast %35 : vector<1x64x32xbf16> to vector<64x32xbf16>
    %cst_33 = arith.constant dense<0.000000e+00> : vector<2x32xf32>
    %37 = tpu.matmul %4, %36, %cst_33 {dimension_numbers = #tpu.dot_dimension_numbers<[1], [0], [0], [1], [0, 0, 1, 1], [], []>} : vector<2x64xbf16>, vector<64x32xbf16>, vector<2x32xf32> -> vector<2x32xf32>
    %c2_34 = arith.constant 2 : index
    %c0_35 = arith.constant 0 : index
    %c0_36 = arith.constant 0 : index
    %38 = vector.load %arg4[%c2_34, %c0_35, %c0_36] : memref<3x1x32xf32, #tpu.memory_space<vmem>>, vector<1x1x32xf32>
    %39 = vector.shape_cast %38 : vector<1x1x32xf32> to vector<1x32xf32>
    %40 = vector.broadcast %39 : vector<1x32xf32> to vector<2x32xf32>
    %41 = arith.addf %37, %40 : vector<2x32xf32>
    %c2_37 = arith.constant 2 : index
    %c0_38 = arith.constant 0 : index
    %c0_39 = arith.constant 0 : index
    %42 = vector.load %arg3[%c2_37, %c0_38, %c0_39] : memref<3x32x32xbf16, #tpu.memory_space<vmem>>, vector<1x32x32xbf16>
    %43 = vector.shape_cast %42 : vector<1x32x32xbf16> to vector<32x32xbf16>
    %cst_40 = arith.constant dense<0.000000e+00> : vector<2x32xf32>
    %44 = tpu.matmul %6, %43, %cst_40 {dimension_numbers = #tpu.dot_dimension_numbers<[1], [0], [0], [1], [0, 0, 1, 1], [], []>} : vector<2x32xbf16>, vector<32x32xbf16>, vector<2x32xf32> -> vector<2x32xf32>
    %c2_41 = arith.constant 2 : index
    %c0_42 = arith.constant 0 : index
    %c0_43 = arith.constant 0 : index
    %45 = vector.load %arg5[%c2_41, %c0_42, %c0_43] : memref<3x1x32xf32, #tpu.memory_space<vmem>>, vector<1x1x32xf32>
    %46 = vector.shape_cast %45 : vector<1x1x32xf32> to vector<1x32xf32>
    %47 = vector.broadcast %46 : vector<1x32xf32> to vector<2x32xf32>
    %48 = arith.addf %44, %47 : vector<2x32xf32>
    %49 = arith.addf %13, %20 : vector<2x32xf32>
    %50 = arith.negf %49 : vector<2x32xf32>
    %51 = math.exp %50 : vector<2x32xf32>
    %cst_44 = arith.constant 1.000000e+00 : f32
    %52 = vector.broadcast %cst_44 : f32 to vector<2x32xf32>
    %53 = arith.addf %52, %51 : vector<2x32xf32>
    %54 = arith.divf %52, %53 : vector<2x32xf32>
    %55 = arith.addf %27, %34 : vector<2x32xf32>
    %56 = arith.negf %55 : vector<2x32xf32>
    %57 = math.exp %56 : vector<2x32xf32>
    %cst_45 = arith.constant 1.000000e+00 : f32
    %58 = vector.broadcast %cst_45 : f32 to vector<2x32xf32>
    %59 = arith.addf %58, %57 : vector<2x32xf32>
    %60 = arith.divf %58, %59 : vector<2x32xf32>
    %61 = arith.mulf %54, %48 : vector<2x32xf32>
    %62 = arith.addf %41, %61 : vector<2x32xf32>
    %63 = math.tanh %62 : vector<2x32xf32>
    %cst_46 = arith.constant 1.000000e+00 : f32
    %64 = vector.broadcast %cst_46 : f32 to vector<2x32xf32>
    %65 = arith.subf %64, %60 : vector<2x32xf32>
    %66 = arith.mulf %65, %63 : vector<2x32xf32>
    %67 = arith.mulf %60, %5 : vector<2x32xf32>
    %68 = arith.addf %66, %67 : vector<2x32xf32>
    %c0_47 = arith.constant 0 : index
    %c0_48 = arith.constant 0 : index
    %69 = vector.load %arg9[%c0_47, %c0_48] : memref<2x32xf32, #tpu.memory_space<vmem>>, vector<2x32xf32>
    tpu.vector_store %arg9[%c0_47, %c0_48], %68 {strides = array<i32>} : memref<2x32xf32, #tpu.memory_space<vmem>>, vector<2x32xf32>,
    %c0_49 = arith.constant 0 : index
    %c0_50 = arith.constant 0 : index
    %70 = vector.load %arg10[%c0_49, %c0_50] : memref<2x32xf32, #tpu.memory_space<vmem>>, vector<2x32xf32>
    %71 = arith.addf %70, %68 : vector<2x32xf32>
    %c0_51 = arith.constant 0 : index
    %c0_52 = arith.constant 0 : index
    %72 = vector.load %arg10[%c0_51, %c0_52] : memref<2x32xf32, #tpu.memory_space<vmem>>, vector<2x32xf32>
    tpu.vector_store %arg10[%c0_51, %c0_52], %71 {strides = array<i32>} : memref<2x32xf32, #tpu.memory_space<vmem>>, vector<2x32xf32>,
    %c3_i32 = arith.constant 3 : i32
    %73 = arith.cmpi eq, %arg0, %c3_i32 : i32
    %74 = arith.extui %73 : i1 to i32
    %c0_i32_53 = arith.constant 0 : i32
    %75 = arith.cmpi ne, %74, %c0_i32_53 : i32
    scf.if %75 {
      %c0_54 = arith.constant 0 : index
      %c0_55 = arith.constant 0 : index
      %76 = vector.load %arg10[%c0_54, %c0_55] : memref<2x32xf32, #tpu.memory_space<vmem>>, vector<2x32xf32>
      %cst_56 = arith.constant 2.500000e-01 : f32
      %77 = vector.broadcast %cst_56 : f32 to vector<2x32xf32>
      %78 = arith.mulf %76, %77 : vector<2x32xf32>
      %79 = arith.truncf %78 : vector<2x32xf32> to vector<2x32xbf16>
      %c0_57 = arith.constant 0 : index
      %c0_58 = arith.constant 0 : index
      %80 = vector.load %arg6[%c0_57, %c0_58] : memref<32x32xbf16, #tpu.memory_space<vmem>>, vector<32x32xbf16>
      %cst_59 = arith.constant dense<0.000000e+00> : vector<2x32xf32>
      %81 = tpu.matmul %79, %80, %cst_59 {dimension_numbers = #tpu.dot_dimension_numbers<[1], [0], [0], [1], [0, 0, 1, 1], [], []>} : vector<2x32xbf16>, vector<32x32xbf16>, vector<2x32xf32> -> vector<2x32xf32>
      %c0_60 = arith.constant 0 : index
      %c0_61 = arith.constant 0 : index
      %82 = vector.load %arg7[%c0_60, %c0_61] : memref<1x32xf32, #tpu.memory_space<vmem>>, vector<1x32xf32>
      %83 = vector.broadcast %82 : vector<1x32xf32> to vector<2x32xf32>
      %84 = arith.addf %81, %83 : vector<2x32xf32>
      %c0_62 = arith.constant 0 : index
      %c0_63 = arith.constant 0 : index
      %85 = vector.load %arg8[%c0_62, %c0_63] : memref<2x32xf32, #tpu.memory_space<vmem>>, vector<2x32xf32>
      tpu.vector_store %arg8[%c0_62, %c0_63], %84 {strides = array<i32>} : memref<2x32xf32, #tpu.memory_space<vmem>>, vector<2x32xf32>,
    } else {
    }
    return
  }
  func.func @transform_0(%arg0: i32) -> (i32, i32, i32) {
    %c0_i32 = arith.constant 0 : i32
    %c0_i32_0 = arith.constant 0 : i32
    %c0_i32_1 = arith.constant 0 : i32
    return %arg0, %c0_i32, %c0_i32_0 : i32, i32, i32
  }
  func.func @transform_1(%arg0: i32) -> (i32, i32, i32) {
    %c0_i32 = arith.constant 0 : i32
    %c0_i32_0 = arith.constant 0 : i32
    %c0_i32_1 = arith.constant 0 : i32
    %c0_i32_2 = arith.constant 0 : i32
    return %c0_i32, %c0_i32_0, %c0_i32_1 : i32, i32, i32
  }
  func.func @transform_2(%arg0: i32) -> (i32, i32, i32) {
    %c0_i32 = arith.constant 0 : i32
    %c0_i32_0 = arith.constant 0 : i32
    %c0_i32_1 = arith.constant 0 : i32
    %c0_i32_2 = arith.constant 0 : i32
    return %c0_i32, %c0_i32_0, %c0_i32_1 : i32, i32, i32
  }
  func.func @transform_3(%arg0: i32) -> (i32, i32, i32) {
    %c0_i32 = arith.constant 0 : i32
    %c0_i32_0 = arith.constant 0 : i32
    %c0_i32_1 = arith.constant 0 : i32
    %c0_i32_2 = arith.constant 0 : i32
    return %c0_i32, %c0_i32_0, %c0_i32_1 : i32, i32, i32
  }
  func.func @transform_4(%arg0: i32) -> (i32, i32, i32) {
    %c0_i32 = arith.constant 0 : i32
    %c0_i32_0 = arith.constant 0 : i32
    %c0_i32_1 = arith.constant 0 : i32
    %c0_i32_2 = arith.constant 0 : i32
    return %c0_i32, %c0_i32_0, %c0_i32_1 : i32, i32, i32
  }
  func.func @transform_5(%arg0: i32) -> (i32, i32) {
    %c0_i32 = arith.constant 0 : i32
    %c0_i32_0 = arith.constant 0 : i32
    %c0_i32_1 = arith.constant 0 : i32
    return %c0_i32, %c0_i32_0 : i32, i32
  }
  func.func @transform_6(%arg0: i32) -> (i32, i32) {
    %c0_i32 = arith.constant 0 : i32
    %c0_i32_0 = arith.constant 0 : i32
    %c0_i32_1 = arith.constant 0 : i32
    return %c0_i32, %c0_i32_0 : i32, i32
  }
  func.func @transform_7(%arg0: i32) -> (i32, i32) {
    %c0_i32 = arith.constant 0 : i32
    %c0_i32_0 = arith.constant 0 : i32
    %c0_i32_1 = arith.constant 0 : i32
    return %c0_i32, %c0_i32_0 : i32, i32
  }
}

module attributes {stable_mosaic.version = 11 : i64} {
  func.func @_ggnn_score_kernel(%arg0: i32, %arg1: memref<10x10xbf16, #tpu.memory_space<vmem>>, %arg2: memref<10x32xf32, #tpu.memory_space<vmem>>, %arg3: memref<3x32x32xbf16, #tpu.memory_space<vmem>>, %arg4: memref<3x32x32xbf16, #tpu.memory_space<vmem>>, %arg5: memref<3x32x32xbf16, #tpu.memory_space<vmem>>, %arg6: memref<3x1x32xf32, #tpu.memory_space<vmem>>, %arg7: memref<3x1x32xf32, #tpu.memory_space<vmem>>, %arg8: memref<2x32xbf16, #tpu.memory_space<vmem>>, %arg9: memref<2x10xf32, #tpu.memory_space<vmem>>) attributes {dimension_semantics = [#tpu.dimension_semantics<arbitrary>], iteration_bounds = array<i64: 1>, scalar_prefetch = 0 : i64, scratch_operands = 0 : i64, tpu.core_type = #tpu.core_type<tc>, window_params = [{pipeline_mode = #tpu.pipeline_mode<synchronous>, transform_indices = @transform_0, window_bounds = array<i64: 10, 10>}, {pipeline_mode = #tpu.pipeline_mode<synchronous>, transform_indices = @transform_1, window_bounds = array<i64: 10, 32>}, {pipeline_mode = #tpu.pipeline_mode<synchronous>, transform_indices = @transform_2, window_bounds = array<i64: 3, 32, 32>}, {pipeline_mode = #tpu.pipeline_mode<synchronous>, transform_indices = @transform_3, window_bounds = array<i64: 3, 32, 32>}, {pipeline_mode = #tpu.pipeline_mode<synchronous>, transform_indices = @transform_4, window_bounds = array<i64: 3, 32, 32>}, {pipeline_mode = #tpu.pipeline_mode<synchronous>, transform_indices = @transform_5, window_bounds = array<i64: 3, 1, 32>}, {pipeline_mode = #tpu.pipeline_mode<synchronous>, transform_indices = @transform_6, window_bounds = array<i64: 3, 1, 32>}, {pipeline_mode = #tpu.pipeline_mode<synchronous>, transform_indices = @transform_7, window_bounds = array<i64: 2, 32>}, {pipeline_mode = #tpu.pipeline_mode<synchronous>, transform_indices = @transform_8, window_bounds = array<i64: 2, 10>}]} {
    %c0 = arith.constant 0 : index
    %c0_0 = arith.constant 0 : index
    %0 = vector.load %arg1[%c0, %c0_0] : memref<10x10xbf16, #tpu.memory_space<vmem>>, vector<10x10xbf16>
    %c0_1 = arith.constant 0 : index
    %c0_2 = arith.constant 0 : index
    %1 = vector.load %arg2[%c0_1, %c0_2] : memref<10x32xf32, #tpu.memory_space<vmem>>, vector<10x32xf32>
    %2 = arith.truncf %1 : vector<10x32xf32> to vector<10x32xbf16>
    %c0_3 = arith.constant 0 : index
    %c0_4 = arith.constant 0 : index
    %c0_5 = arith.constant 0 : index
    %3 = vector.load %arg3[%c0_3, %c0_4, %c0_5] : memref<3x32x32xbf16, #tpu.memory_space<vmem>>, vector<1x32x32xbf16>
    %4 = vector.shape_cast %3 : vector<1x32x32xbf16> to vector<32x32xbf16>
    %cst = arith.constant dense<0.000000e+00> : vector<10x32xf32>
    %5 = tpu.matmul %2, %4, %cst {dimension_numbers = #tpu.dot_dimension_numbers<[1], [0], [0], [1], [0, 0, 1, 1], [], []>} : vector<10x32xbf16>, vector<32x32xbf16>, vector<10x32xf32> -> vector<10x32xf32>
    %6 = arith.truncf %5 : vector<10x32xf32> to vector<10x32xbf16>
    %cst_6 = arith.constant dense<0.000000e+00> : vector<10x32xf32>
    %7 = tpu.matmul %0, %6, %cst_6 {dimension_numbers = #tpu.dot_dimension_numbers<[1], [0], [0], [1], [0, 0, 1, 1], [], []>} : vector<10x10xbf16>, vector<10x32xbf16>, vector<10x32xf32> -> vector<10x32xf32>
    %8 = arith.truncf %7 : vector<10x32xf32> to vector<10x32xbf16>
    %9 = arith.truncf %1 : vector<10x32xf32> to vector<10x32xbf16>
    %c0_7 = arith.constant 0 : index
    %c0_8 = arith.constant 0 : index
    %c0_9 = arith.constant 0 : index
    %10 = vector.load %arg4[%c0_7, %c0_8, %c0_9] : memref<3x32x32xbf16, #tpu.memory_space<vmem>>, vector<1x32x32xbf16>
    %11 = vector.shape_cast %10 : vector<1x32x32xbf16> to vector<32x32xbf16>
    %cst_10 = arith.constant dense<0.000000e+00> : vector<10x32xf32>
    %12 = tpu.matmul %8, %11, %cst_10 {dimension_numbers = #tpu.dot_dimension_numbers<[1], [0], [0], [1], [0, 0, 1, 1], [], []>} : vector<10x32xbf16>, vector<32x32xbf16>, vector<10x32xf32> -> vector<10x32xf32>
    %c0_11 = arith.constant 0 : index
    %c0_12 = arith.constant 0 : index
    %c0_13 = arith.constant 0 : index
    %13 = vector.load %arg6[%c0_11, %c0_12, %c0_13] : memref<3x1x32xf32, #tpu.memory_space<vmem>>, vector<1x1x32xf32>
    %14 = vector.shape_cast %13 : vector<1x1x32xf32> to vector<1x32xf32>
    %15 = vector.broadcast %14 : vector<1x32xf32> to vector<10x32xf32>
    %16 = arith.addf %12, %15 : vector<10x32xf32>
    %c0_14 = arith.constant 0 : index
    %c0_15 = arith.constant 0 : index
    %c0_16 = arith.constant 0 : index
    %17 = vector.load %arg5[%c0_14, %c0_15, %c0_16] : memref<3x32x32xbf16, #tpu.memory_space<vmem>>, vector<1x32x32xbf16>
    %18 = vector.shape_cast %17 : vector<1x32x32xbf16> to vector<32x32xbf16>
    %cst_17 = arith.constant dense<0.000000e+00> : vector<10x32xf32>
    %19 = tpu.matmul %9, %18, %cst_17 {dimension_numbers = #tpu.dot_dimension_numbers<[1], [0], [0], [1], [0, 0, 1, 1], [], []>} : vector<10x32xbf16>, vector<32x32xbf16>, vector<10x32xf32> -> vector<10x32xf32>
    %c0_18 = arith.constant 0 : index
    %c0_19 = arith.constant 0 : index
    %c0_20 = arith.constant 0 : index
    %20 = vector.load %arg7[%c0_18, %c0_19, %c0_20] : memref<3x1x32xf32, #tpu.memory_space<vmem>>, vector<1x1x32xf32>
    %21 = vector.shape_cast %20 : vector<1x1x32xf32> to vector<1x32xf32>
    %22 = vector.broadcast %21 : vector<1x32xf32> to vector<10x32xf32>
    %23 = arith.addf %19, %22 : vector<10x32xf32>
    %c1 = arith.constant 1 : index
    %c0_21 = arith.constant 0 : index
    %c0_22 = arith.constant 0 : index
    %24 = vector.load %arg4[%c1, %c0_21, %c0_22] : memref<3x32x32xbf16, #tpu.memory_space<vmem>>, vector<1x32x32xbf16>
    %25 = vector.shape_cast %24 : vector<1x32x32xbf16> to vector<32x32xbf16>
    %cst_23 = arith.constant dense<0.000000e+00> : vector<10x32xf32>
    %26 = tpu.matmul %8, %25, %cst_23 {dimension_numbers = #tpu.dot_dimension_numbers<[1], [0], [0], [1], [0, 0, 1, 1], [], []>} : vector<10x32xbf16>, vector<32x32xbf16>, vector<10x32xf32> -> vector<10x32xf32>
    %c1_24 = arith.constant 1 : index
    %c0_25 = arith.constant 0 : index
    %c0_26 = arith.constant 0 : index
    %27 = vector.load %arg6[%c1_24, %c0_25, %c0_26] : memref<3x1x32xf32, #tpu.memory_space<vmem>>, vector<1x1x32xf32>
    %28 = vector.shape_cast %27 : vector<1x1x32xf32> to vector<1x32xf32>
    %29 = vector.broadcast %28 : vector<1x32xf32> to vector<10x32xf32>
    %30 = arith.addf %26, %29 : vector<10x32xf32>
    %c1_27 = arith.constant 1 : index
    %c0_28 = arith.constant 0 : index
    %c0_29 = arith.constant 0 : index
    %31 = vector.load %arg5[%c1_27, %c0_28, %c0_29] : memref<3x32x32xbf16, #tpu.memory_space<vmem>>, vector<1x32x32xbf16>
    %32 = vector.shape_cast %31 : vector<1x32x32xbf16> to vector<32x32xbf16>
    %cst_30 = arith.constant dense<0.000000e+00> : vector<10x32xf32>
    %33 = tpu.matmul %9, %32, %cst_30 {dimension_numbers = #tpu.dot_dimension_numbers<[1], [0], [0], [1], [0, 0, 1, 1], [], []>} : vector<10x32xbf16>, vector<32x32xbf16>, vector<10x32xf32> -> vector<10x32xf32>
    %c1_31 = arith.constant 1 : index
    %c0_32 = arith.constant 0 : index
    %c0_33 = arith.constant 0 : index
    %34 = vector.load %arg7[%c1_31, %c0_32, %c0_33] : memref<3x1x32xf32, #tpu.memory_space<vmem>>, vector<1x1x32xf32>
    %35 = vector.shape_cast %34 : vector<1x1x32xf32> to vector<1x32xf32>
    %36 = vector.broadcast %35 : vector<1x32xf32> to vector<10x32xf32>
    %37 = arith.addf %33, %36 : vector<10x32xf32>
    %c2 = arith.constant 2 : index
    %c0_34 = arith.constant 0 : index
    %c0_35 = arith.constant 0 : index
    %38 = vector.load %arg4[%c2, %c0_34, %c0_35] : memref<3x32x32xbf16, #tpu.memory_space<vmem>>, vector<1x32x32xbf16>
    %39 = vector.shape_cast %38 : vector<1x32x32xbf16> to vector<32x32xbf16>
    %cst_36 = arith.constant dense<0.000000e+00> : vector<10x32xf32>
    %40 = tpu.matmul %8, %39, %cst_36 {dimension_numbers = #tpu.dot_dimension_numbers<[1], [0], [0], [1], [0, 0, 1, 1], [], []>} : vector<10x32xbf16>, vector<32x32xbf16>, vector<10x32xf32> -> vector<10x32xf32>
    %c2_37 = arith.constant 2 : index
    %c0_38 = arith.constant 0 : index
    %c0_39 = arith.constant 0 : index
    %41 = vector.load %arg6[%c2_37, %c0_38, %c0_39] : memref<3x1x32xf32, #tpu.memory_space<vmem>>, vector<1x1x32xf32>
    %42 = vector.shape_cast %41 : vector<1x1x32xf32> to vector<1x32xf32>
    %43 = vector.broadcast %42 : vector<1x32xf32> to vector<10x32xf32>
    %44 = arith.addf %40, %43 : vector<10x32xf32>
    %c2_40 = arith.constant 2 : index
    %c0_41 = arith.constant 0 : index
    %c0_42 = arith.constant 0 : index
    %45 = vector.load %arg5[%c2_40, %c0_41, %c0_42] : memref<3x32x32xbf16, #tpu.memory_space<vmem>>, vector<1x32x32xbf16>
    %46 = vector.shape_cast %45 : vector<1x32x32xbf16> to vector<32x32xbf16>
    %cst_43 = arith.constant dense<0.000000e+00> : vector<10x32xf32>
    %47 = tpu.matmul %9, %46, %cst_43 {dimension_numbers = #tpu.dot_dimension_numbers<[1], [0], [0], [1], [0, 0, 1, 1], [], []>} : vector<10x32xbf16>, vector<32x32xbf16>, vector<10x32xf32> -> vector<10x32xf32>
    %c2_44 = arith.constant 2 : index
    %c0_45 = arith.constant 0 : index
    %c0_46 = arith.constant 0 : index
    %48 = vector.load %arg7[%c2_44, %c0_45, %c0_46] : memref<3x1x32xf32, #tpu.memory_space<vmem>>, vector<1x1x32xf32>
    %49 = vector.shape_cast %48 : vector<1x1x32xf32> to vector<1x32xf32>
    %50 = vector.broadcast %49 : vector<1x32xf32> to vector<10x32xf32>
    %51 = arith.addf %47, %50 : vector<10x32xf32>
    %52 = arith.addf %16, %23 : vector<10x32xf32>
    %53 = arith.negf %52 : vector<10x32xf32>
    %54 = math.exp %53 : vector<10x32xf32>
    %cst_47 = arith.constant 1.000000e+00 : f32
    %55 = vector.broadcast %cst_47 : f32 to vector<10x32xf32>
    %56 = arith.addf %55, %54 : vector<10x32xf32>
    %57 = arith.divf %55, %56 : vector<10x32xf32>
    %58 = arith.addf %30, %37 : vector<10x32xf32>
    %59 = arith.negf %58 : vector<10x32xf32>
    %60 = math.exp %59 : vector<10x32xf32>
    %cst_48 = arith.constant 1.000000e+00 : f32
    %61 = vector.broadcast %cst_48 : f32 to vector<10x32xf32>
    %62 = arith.addf %61, %60 : vector<10x32xf32>
    %63 = arith.divf %61, %62 : vector<10x32xf32>
    %64 = arith.mulf %57, %51 : vector<10x32xf32>
    %65 = arith.addf %44, %64 : vector<10x32xf32>
    %66 = math.tanh %65 : vector<10x32xf32>
    %cst_49 = arith.constant 1.000000e+00 : f32
    %67 = vector.broadcast %cst_49 : f32 to vector<10x32xf32>
    %68 = arith.subf %67, %63 : vector<10x32xf32>
    %69 = arith.mulf %68, %66 : vector<10x32xf32>
    %70 = arith.mulf %63, %1 : vector<10x32xf32>
    %71 = arith.addf %69, %70 : vector<10x32xf32>
    %72 = arith.truncf %71 : vector<10x32xf32> to vector<10x32xbf16>
    %c1_50 = arith.constant 1 : index
    %c0_51 = arith.constant 0 : index
    %c0_52 = arith.constant 0 : index
    %73 = vector.load %arg3[%c1_50, %c0_51, %c0_52] : memref<3x32x32xbf16, #tpu.memory_space<vmem>>, vector<1x32x32xbf16>
    %74 = vector.shape_cast %73 : vector<1x32x32xbf16> to vector<32x32xbf16>
    %cst_53 = arith.constant dense<0.000000e+00> : vector<10x32xf32>
    %75 = tpu.matmul %72, %74, %cst_53 {dimension_numbers = #tpu.dot_dimension_numbers<[1], [0], [0], [1], [0, 0, 1, 1], [], []>} : vector<10x32xbf16>, vector<32x32xbf16>, vector<10x32xf32> -> vector<10x32xf32>
    %76 = arith.truncf %75 : vector<10x32xf32> to vector<10x32xbf16>
    %cst_54 = arith.constant dense<0.000000e+00> : vector<10x32xf32>
    %77 = tpu.matmul %0, %76, %cst_54 {dimension_numbers = #tpu.dot_dimension_numbers<[1], [0], [0], [1], [0, 0, 1, 1], [], []>} : vector<10x10xbf16>, vector<10x32xbf16>, vector<10x32xf32> -> vector<10x32xf32>
    %78 = arith.truncf %77 : vector<10x32xf32> to vector<10x32xbf16>
    %79 = arith.truncf %71 : vector<10x32xf32> to vector<10x32xbf16>
    %c0_55 = arith.constant 0 : index
    %c0_56 = arith.constant 0 : index
    %c0_57 = arith.constant 0 : index
    %80 = vector.load %arg4[%c0_55, %c0_56, %c0_57] : memref<3x32x32xbf16, #tpu.memory_space<vmem>>, vector<1x32x32xbf16>
    %81 = vector.shape_cast %80 : vector<1x32x32xbf16> to vector<32x32xbf16>
    %cst_58 = arith.constant dense<0.000000e+00> : vector<10x32xf32>
    %82 = tpu.matmul %78, %81, %cst_58 {dimension_numbers = #tpu.dot_dimension_numbers<[1], [0], [0], [1], [0, 0, 1, 1], [], []>} : vector<10x32xbf16>, vector<32x32xbf16>, vector<10x32xf32> -> vector<10x32xf32>
    %c0_59 = arith.constant 0 : index
    %c0_60 = arith.constant 0 : index
    %c0_61 = arith.constant 0 : index
    %83 = vector.load %arg6[%c0_59, %c0_60, %c0_61] : memref<3x1x32xf32, #tpu.memory_space<vmem>>, vector<1x1x32xf32>
    %84 = vector.shape_cast %83 : vector<1x1x32xf32> to vector<1x32xf32>
    %85 = vector.broadcast %84 : vector<1x32xf32> to vector<10x32xf32>
    %86 = arith.addf %82, %85 : vector<10x32xf32>
    %c0_62 = arith.constant 0 : index
    %c0_63 = arith.constant 0 : index
    %c0_64 = arith.constant 0 : index
    %87 = vector.load %arg5[%c0_62, %c0_63, %c0_64] : memref<3x32x32xbf16, #tpu.memory_space<vmem>>, vector<1x32x32xbf16>
    %88 = vector.shape_cast %87 : vector<1x32x32xbf16> to vector<32x32xbf16>
    %cst_65 = arith.constant dense<0.000000e+00> : vector<10x32xf32>
    %89 = tpu.matmul %79, %88, %cst_65 {dimension_numbers = #tpu.dot_dimension_numbers<[1], [0], [0], [1], [0, 0, 1, 1], [], []>} : vector<10x32xbf16>, vector<32x32xbf16>, vector<10x32xf32> -> vector<10x32xf32>
    %c0_66 = arith.constant 0 : index
    %c0_67 = arith.constant 0 : index
    %c0_68 = arith.constant 0 : index
    %90 = vector.load %arg7[%c0_66, %c0_67, %c0_68] : memref<3x1x32xf32, #tpu.memory_space<vmem>>, vector<1x1x32xf32>
    %91 = vector.shape_cast %90 : vector<1x1x32xf32> to vector<1x32xf32>
    %92 = vector.broadcast %91 : vector<1x32xf32> to vector<10x32xf32>
    %93 = arith.addf %89, %92 : vector<10x32xf32>
    %c1_69 = arith.constant 1 : index
    %c0_70 = arith.constant 0 : index
    %c0_71 = arith.constant 0 : index
    %94 = vector.load %arg4[%c1_69, %c0_70, %c0_71] : memref<3x32x32xbf16, #tpu.memory_space<vmem>>, vector<1x32x32xbf16>
    %95 = vector.shape_cast %94 : vector<1x32x32xbf16> to vector<32x32xbf16>
    %cst_72 = arith.constant dense<0.000000e+00> : vector<10x32xf32>
    %96 = tpu.matmul %78, %95, %cst_72 {dimension_numbers = #tpu.dot_dimension_numbers<[1], [0], [0], [1], [0, 0, 1, 1], [], []>} : vector<10x32xbf16>, vector<32x32xbf16>, vector<10x32xf32> -> vector<10x32xf32>
    %c1_73 = arith.constant 1 : index
    %c0_74 = arith.constant 0 : index
    %c0_75 = arith.constant 0 : index
    %97 = vector.load %arg6[%c1_73, %c0_74, %c0_75] : memref<3x1x32xf32, #tpu.memory_space<vmem>>, vector<1x1x32xf32>
    %98 = vector.shape_cast %97 : vector<1x1x32xf32> to vector<1x32xf32>
    %99 = vector.broadcast %98 : vector<1x32xf32> to vector<10x32xf32>
    %100 = arith.addf %96, %99 : vector<10x32xf32>
    %c1_76 = arith.constant 1 : index
    %c0_77 = arith.constant 0 : index
    %c0_78 = arith.constant 0 : index
    %101 = vector.load %arg5[%c1_76, %c0_77, %c0_78] : memref<3x32x32xbf16, #tpu.memory_space<vmem>>, vector<1x32x32xbf16>
    %102 = vector.shape_cast %101 : vector<1x32x32xbf16> to vector<32x32xbf16>
    %cst_79 = arith.constant dense<0.000000e+00> : vector<10x32xf32>
    %103 = tpu.matmul %79, %102, %cst_79 {dimension_numbers = #tpu.dot_dimension_numbers<[1], [0], [0], [1], [0, 0, 1, 1], [], []>} : vector<10x32xbf16>, vector<32x32xbf16>, vector<10x32xf32> -> vector<10x32xf32>
    %c1_80 = arith.constant 1 : index
    %c0_81 = arith.constant 0 : index
    %c0_82 = arith.constant 0 : index
    %104 = vector.load %arg7[%c1_80, %c0_81, %c0_82] : memref<3x1x32xf32, #tpu.memory_space<vmem>>, vector<1x1x32xf32>
    %105 = vector.shape_cast %104 : vector<1x1x32xf32> to vector<1x32xf32>
    %106 = vector.broadcast %105 : vector<1x32xf32> to vector<10x32xf32>
    %107 = arith.addf %103, %106 : vector<10x32xf32>
    %c2_83 = arith.constant 2 : index
    %c0_84 = arith.constant 0 : index
    %c0_85 = arith.constant 0 : index
    %108 = vector.load %arg4[%c2_83, %c0_84, %c0_85] : memref<3x32x32xbf16, #tpu.memory_space<vmem>>, vector<1x32x32xbf16>
    %109 = vector.shape_cast %108 : vector<1x32x32xbf16> to vector<32x32xbf16>
    %cst_86 = arith.constant dense<0.000000e+00> : vector<10x32xf32>
    %110 = tpu.matmul %78, %109, %cst_86 {dimension_numbers = #tpu.dot_dimension_numbers<[1], [0], [0], [1], [0, 0, 1, 1], [], []>} : vector<10x32xbf16>, vector<32x32xbf16>, vector<10x32xf32> -> vector<10x32xf32>
    %c2_87 = arith.constant 2 : index
    %c0_88 = arith.constant 0 : index
    %c0_89 = arith.constant 0 : index
    %111 = vector.load %arg6[%c2_87, %c0_88, %c0_89] : memref<3x1x32xf32, #tpu.memory_space<vmem>>, vector<1x1x32xf32>
    %112 = vector.shape_cast %111 : vector<1x1x32xf32> to vector<1x32xf32>
    %113 = vector.broadcast %112 : vector<1x32xf32> to vector<10x32xf32>
    %114 = arith.addf %110, %113 : vector<10x32xf32>
    %c2_90 = arith.constant 2 : index
    %c0_91 = arith.constant 0 : index
    %c0_92 = arith.constant 0 : index
    %115 = vector.load %arg5[%c2_90, %c0_91, %c0_92] : memref<3x32x32xbf16, #tpu.memory_space<vmem>>, vector<1x32x32xbf16>
    %116 = vector.shape_cast %115 : vector<1x32x32xbf16> to vector<32x32xbf16>
    %cst_93 = arith.constant dense<0.000000e+00> : vector<10x32xf32>
    %117 = tpu.matmul %79, %116, %cst_93 {dimension_numbers = #tpu.dot_dimension_numbers<[1], [0], [0], [1], [0, 0, 1, 1], [], []>} : vector<10x32xbf16>, vector<32x32xbf16>, vector<10x32xf32> -> vector<10x32xf32>
    %c2_94 = arith.constant 2 : index
    %c0_95 = arith.constant 0 : index
    %c0_96 = arith.constant 0 : index
    %118 = vector.load %arg7[%c2_94, %c0_95, %c0_96] : memref<3x1x32xf32, #tpu.memory_space<vmem>>, vector<1x1x32xf32>
    %119 = vector.shape_cast %118 : vector<1x1x32xf32> to vector<1x32xf32>
    %120 = vector.broadcast %119 : vector<1x32xf32> to vector<10x32xf32>
    %121 = arith.addf %117, %120 : vector<10x32xf32>
    %122 = arith.addf %86, %93 : vector<10x32xf32>
    %123 = arith.negf %122 : vector<10x32xf32>
    %124 = math.exp %123 : vector<10x32xf32>
    %cst_97 = arith.constant 1.000000e+00 : f32
    %125 = vector.broadcast %cst_97 : f32 to vector<10x32xf32>
    %126 = arith.addf %125, %124 : vector<10x32xf32>
    %127 = arith.divf %125, %126 : vector<10x32xf32>
    %128 = arith.addf %100, %107 : vector<10x32xf32>
    %129 = arith.negf %128 : vector<10x32xf32>
    %130 = math.exp %129 : vector<10x32xf32>
    %cst_98 = arith.constant 1.000000e+00 : f32
    %131 = vector.broadcast %cst_98 : f32 to vector<10x32xf32>
    %132 = arith.addf %131, %130 : vector<10x32xf32>
    %133 = arith.divf %131, %132 : vector<10x32xf32>
    %134 = arith.mulf %127, %121 : vector<10x32xf32>
    %135 = arith.addf %114, %134 : vector<10x32xf32>
    %136 = math.tanh %135 : vector<10x32xf32>
    %cst_99 = arith.constant 1.000000e+00 : f32
    %137 = vector.broadcast %cst_99 : f32 to vector<10x32xf32>
    %138 = arith.subf %137, %133 : vector<10x32xf32>
    %139 = arith.mulf %138, %136 : vector<10x32xf32>
    %140 = arith.mulf %133, %71 : vector<10x32xf32>
    %141 = arith.addf %139, %140 : vector<10x32xf32>
    %142 = arith.truncf %141 : vector<10x32xf32> to vector<10x32xbf16>
    %c2_100 = arith.constant 2 : index
    %c0_101 = arith.constant 0 : index
    %c0_102 = arith.constant 0 : index
    %143 = vector.load %arg3[%c2_100, %c0_101, %c0_102] : memref<3x32x32xbf16, #tpu.memory_space<vmem>>, vector<1x32x32xbf16>
    %144 = vector.shape_cast %143 : vector<1x32x32xbf16> to vector<32x32xbf16>
    %cst_103 = arith.constant dense<0.000000e+00> : vector<10x32xf32>
    %145 = tpu.matmul %142, %144, %cst_103 {dimension_numbers = #tpu.dot_dimension_numbers<[1], [0], [0], [1], [0, 0, 1, 1], [], []>} : vector<10x32xbf16>, vector<32x32xbf16>, vector<10x32xf32> -> vector<10x32xf32>
    %146 = arith.truncf %145 : vector<10x32xf32> to vector<10x32xbf16>
    %cst_104 = arith.constant dense<0.000000e+00> : vector<10x32xf32>
    %147 = tpu.matmul %0, %146, %cst_104 {dimension_numbers = #tpu.dot_dimension_numbers<[1], [0], [0], [1], [0, 0, 1, 1], [], []>} : vector<10x10xbf16>, vector<10x32xbf16>, vector<10x32xf32> -> vector<10x32xf32>
    %148 = arith.truncf %147 : vector<10x32xf32> to vector<10x32xbf16>
    %149 = arith.truncf %141 : vector<10x32xf32> to vector<10x32xbf16>
    %c0_105 = arith.constant 0 : index
    %c0_106 = arith.constant 0 : index
    %c0_107 = arith.constant 0 : index
    %150 = vector.load %arg4[%c0_105, %c0_106, %c0_107] : memref<3x32x32xbf16, #tpu.memory_space<vmem>>, vector<1x32x32xbf16>
    %151 = vector.shape_cast %150 : vector<1x32x32xbf16> to vector<32x32xbf16>
    %cst_108 = arith.constant dense<0.000000e+00> : vector<10x32xf32>
    %152 = tpu.matmul %148, %151, %cst_108 {dimension_numbers = #tpu.dot_dimension_numbers<[1], [0], [0], [1], [0, 0, 1, 1], [], []>} : vector<10x32xbf16>, vector<32x32xbf16>, vector<10x32xf32> -> vector<10x32xf32>
    %c0_109 = arith.constant 0 : index
    %c0_110 = arith.constant 0 : index
    %c0_111 = arith.constant 0 : index
    %153 = vector.load %arg6[%c0_109, %c0_110, %c0_111] : memref<3x1x32xf32, #tpu.memory_space<vmem>>, vector<1x1x32xf32>
    %154 = vector.shape_cast %153 : vector<1x1x32xf32> to vector<1x32xf32>
    %155 = vector.broadcast %154 : vector<1x32xf32> to vector<10x32xf32>
    %156 = arith.addf %152, %155 : vector<10x32xf32>
    %c0_112 = arith.constant 0 : index
    %c0_113 = arith.constant 0 : index
    %c0_114 = arith.constant 0 : index
    %157 = vector.load %arg5[%c0_112, %c0_113, %c0_114] : memref<3x32x32xbf16, #tpu.memory_space<vmem>>, vector<1x32x32xbf16>
    %158 = vector.shape_cast %157 : vector<1x32x32xbf16> to vector<32x32xbf16>
    %cst_115 = arith.constant dense<0.000000e+00> : vector<10x32xf32>
    %159 = tpu.matmul %149, %158, %cst_115 {dimension_numbers = #tpu.dot_dimension_numbers<[1], [0], [0], [1], [0, 0, 1, 1], [], []>} : vector<10x32xbf16>, vector<32x32xbf16>, vector<10x32xf32> -> vector<10x32xf32>
    %c0_116 = arith.constant 0 : index
    %c0_117 = arith.constant 0 : index
    %c0_118 = arith.constant 0 : index
    %160 = vector.load %arg7[%c0_116, %c0_117, %c0_118] : memref<3x1x32xf32, #tpu.memory_space<vmem>>, vector<1x1x32xf32>
    %161 = vector.shape_cast %160 : vector<1x1x32xf32> to vector<1x32xf32>
    %162 = vector.broadcast %161 : vector<1x32xf32> to vector<10x32xf32>
    %163 = arith.addf %159, %162 : vector<10x32xf32>
    %c1_119 = arith.constant 1 : index
    %c0_120 = arith.constant 0 : index
    %c0_121 = arith.constant 0 : index
    %164 = vector.load %arg4[%c1_119, %c0_120, %c0_121] : memref<3x32x32xbf16, #tpu.memory_space<vmem>>, vector<1x32x32xbf16>
    %165 = vector.shape_cast %164 : vector<1x32x32xbf16> to vector<32x32xbf16>
    %cst_122 = arith.constant dense<0.000000e+00> : vector<10x32xf32>
    %166 = tpu.matmul %148, %165, %cst_122 {dimension_numbers = #tpu.dot_dimension_numbers<[1], [0], [0], [1], [0, 0, 1, 1], [], []>} : vector<10x32xbf16>, vector<32x32xbf16>, vector<10x32xf32> -> vector<10x32xf32>
    %c1_123 = arith.constant 1 : index
    %c0_124 = arith.constant 0 : index
    %c0_125 = arith.constant 0 : index
    %167 = vector.load %arg6[%c1_123, %c0_124, %c0_125] : memref<3x1x32xf32, #tpu.memory_space<vmem>>, vector<1x1x32xf32>
    %168 = vector.shape_cast %167 : vector<1x1x32xf32> to vector<1x32xf32>
    %169 = vector.broadcast %168 : vector<1x32xf32> to vector<10x32xf32>
    %170 = arith.addf %166, %169 : vector<10x32xf32>
    %c1_126 = arith.constant 1 : index
    %c0_127 = arith.constant 0 : index
    %c0_128 = arith.constant 0 : index
    %171 = vector.load %arg5[%c1_126, %c0_127, %c0_128] : memref<3x32x32xbf16, #tpu.memory_space<vmem>>, vector<1x32x32xbf16>
    %172 = vector.shape_cast %171 : vector<1x32x32xbf16> to vector<32x32xbf16>
    %cst_129 = arith.constant dense<0.000000e+00> : vector<10x32xf32>
    %173 = tpu.matmul %149, %172, %cst_129 {dimension_numbers = #tpu.dot_dimension_numbers<[1], [0], [0], [1], [0, 0, 1, 1], [], []>} : vector<10x32xbf16>, vector<32x32xbf16>, vector<10x32xf32> -> vector<10x32xf32>
    %c1_130 = arith.constant 1 : index
    %c0_131 = arith.constant 0 : index
    %c0_132 = arith.constant 0 : index
    %174 = vector.load %arg7[%c1_130, %c0_131, %c0_132] : memref<3x1x32xf32, #tpu.memory_space<vmem>>, vector<1x1x32xf32>
    %175 = vector.shape_cast %174 : vector<1x1x32xf32> to vector<1x32xf32>
    %176 = vector.broadcast %175 : vector<1x32xf32> to vector<10x32xf32>
    %177 = arith.addf %173, %176 : vector<10x32xf32>
    %c2_133 = arith.constant 2 : index
    %c0_134 = arith.constant 0 : index
    %c0_135 = arith.constant 0 : index
    %178 = vector.load %arg4[%c2_133, %c0_134, %c0_135] : memref<3x32x32xbf16, #tpu.memory_space<vmem>>, vector<1x32x32xbf16>
    %179 = vector.shape_cast %178 : vector<1x32x32xbf16> to vector<32x32xbf16>
    %cst_136 = arith.constant dense<0.000000e+00> : vector<10x32xf32>
    %180 = tpu.matmul %148, %179, %cst_136 {dimension_numbers = #tpu.dot_dimension_numbers<[1], [0], [0], [1], [0, 0, 1, 1], [], []>} : vector<10x32xbf16>, vector<32x32xbf16>, vector<10x32xf32> -> vector<10x32xf32>
    %c2_137 = arith.constant 2 : index
    %c0_138 = arith.constant 0 : index
    %c0_139 = arith.constant 0 : index
    %181 = vector.load %arg6[%c2_137, %c0_138, %c0_139] : memref<3x1x32xf32, #tpu.memory_space<vmem>>, vector<1x1x32xf32>
    %182 = vector.shape_cast %181 : vector<1x1x32xf32> to vector<1x32xf32>
    %183 = vector.broadcast %182 : vector<1x32xf32> to vector<10x32xf32>
    %184 = arith.addf %180, %183 : vector<10x32xf32>
    %c2_140 = arith.constant 2 : index
    %c0_141 = arith.constant 0 : index
    %c0_142 = arith.constant 0 : index
    %185 = vector.load %arg5[%c2_140, %c0_141, %c0_142] : memref<3x32x32xbf16, #tpu.memory_space<vmem>>, vector<1x32x32xbf16>
    %186 = vector.shape_cast %185 : vector<1x32x32xbf16> to vector<32x32xbf16>
    %cst_143 = arith.constant dense<0.000000e+00> : vector<10x32xf32>
    %187 = tpu.matmul %149, %186, %cst_143 {dimension_numbers = #tpu.dot_dimension_numbers<[1], [0], [0], [1], [0, 0, 1, 1], [], []>} : vector<10x32xbf16>, vector<32x32xbf16>, vector<10x32xf32> -> vector<10x32xf32>
    %c2_144 = arith.constant 2 : index
    %c0_145 = arith.constant 0 : index
    %c0_146 = arith.constant 0 : index
    %188 = vector.load %arg7[%c2_144, %c0_145, %c0_146] : memref<3x1x32xf32, #tpu.memory_space<vmem>>, vector<1x1x32xf32>
    %189 = vector.shape_cast %188 : vector<1x1x32xf32> to vector<1x32xf32>
    %190 = vector.broadcast %189 : vector<1x32xf32> to vector<10x32xf32>
    %191 = arith.addf %187, %190 : vector<10x32xf32>
    %192 = arith.addf %156, %163 : vector<10x32xf32>
    %193 = arith.negf %192 : vector<10x32xf32>
    %194 = math.exp %193 : vector<10x32xf32>
    %cst_147 = arith.constant 1.000000e+00 : f32
    %195 = vector.broadcast %cst_147 : f32 to vector<10x32xf32>
    %196 = arith.addf %195, %194 : vector<10x32xf32>
    %197 = arith.divf %195, %196 : vector<10x32xf32>
    %198 = arith.addf %170, %177 : vector<10x32xf32>
    %199 = arith.negf %198 : vector<10x32xf32>
    %200 = math.exp %199 : vector<10x32xf32>
    %cst_148 = arith.constant 1.000000e+00 : f32
    %201 = vector.broadcast %cst_148 : f32 to vector<10x32xf32>
    %202 = arith.addf %201, %200 : vector<10x32xf32>
    %203 = arith.divf %201, %202 : vector<10x32xf32>
    %204 = arith.mulf %197, %191 : vector<10x32xf32>
    %205 = arith.addf %184, %204 : vector<10x32xf32>
    %206 = math.tanh %205 : vector<10x32xf32>
    %cst_149 = arith.constant 1.000000e+00 : f32
    %207 = vector.broadcast %cst_149 : f32 to vector<10x32xf32>
    %208 = arith.subf %207, %203 : vector<10x32xf32>
    %209 = arith.mulf %208, %206 : vector<10x32xf32>
    %210 = arith.mulf %203, %141 : vector<10x32xf32>
    %211 = arith.addf %209, %210 : vector<10x32xf32>
    %c0_150 = arith.constant 0 : index
    %c0_151 = arith.constant 0 : index
    %212 = vector.load %arg8[%c0_150, %c0_151] : memref<2x32xbf16, #tpu.memory_space<vmem>>, vector<2x32xbf16>
    %213 = arith.truncf %211 : vector<10x32xf32> to vector<10x32xbf16>
    %cst_152 = arith.constant dense<0.000000e+00> : vector<2x10xf32>
    %214 = tpu.matmul %212, %213, %cst_152 {dimension_numbers = #tpu.dot_dimension_numbers<[1], [1], [0], [0], [0, 0, 1, 0], [], []>} : vector<2x32xbf16>, vector<10x32xbf16>, vector<2x10xf32> -> vector<2x10xf32>
    %c0_153 = arith.constant 0 : index
    %c0_154 = arith.constant 0 : index
    %215 = vector.load %arg9[%c0_153, %c0_154] : memref<2x10xf32, #tpu.memory_space<vmem>>, vector<2x10xf32>
    tpu.vector_store %arg9[%c0_153, %c0_154], %214 {strides = array<i32>} : memref<2x10xf32, #tpu.memory_space<vmem>>, vector<2x10xf32>,
    return
  }
  func.func @transform_0(%arg0: i32) -> (i32, i32) {
    %c0_i32 = arith.constant 0 : i32
    %c0_i32_0 = arith.constant 0 : i32
    %c0_i32_1 = arith.constant 0 : i32
    return %c0_i32, %c0_i32_0 : i32, i32
  }
  func.func @transform_1(%arg0: i32) -> (i32, i32) {
    %c0_i32 = arith.constant 0 : i32
    %c0_i32_0 = arith.constant 0 : i32
    %c0_i32_1 = arith.constant 0 : i32
    return %c0_i32, %c0_i32_0 : i32, i32
  }
  func.func @transform_2(%arg0: i32) -> (i32, i32, i32) {
    %c0_i32 = arith.constant 0 : i32
    %c0_i32_0 = arith.constant 0 : i32
    %c0_i32_1 = arith.constant 0 : i32
    %c0_i32_2 = arith.constant 0 : i32
    return %c0_i32, %c0_i32_0, %c0_i32_1 : i32, i32, i32
  }
  func.func @transform_3(%arg0: i32) -> (i32, i32, i32) {
    %c0_i32 = arith.constant 0 : i32
    %c0_i32_0 = arith.constant 0 : i32
    %c0_i32_1 = arith.constant 0 : i32
    %c0_i32_2 = arith.constant 0 : i32
    return %c0_i32, %c0_i32_0, %c0_i32_1 : i32, i32, i32
  }
  func.func @transform_4(%arg0: i32) -> (i32, i32, i32) {
    %c0_i32 = arith.constant 0 : i32
    %c0_i32_0 = arith.constant 0 : i32
    %c0_i32_1 = arith.constant 0 : i32
    %c0_i32_2 = arith.constant 0 : i32
    return %c0_i32, %c0_i32_0, %c0_i32_1 : i32, i32, i32
  }
  func.func @transform_5(%arg0: i32) -> (i32, i32, i32) {
    %c0_i32 = arith.constant 0 : i32
    %c0_i32_0 = arith.constant 0 : i32
    %c0_i32_1 = arith.constant 0 : i32
    %c0_i32_2 = arith.constant 0 : i32
    return %c0_i32, %c0_i32_0, %c0_i32_1 : i32, i32, i32
  }
  func.func @transform_6(%arg0: i32) -> (i32, i32, i32) {
    %c0_i32 = arith.constant 0 : i32
    %c0_i32_0 = arith.constant 0 : i32
    %c0_i32_1 = arith.constant 0 : i32
    %c0_i32_2 = arith.constant 0 : i32
    return %c0_i32, %c0_i32_0, %c0_i32_1 : i32, i32, i32
  }
  func.func @transform_7(%arg0: i32) -> (i32, i32) {
    %c0_i32 = arith.constant 0 : i32
    %c0_i32_0 = arith.constant 0 : i32
    %c0_i32_1 = arith.constant 0 : i32
    return %c0_i32, %c0_i32_0 : i32, i32
  }
  func.func @transform_8(%arg0: i32) -> (i32, i32) {
    %c0_i32 = arith.constant 0 : i32
    %c0_i32_0 = arith.constant 0 : i32
    %c0_i32_1 = arith.constant 0 : i32
    return %c0_i32, %c0_i32_0 : i32, i32
  }
}

</mosaic_0001>

<llo_original>
// kernel: crnn_ggnn_forward.5
$region0: #{crnn_ggnn_forward.5}
  #allocation0 [shape = 'u32[]', space=smem, size = 0x4, offset = 0x4, fixed_abs, tag = 'smem constant byte address 0x4 - core index']
  #allocation1 [shape = 'u32[72,128]{1,0:T(1,128)}', space=vmem, size = 0x9000, scoped, tag = 'internal scratch']
  %s0 = inlined_call_operand.vmem [shape: bf16[128,72], index: 0, kind: input, shape index: {}]
  %s1 = inlined_call_operand.vmem [shape: bf16[72,16], index: 1, kind: input, shape index: {}]
  %s2 = inlined_call_operand.vmem [shape: f32[1,16], index: 2, kind: input, shape index: {}]
  %s3 = inlined_call_operand.vmem [shape: f32[128,16], index: 3, kind: output, shape index: {}]
  %s4 = sld [smem:[#allocation0]]
  $region22: #{crnn_ggnn_forward.5} parent=0
    _
  %s6 = ssub.s32 1, %s4
  %s7 = scalar_select 0, %s6, %s4
  // Predicated region
  $region2: #{crnn_ggnn_forward.5} parent=0 // pred_check
    _
  $region3: #{crnn_ggnn_forward.5} parent=0 // pred_check_branch
    %9 = sbr.rel (0) target = $region5
  $region4: #{crnn_ggnn_forward.5} parent=0 // pred_region
    _
  $region5: #{crnn_ggnn_forward.5} parent=0 // pred_fallthru
    _
  // Predicated region
  $region6: #{crnn_ggnn_forward.5} parent=0 // pred_check
    _
  $region7: #{crnn_ggnn_forward.5} parent=0 // pred_check_branch
    %11 = sbr.rel (0) target = $region9
  $region8: #{crnn_ggnn_forward.5} parent=0 // pred_region
    _
  $region9: #{crnn_ggnn_forward.5} parent=0 // pred_fallthru
    _
  // Predicated region
  $region10: #{crnn_ggnn_forward.5} parent=0 // pred_check
    _
  $region11: #{crnn_ggnn_forward.5} parent=0 // pred_check_branch
    %13 = sbr.rel (0) target = $region13
  $region12: #{crnn_ggnn_forward.5} parent=0 // pred_region
    _
  $region13: #{crnn_ggnn_forward.5} parent=0 // pred_fallthru
    _
  %v15 = vld [vmem:[%s0] sm:$0xf]
  %v16 = vld [vmem:[%s0 + $0x4] sm:$0xf]
  %v17 = vld [vmem:[%s0 + $0x8] sm:$0xf]
  %v18 = vld [vmem:[%s0 + $0xc] sm:$0xf]
  %v19 = vld [vmem:[%s0 + $0x10] sm:$0xf]
  %v20 = vld [vmem:[%s0 + $0x14] sm:$0xf]
  %v21 = vld [vmem:[%s0 + $0x18] sm:$0xf]
  %v22 = vld [vmem:[%s0 + $0x1c] sm:$0xf]
  %v23 = vld [vmem:[%s0 + $0x20] sm:$0xf]
  %v24 = vld [vmem:[%s0 + $0x24] sm:$0xf]
  %v25 = vld [vmem:[%s0 + $0x28] sm:$0xf]
  %v26 = vld [vmem:[%s0 + $0x2c] sm:$0xf]
  %v27 = vld [vmem:[%s0 + $0x30] sm:$0xf]
  %v28 = vld [vmem:[%s0 + $0x34] sm:$0xf]
  %v29 = vld [vmem:[%s0 + $0x38] sm:$0xf]
  %v30 = vld [vmem:[%s0 + $0x3c] sm:$0xf]
  %v31 = vld [vmem:[%s1] sm:$0xf]
  %v32 = vld [vmem:[%s1 + $0x4] sm:$0xf]
  %v33 = vld [vmem:[%s1 + $0x8] sm:$0xf]
  %v34 = vld [vmem:[%s1 + $0xc] sm:$0xf]
  %v35 = vld [vmem:[%s1 + $0x10] sm:$0xf]
  %v36 = vld [vmem:[%s1 + $0x14] sm:$0xf]
  %v37 = vld [vmem:[%s1 + $0x18] sm:$0xf]
  %v38 = vld [vmem:[%s1 + $0x1c] sm:$0xf]
  %v39 = vld [vmem:[%s1 + $0x20] sm:$0xf]
  %v40 = vld [vmem:[%s2] sm:$0x1]
  %v42 = vperm.slane %v40, 0
  %v60 = vunpack.c.l.b16 %v15
  %v61 = vunpack.c.l.b16 %v16
  %v62 = vunpack.c.l.b16 %v17
  %v63 = vunpack.c.l.b16 %v18
  %v64 = vunpack.c.l.b16 %v19
  %v65 = vunpack.c.l.b16 %v20
  %v66 = vunpack.c.l.b16 %v21
  %v67 = vunpack.c.l.b16 %v22
  %v68 = vunpack.c.l.b16 %v23
  %v69 = vunpack.c.l.b16 %v24
  %v70 = vunpack.c.l.b16 %v25
  %v71 = vunpack.c.l.b16 %v26
  %v72 = vunpack.c.l.b16 %v27
  %v73 = vunpack.c.l.b16 %v28
  %v74 = vunpack.c.l.b16 %v29
  %v75 = vunpack.c.l.b16 %v30
  %v76 = vpack.c.b16 %v61, %v60
  %v77 = vpack.c.b16 %v63, %v62
  %v78 = vpack.c.b16 %v65, %v64
  %v79 = vpack.c.b16 %v67, %v66
  %v80 = vpack.c.b16 %v69, %v68
  %v81 = vpack.c.b16 %v71, %v70
  %v82 = vpack.c.b16 %v73, %v72
  %v83 = vpack.c.b16 %v75, %v74
  %v93 = vunpack.c.l.b16 %v31
  %v94 = vunpack.c.l.b16 %v32
  %v95 = vunpack.c.l.b16 %v33
  %v96 = vunpack.c.l.b16 %v34
  %v97 = vunpack.c.l.b16 %v35
  %v98 = vunpack.c.l.b16 %v36
  %v99 = vunpack.c.l.b16 %v37
  %v100 = vunpack.c.l.b16 %v38
  %v101 = vunpack.c.l.b16 %v39
  %v102 = vpack.c.b16 %v94, %v93
  %v103 = vpack.c.b16 %v96, %v95
  %v104 = vpack.c.b16 %v98, %v97
  %v105 = vpack.c.b16 %v100, %v99
  %v106 = vpack.c.b16 %v101, %v101
  %vm111 = vcmask 588800
  %v113 = vsel %vm111, %v76, 0
  %v116 = vsel %vm111, %v77, 0
  %v119 = vsel %vm111, %v78, 0
  %v122 = vsel %vm111, %v79, 0
  %v125 = vsel %vm111, %v80, 0
  %v128 = vsel %vm111, %v81, 0
  %v131 = vsel %vm111, %v82, 0
  %v134 = vsel %vm111, %v83, 0
  %vm136 = vcmask 1043456
  %v138 = vsel %vm136, %v106, 0
  %140 = vmatpush.bf16.msra.mxu0 0
  %141 = vmatpush.bf16.msra.mxu0 0
  %142 = vmatpush.bf16.msra.mxu0 0
  %143 = vmatpush.bf16.msra.mxu0 %v138
  %144 = vmatpush.bf16.msra.mxu0 %v105
  %145 = vmatpush.bf16.msra.mxu0 %v104
  %146 = vmatpush.bf16.msra.mxu0 %v103
  %147 = vmatpush.bf16.msra.mxu0 %v102
  %148 = vmatmul.bf16.gmra.mxu0 %v113
  %v149 = vpop.f32.mrf.mxu0
  %v150 = vadd.f32 %v42, %v149
  %v151 = vpop.f32.mrf.mxu0
  %v152 = vadd.f32 %v42, %v151
  %153 = vmatmul.bf16.gmra.mxu0 %v116
  %v154 = vpop.f32.mrf.mxu0
  %v155 = vadd.f32 %v42, %v154
  %v156 = vpop.f32.mrf.mxu0
  %v157 = vadd.f32 %v42, %v156
  %158 = vmatmul.bf16.gmra.mxu0 %v119
  %v159 = vpop.f32.mrf.mxu0
  %v160 = vadd.f32 %v42, %v159
  %v161 = vpop.f32.mrf.mxu0
  %v162 = vadd.f32 %v42, %v161
  %163 = vmatmul.bf16.gmra.mxu0 %v122
  %v164 = vpop.f32.mrf.mxu0
  %v165 = vadd.f32 %v42, %v164
  %v166 = vpop.f32.mrf.mxu0
  %v167 = vadd.f32 %v42, %v166
  %168 = vmatmul.bf16.gmra.mxu0 %v125
  %v169 = vpop.f32.mrf.mxu0
  %v170 = vadd.f32 %v42, %v169
  %v171 = vpop.f32.mrf.mxu0
  %v172 = vadd.f32 %v42, %v171
  %173 = vmatmul.bf16.gmra.mxu0 %v128
  %v174 = vpop.f32.mrf.mxu0
  %v175 = vadd.f32 %v42, %v174
  %v176 = vpop.f32.mrf.mxu0
  %v177 = vadd.f32 %v42, %v176
  %178 = vmatmul.bf16.gmra.mxu0 %v131
  %v179 = vpop.f32.mrf.mxu0
  %v180 = vadd.f32 %v42, %v179
  %v181 = vpop.f32.mrf.mxu0
  %v182 = vadd.f32 %v42, %v181
  %183 = vmatmul.bf16.gmra.mxu0 %v134
  %v184 = vpop.f32.mrf.mxu0
  %v185 = vadd.f32 %v42, %v184
  %v186 = vpop.f32.mrf.mxu0
  %v187 = vadd.f32 %v42, %v186
  %188 = vdwg.mxu0
  %v189 = vmax.f32 %v150, 0.0
  %v190 = vmax.f32 %v152, 0.0
  %v191 = vmax.f32 %v155, 0.0
  %v192 = vmax.f32 %v157, 0.0
  %v193 = vmax.f32 %v160, 0.0
  %v194 = vmax.f32 %v162, 0.0
  %v195 = vmax.f32 %v165, 0.0
  %v196 = vmax.f32 %v167, 0.0
  %v197 = vmax.f32 %v170, 0.0
  %v198 = vmax.f32 %v172, 0.0
  %v199 = vmax.f32 %v175, 0.0
  %v200 = vmax.f32 %v177, 0.0
  %v201 = vmax.f32 %v180, 0.0
  %v202 = vmax.f32 %v182, 0.0
  %v203 = vmax.f32 %v185, 0.0
  %v204 = vmax.f32 %v187, 0.0
  %vm205 = vcmask 130048
  %206 = vst.msk [vmem:[%s3] sm:$0xff] %vm205, %v189
  %207 = vst.msk [vmem:[%s3 + $0x8] sm:$0xff] %vm205, %v190
  %208 = vst.msk [vmem:[%s3 + $0x10] sm:$0xff] %vm205, %v191
  %209 = vst.msk [vmem:[%s3 + $0x18] sm:$0xff] %vm205, %v192
  %210 = vst.msk [vmem:[%s3 + $0x20] sm:$0xff] %vm205, %v193
  %211 = vst.msk [vmem:[%s3 + $0x28] sm:$0xff] %vm205, %v194
  %212 = vst.msk [vmem:[%s3 + $0x30] sm:$0xff] %vm205, %v195
  %213 = vst.msk [vmem:[%s3 + $0x38] sm:$0xff] %vm205, %v196
  %214 = vst.msk [vmem:[%s3 + $0x40] sm:$0xff] %vm205, %v197
  %215 = vst.msk [vmem:[%s3 + $0x48] sm:$0xff] %vm205, %v198
  %216 = vst.msk [vmem:[%s3 + $0x50] sm:$0xff] %vm205, %v199
  %217 = vst.msk [vmem:[%s3 + $0x58] sm:$0xff] %vm205, %v200
  %218 = vst.msk [vmem:[%s3 + $0x60] sm:$0xff] %vm205, %v201
  %219 = vst.msk [vmem:[%s3 + $0x68] sm:$0xff] %vm205, %v202
  %220 = vst.msk [vmem:[%s3 + $0x70] sm:$0xff] %vm205, %v203
  %221 = vst.msk [vmem:[%s3 + $0x78] sm:$0xff] %vm205, %v204
  // Predicated region
  $region14: #{crnn_ggnn_forward.5} parent=0 // pred_check
    _
  $region15: #{crnn_ggnn_forward.5} parent=0 // pred_check_branch
    %223 = sbr.rel (0) target = $region17
  $region16: #{crnn_ggnn_forward.5} parent=0 // pred_region
    _
  $region17: #{crnn_ggnn_forward.5} parent=0 // pred_fallthru
    _
  // Predicated region
  $region18: #{crnn_ggnn_forward.5} parent=0 // pred_check
    _
  $region19: #{crnn_ggnn_forward.5} parent=0 // pred_check_branch
    %225 = sbr.rel (0) target = $region21
  $region20: #{crnn_ggnn_forward.5} parent=0 // pred_region
    _
  $region21: #{crnn_ggnn_forward.5} parent=0 // pred_fallthru
    _

// kernel: crnn_ggnn_forward.4
$region0: #{crnn_ggnn_forward.4}
  #allocation0 [shape = 'u32[]', space=smem, size = 0x4, offset = 0x4, fixed_abs, tag = 'smem constant byte address 0x4 - core index']
  #allocation1 [shape = 'u32[72,128]{1,0:T(1,128)}', space=vmem, size = 0x9000, scoped, tag = 'internal scratch']
  %s0 = inlined_call_operand.vmem [shape: bf16[512,9], index: 0, kind: input, shape index: {}]
  %s1 = inlined_call_operand.vmem [shape: bf16[9,8], index: 1, kind: input, shape index: {}]
  %s2 = inlined_call_operand.vmem [shape: f32[1,8], index: 2, kind: input, shape index: {}]
  %s3 = inlined_call_operand.vmem [shape: f32[512,8], index: 3, kind: output, shape index: {}]
  %s4 = sld [smem:[#allocation0]]
  $region22: #{crnn_ggnn_forward.4} parent=0
    _
  %s6 = ssub.s32 1, %s4
  %s7 = scalar_select 0, %s6, %s4
  // Predicated region
  $region2: #{crnn_ggnn_forward.4} parent=0 // pred_check
    _
  $region3: #{crnn_ggnn_forward.4} parent=0 // pred_check_branch
    %9 = sbr.rel (0) target = $region5
  $region4: #{crnn_ggnn_forward.4} parent=0 // pred_region
    _
  $region5: #{crnn_ggnn_forward.4} parent=0 // pred_fallthru
    _
  // Predicated region
  $region6: #{crnn_ggnn_forward.4} parent=0 // pred_check
    _
  $region7: #{crnn_ggnn_forward.4} parent=0 // pred_check_branch
    %11 = sbr.rel (0) target = $region9
  $region8: #{crnn_ggnn_forward.4} parent=0 // pred_region
    _
  $region9: #{crnn_ggnn_forward.4} parent=0 // pred_fallthru
    _
  // Predicated region
  $region10: #{crnn_ggnn_forward.4} parent=0 // pred_check
    _
  $region11: #{crnn_ggnn_forward.4} parent=0 // pred_check_branch
    %13 = sbr.rel (0) target = $region13
  $region12: #{crnn_ggnn_forward.4} parent=0 // pred_region
    _
  $region13: #{crnn_ggnn_forward.4} parent=0 // pred_fallthru
    _
  %v15 = vld [vmem:[%s0] sm:$0xf]
  %v16 = vld [vmem:[%s0 + $0x4] sm:$0xf]
  %v17 = vld [vmem:[%s0 + $0x8] sm:$0xf]
  %v18 = vld [vmem:[%s0 + $0xc] sm:$0xf]
  %v19 = vld [vmem:[%s0 + $0x10] sm:$0xf]
  %v20 = vld [vmem:[%s0 + $0x14] sm:$0xf]
  %v21 = vld [vmem:[%s0 + $0x18] sm:$0xf]
  %v22 = vld [vmem:[%s0 + $0x1c] sm:$0xf]
  %v23 = vld [vmem:[%s0 + $0x20] sm:$0xf]
  %v24 = vld [vmem:[%s0 + $0x24] sm:$0xf]
  %v25 = vld [vmem:[%s0 + $0x28] sm:$0xf]
  %v26 = vld [vmem:[%s0 + $0x2c] sm:$0xf]
  %v27 = vld [vmem:[%s0 + $0x30] sm:$0xf]
  %v28 = vld [vmem:[%s0 + $0x34] sm:$0xf]
  %v29 = vld [vmem:[%s0 + $0x38] sm:$0xf]
  %v30 = vld [vmem:[%s0 + $0x3c] sm:$0xf]
  %v31 = vld [vmem:[%s0 + $0x40] sm:$0xf]
  %v32 = vld [vmem:[%s0 + $0x44] sm:$0xf]
  %v33 = vld [vmem:[%s0 + $0x48] sm:$0xf]
  %v34 = vld [vmem:[%s0 + $0x4c] sm:$0xf]
  %v35 = vld [vmem:[%s0 + $0x50] sm:$0xf]
  %v36 = vld [vmem:[%s0 + $0x54] sm:$0xf]
  %v37 = vld [vmem:[%s0 + $0x58] sm:$0xf]
  %v38 = vld [vmem:[%s0 + $0x5c] sm:$0xf]
  %v39 = vld [vmem:[%s0 + $0x60] sm:$0xf]
  %v40 = vld [vmem:[%s0 + $0x64] sm:$0xf]
  %v41 = vld [vmem:[%s0 + $0x68] sm:$0xf]
  %v42 = vld [vmem:[%s0 + $0x6c] sm:$0xf]
  %v43 = vld [vmem:[%s0 + $0x70] sm:$0xf]
  %v44 = vld [vmem:[%s0 + $0x74] sm:$0xf]
  %v45 = vld [vmem:[%s0 + $0x78] sm:$0xf]
  %v46 = vld [vmem:[%s0 + $0x7c] sm:$0xf]
  %v47 = vld [vmem:[%s0 + $0x80] sm:$0xf]
  %v48 = vld [vmem:[%s0 + $0x84] sm:$0xf]
  %v49 = vld [vmem:[%s0 + $0x88] sm:$0xf]
  %v50 = vld [vmem:[%s0 + $0x8c] sm:$0xf]
  %v51 = vld [vmem:[%s0 + $0x90] sm:$0xf]
  %v52 = vld [vmem:[%s0 + $0x94] sm:$0xf]
  %v53 = vld [vmem:[%s0 + $0x98] sm:$0xf]
  %v54 = vld [vmem:[%s0 + $0x9c] sm:$0xf]
  %v55 = vld [vmem:[%s0 + $0xa0] sm:$0xf]
  %v56 = vld [vmem:[%s0 + $0xa4] sm:$0xf]
  %v57 = vld [vmem:[%s0 + $0xa8] sm:$0xf]
  %v58 = vld [vmem:[%s0 + $0xac] sm:$0xf]
  %v59 = vld [vmem:[%s0 + $0xb0] sm:$0xf]
  %v60 = vld [vmem:[%s0 + $0xb4] sm:$0xf]
  %v61 = vld [vmem:[%s0 + $0xb8] sm:$0xf]
  %v62 = vld [vmem:[%s0 + $0xbc] sm:$0xf]
  %v63 = vld [vmem:[%s0 + $0xc0] sm:$0xf]
  %v64 = vld [vmem:[%s0 + $0xc4] sm:$0xf]
  %v65 = vld [vmem:[%s0 + $0xc8] sm:$0xf]
  %v66 = vld [vmem:[%s0 + $0xcc] sm:$0xf]
  %v67 = vld [vmem:[%s0 + $0xd0] sm:$0xf]
  %v68 = vld [vmem:[%s0 + $0xd4] sm:$0xf]
  %v69 = vld [vmem:[%s0 + $0xd8] sm:$0xf]
  %v70 = vld [vmem:[%s0 + $0xdc] sm:$0xf]
  %v71 = vld [vmem:[%s0 + $0xe0] sm:$0xf]
  %v72 = vld [vmem:[%s0 + $0xe4] sm:$0xf]
  %v73 = vld [vmem:[%s0 + $0xe8] sm:$0xf]
  %v74 = vld [vmem:[%s0 + $0xec] sm:$0xf]
  %v75 = vld [vmem:[%s0 + $0xf0] sm:$0xf]
  %v76 = vld [vmem:[%s0 + $0xf4] sm:$0xf]
  %v77 = vld [vmem:[%s0 + $0xf8] sm:$0xf]
  %v78 = vld [vmem:[%s0 + $0xfc] sm:$0xf]
  %v79 = vld [vmem:[%s1] sm:$0xf]
  %v80 = vld [vmem:[%s1 + $0x4] sm:$0x1]
  %v81 = vld [vmem:[%s2] sm:$0x1]
  %v83 = vperm.slane %v81, 0
  %v149 = vunpack.c.l.b16 %v15
  %v150 = vunpack.c.l.b16 %v16
  %v151 = vunpack.c.l.b16 %v17
  %v152 = vunpack.c.l.b16 %v18
  %v153 = vunpack.c.l.b16 %v19
  %v154 = vunpack.c.l.b16 %v20
  %v155 = vunpack.c.l.b16 %v21
  %v156 = vunpack.c.l.b16 %v22
  %v157 = vunpack.c.l.b16 %v23
  %v158 = vunpack.c.l.b16 %v24
  %v159 = vunpack.c.l.b16 %v25
  %v160 = vunpack.c.l.b16 %v26
  %v161 = vunpack.c.l.b16 %v27
  %v162 = vunpack.c.l.b16 %v28
  %v163 = vunpack.c.l.b16 %v29
  %v164 = vunpack.c.l.b16 %v30
  %v165 = vunpack.c.l.b16 %v31
  %v166 = vunpack.c.l.b16 %v32
  %v167 = vunpack.c.l.b16 %v33
  %v168 = vunpack.c.l.b16 %v34
  %v169 = vunpack.c.l.b16 %v35
  %v170 = vunpack.c.l.b16 %v36
  %v171 = vunpack.c.l.b16 %v37
  %v172 = vunpack.c.l.b16 %v38
  %v173 = vunpack.c.l.b16 %v39
  %v174 = vunpack.c.l.b16 %v40
  %v175 = vunpack.c.l.b16 %v41
  %v176 = vunpack.c.l.b16 %v42
  %v177 = vunpack.c.l.b16 %v43
  %v178 = vunpack.c.l.b16 %v44
  %v179 = vunpack.c.l.b16 %v45
  %v180 = vunpack.c.l.b16 %v46
  %v181 = vunpack.c.l.b16 %v47
  %v182 = vunpack.c.l.b16 %v48
  %v183 = vunpack.c.l.b16 %v49
  %v184 = vunpack.c.l.b16 %v50
  %v185 = vunpack.c.l.b16 %v51
  %v186 = vunpack.c.l.b16 %v52
  %v187 = vunpack.c.l.b16 %v53
  %v188 = vunpack.c.l.b16 %v54
  %v189 = vunpack.c.l.b16 %v55
  %v190 = vunpack.c.l.b16 %v56
  %v191 = vunpack.c.l.b16 %v57
  %v192 = vunpack.c.l.b16 %v58
  %v193 = vunpack.c.l.b16 %v59
  %v194 = vunpack.c.l.b16 %v60
  %v195 = vunpack.c.l.b16 %v61
  %v196 = vunpack.c.l.b16 %v62
  %v197 = vunpack.c.l.b16 %v63
  %v198 = vunpack.c.l.b16 %v64
  %v199 = vunpack.c.l.b16 %v65
  %v200 = vunpack.c.l.b16 %v66
  %v201 = vunpack.c.l.b16 %v67
  %v202 = vunpack.c.l.b16 %v68
  %v203 = vunpack.c.l.b16 %v69
  %v204 = vunpack.c.l.b16 %v70
  %v205 = vunpack.c.l.b16 %v71
  %v206 = vunpack.c.l.b16 %v72
  %v207 = vunpack.c.l.b16 %v73
  %v208 = vunpack.c.l.b16 %v74
  %v209 = vunpack.c.l.b16 %v75
  %v210 = vunpack.c.l.b16 %v76
  %v211 = vunpack.c.l.b16 %v77
  %v212 = vunpack.c.l.b16 %v78
  %v213 = vpack.c.b16 %v150, %v149
  %v214 = vpack.c.b16 %v152, %v151
  %v215 = vpack.c.b16 %v154, %v153
  %v216 = vpack.c.b16 %v156, %v155
  %v217 = vpack.c.b16 %v158, %v157
  %v218 = vpack.c.b16 %v160, %v159
  %v219 = vpack.c.b16 %v162, %v161
  %v220 = vpack.c.b16 %v164, %v163
  %v221 = vpack.c.b16 %v166, %v165
  %v222 = vpack.c.b16 %v168, %v167
  %v223 = vpack.c.b16 %v170, %v169
  %v224 = vpack.c.b16 %v172, %v171
  %v225 = vpack.c.b16 %v174, %v173
  %v226 = vpack.c.b16 %v176, %v175
  %v227 = vpack.c.b16 %v178, %v177
  %v228 = vpack.c.b16 %v180, %v179
  %v229 = vpack.c.b16 %v182, %v181
  %v230 = vpack.c.b16 %v184, %v183
  %v231 = vpack.c.b16 %v186, %v185
  %v232 = vpack.c.b16 %v188, %v187
  %v233 = vpack.c.b16 %v190, %v189
  %v234 = vpack.c.b16 %v192, %v191
  %v235 = vpack.c.b16 %v194, %v193
  %v236 = vpack.c.b16 %v196, %v195
  %v237 = vpack.c.b16 %v198, %v197
  %v238 = vpack.c.b16 %v200, %v199
  %v239 = vpack.c.b16 %v202, %v201
  %v240 = vpack.c.b16 %v204, %v203
  %v241 = vpack.c.b16 %v206, %v205
  %v242 = vpack.c.b16 %v208, %v207
  %v243 = vpack.c.b16 %v210, %v209
  %v244 = vpack.c.b16 %v212, %v211
  %v247 = vunpack.c.l.b16 %v79
  %v248 = vunpack.c.l.b16 %v80
  %v249 = vpack.c.b16 %v248, %v247
  %vm250 = vcmask 72704
  %v252 = vsel %vm250, %v213, 0
  %v255 = vsel %vm250, %v214, 0
  %v258 = vsel %vm250, %v215, 0
  %v261 = vsel %vm250, %v216, 0
  %v264 = vsel %vm250, %v217, 0
  %v267 = vsel %vm250, %v218, 0
  %v270 = vsel %vm250, %v219, 0
  %v273 = vsel %vm250, %v220, 0
  %v276 = vsel %vm250, %v221, 0
  %v279 = vsel %vm250, %v222, 0
  %v282 = vsel %vm250, %v223, 0
  %v285 = vsel %vm250, %v224, 0
  %v288 = vsel %vm250, %v225, 0
  %v291 = vsel %vm250, %v226, 0
  %v294 = vsel %vm250, %v227, 0
  %v297 = vsel %vm250, %v228, 0
  %v300 = vsel %vm250, %v229, 0
  %v303 = vsel %vm250, %v230, 0
  %v306 = vsel %vm250, %v231, 0
  %v309 = vsel %vm250, %v232, 0
  %v312 = vsel %vm250, %v233, 0
  %v315 = vsel %vm250, %v234, 0
  %v318 = vsel %vm250, %v235, 0
  %v321 = vsel %vm250, %v236, 0
  %v324 = vsel %vm250, %v237, 0
  %v327 = vsel %vm250, %v238, 0
  %v330 = vsel %vm250, %v239, 0
  %v333 = vsel %vm250, %v240, 0
  %v336 = vsel %vm250, %v241, 0
  %v339 = vsel %vm250, %v242, 0
  %v342 = vsel %vm250, %v243, 0
  %v345 = vsel %vm250, %v244, 0
  %vm347 = vcmask 1043456
  %vm348 = vcmask 1044480
  %v349 = vsel %vm347, 4294967295, 65535
  %v350 = vsel %vm348, %v349, 0
  %v352 = vand.u32 %v249, %v350
  %354 = vmatpush.bf16.msra.mxu0 0
  %355 = vmatpush.bf16.msra.mxu0 0
  %356 = vmatpush.bf16.msra.mxu0 0
  %357 = vmatpush.bf16.msra.mxu0 0
  %358 = vmatpush.bf16.msra.mxu0 0
  %359 = vmatpush.bf16.msra.mxu0 0
  %360 = vmatpush.bf16.msra.mxu0 0
  %361 = vmatpush.bf16.msra.mxu0 %v352
  %362 = vmatmul.bf16.gmra.mxu0 %v252
  %v363 = vpop.f32.mrf.mxu0
  %v364 = vadd.f32 %v83, %v363
  %v365 = vpop.f32.mrf.mxu0
  %v366 = vadd.f32 %v83, %v365
  %367 = vmatmul.bf16.gmra.mxu0 %v255
  %v368 = vpop.f32.mrf.mxu0
  %v369 = vadd.f32 %v83, %v368
  %v370 = vpop.f32.mrf.mxu0
  %v371 = vadd.f32 %v83, %v370
  %372 = vmatmul.bf16.gmra.mxu0 %v258
  %v373 = vpop.f32.mrf.mxu0
  %v374 = vadd.f32 %v83, %v373
  %v375 = vpop.f32.mrf.mxu0
  %v376 = vadd.f32 %v83, %v375
  %377 = vmatmul.bf16.gmra.mxu0 %v261
  %v378 = vpop.f32.mrf.mxu0
  %v379 = vadd.f32 %v83, %v378
  %v380 = vpop.f32.mrf.mxu0
  %v381 = vadd.f32 %v83, %v380
  %382 = vmatmul.bf16.gmra.mxu0 %v264
  %v383 = vpop.f32.mrf.mxu0
  %v384 = vadd.f32 %v83, %v383
  %v385 = vpop.f32.mrf.mxu0
  %v386 = vadd.f32 %v83, %v385
  %387 = vmatmul.bf16.gmra.mxu0 %v267
  %v388 = vpop.f32.mrf.mxu0
  %v389 = vadd.f32 %v83, %v388
  %v390 = vpop.f32.mrf.mxu0
  %v391 = vadd.f32 %v83, %v390
  %392 = vmatmul.bf16.gmra.mxu0 %v270
  %v393 = vpop.f32.mrf.mxu0
  %v394 = vadd.f32 %v83, %v393
  %v395 = vpop.f32.mrf.mxu0
  %v396 = vadd.f32 %v83, %v395
  %397 = vmatmul.bf16.gmra.mxu0 %v273
  %v398 = vpop.f32.mrf.mxu0
  %v399 = vadd.f32 %v83, %v398
  %v400 = vpop.f32.mrf.mxu0
  %v401 = vadd.f32 %v83, %v400
  %402 = vmatmul.bf16.gmra.mxu0 %v276
  %v403 = vpop.f32.mrf.mxu0
  %v404 = vadd.f32 %v83, %v403
  %v405 = vpop.f32.mrf.mxu0
  %v406 = vadd.f32 %v83, %v405
  %407 = vmatmul.bf16.gmra.mxu0 %v279
  %v408 = vpop.f32.mrf.mxu0
  %v409 = vadd.f32 %v83, %v408
  %v410 = vpop.f32.mrf.mxu0
  %v411 = vadd.f32 %v83, %v410
  %412 = vmatmul.bf16.gmra.mxu0 %v282
  %v413 = vpop.f32.mrf.mxu0
  %v414 = vadd.f32 %v83, %v413
  %v415 = vpop.f32.mrf.mxu0
  %v416 = vadd.f32 %v83, %v415
  %417 = vmatmul.bf16.gmra.mxu0 %v285
  %v418 = vpop.f32.mrf.mxu0
  %v419 = vadd.f32 %v83, %v418
  %v420 = vpop.f32.mrf.mxu0
  %v421 = vadd.f32 %v83, %v420
  %422 = vmatmul.bf16.gmra.mxu0 %v288
  %v423 = vpop.f32.mrf.mxu0
  %v424 = vadd.f32 %v83, %v423
  %v425 = vpop.f32.mrf.mxu0
  %v426 = vadd.f32 %v83, %v425
  %427 = vmatmul.bf16.gmra.mxu0 %v291
  %v428 = vpop.f32.mrf.mxu0
  %v429 = vadd.f32 %v83, %v428
  %v430 = vpop.f32.mrf.mxu0
  %v431 = vadd.f32 %v83, %v430
  %432 = vmatmul.bf16.gmra.mxu0 %v294
  %v433 = vpop.f32.mrf.mxu0
  %v434 = vadd.f32 %v83, %v433
  %v435 = vpop.f32.mrf.mxu0
  %v436 = vadd.f32 %v83, %v435
  %437 = vmatmul.bf16.gmra.mxu0 %v297
  %v438 = vpop.f32.mrf.mxu0
  %v439 = vadd.f32 %v83, %v438
  %v440 = vpop.f32.mrf.mxu0
  %v441 = vadd.f32 %v83, %v440
  %442 = vmatmul.bf16.gmra.mxu0 %v300
  %v443 = vpop.f32.mrf.mxu0
  %v444 = vadd.f32 %v83, %v443
  %v445 = vpop.f32.mrf.mxu0
  %v446 = vadd.f32 %v83, %v445
  %447 = vmatmul.bf16.gmra.mxu0 %v303
  %v448 = vpop.f32.mrf.mxu0
  %v449 = vadd.f32 %v83, %v448
  %v450 = vpop.f32.mrf.mxu0
  %v451 = vadd.f32 %v83, %v450
  %452 = vmatmul.bf16.gmra.mxu0 %v306
  %v453 = vpop.f32.mrf.mxu0
  %v454 = vadd.f32 %v83, %v453
  %v455 = vpop.f32.mrf.mxu0
  %v456 = vadd.f32 %v83, %v455
  %457 = vmatmul.bf16.gmra.mxu0 %v309
  %v458 = vpop.f32.mrf.mxu0
  %v459 = vadd.f32 %v83, %v458
  %v460 = vpop.f32.mrf.mxu0
  %v461 = vadd.f32 %v83, %v460
  %462 = vmatmul.bf16.gmra.mxu0 %v312
  %v463 = vpop.f32.mrf.mxu0
  %v464 = vadd.f32 %v83, %v463
  %v465 = vpop.f32.mrf.mxu0
  %v466 = vadd.f32 %v83, %v465
  %467 = vmatmul.bf16.gmra.mxu0 %v315
  %v468 = vpop.f32.mrf.mxu0
  %v469 = vadd.f32 %v83, %v468
  %v470 = vpop.f32.mrf.mxu0
  %v471 = vadd.f32 %v83, %v470
  %472 = vmatmul.bf16.gmra.mxu0 %v318
  %v473 = vpop.f32.mrf.mxu0
  %v474 = vadd.f32 %v83, %v473
  %v475 = vpop.f32.mrf.mxu0
  %v476 = vadd.f32 %v83, %v475
  %477 = vmatmul.bf16.gmra.mxu0 %v321
  %v478 = vpop.f32.mrf.mxu0
  %v479 = vadd.f32 %v83, %v478
  %v480 = vpop.f32.mrf.mxu0
  %v481 = vadd.f32 %v83, %v480
  %482 = vmatmul.bf16.gmra.mxu0 %v324
  %v483 = vpop.f32.mrf.mxu0
  %v484 = vadd.f32 %v83, %v483
  %v485 = vpop.f32.mrf.mxu0
  %v486 = vadd.f32 %v83, %v485
  %487 = vmatmul.bf16.gmra.mxu0 %v327
  %v488 = vpop.f32.mrf.mxu0
  %v489 = vadd.f32 %v83, %v488
  %v490 = vpop.f32.mrf.mxu0
  %v491 = vadd.f32 %v83, %v490
  %492 = vmatmul.bf16.gmra.mxu0 %v330
  %v493 = vpop.f32.mrf.mxu0
  %v494 = vadd.f32 %v83, %v493
  %v495 = vpop.f32.mrf.mxu0
  %v496 = vadd.f32 %v83, %v495
  %497 = vmatmul.bf16.gmra.mxu0 %v333
  %v498 = vpop.f32.mrf.mxu0
  %v499 = vadd.f32 %v83, %v498
  %v500 = vpop.f32.mrf.mxu0
  %v501 = vadd.f32 %v83, %v500
  %502 = vmatmul.bf16.gmra.mxu0 %v336
  %v503 = vpop.f32.mrf.mxu0
  %v504 = vadd.f32 %v83, %v503
  %v505 = vpop.f32.mrf.mxu0
  %v506 = vadd.f32 %v83, %v505
  %507 = vmatmul.bf16.gmra.mxu0 %v339
  %v508 = vpop.f32.mrf.mxu0
  %v509 = vadd.f32 %v83, %v508
  %v510 = vpop.f32.mrf.mxu0
  %v511 = vadd.f32 %v83, %v510
  %512 = vmatmul.bf16.gmra.mxu0 %v342
  %v513 = vpop.f32.mrf.mxu0
  %v514 = vadd.f32 %v83, %v513
  %v515 = vpop.f32.mrf.mxu0
  %v516 = vadd.f32 %v83, %v515
  %517 = vmatmul.bf16.gmra.mxu0 %v345
  %v518 = vpop.f32.mrf.mxu0
  %v519 = vadd.f32 %v83, %v518
  %v520 = vpop.f32.mrf.mxu0
  %v521 = vadd.f32 %v83, %v520
  %522 = vdwg.mxu0
  %v523 = vmax.f32 %v364, 0.0
  %v524 = vmax.f32 %v366, 0.0
  %v525 = vmax.f32 %v369, 0.0
  %v526 = vmax.f32 %v371, 0.0
  %v527 = vmax.f32 %v374, 0.0
  %v528 = vmax.f32 %v376, 0.0
  %v529 = vmax.f32 %v379, 0.0
  %v530 = vmax.f32 %v381, 0.0
  %v531 = vmax.f32 %v384, 0.0
  %v532 = vmax.f32 %v386, 0.0
  %v533 = vmax.f32 %v389, 0.0
  %v534 = vmax.f32 %v391, 0.0
  %v535 = vmax.f32 %v394, 0.0
  %v536 = vmax.f32 %v396, 0.0
  %v537 = vmax.f32 %v399, 0.0
  %v538 = vmax.f32 %v401, 0.0
  %v539 = vmax.f32 %v404, 0.0
  %v540 = vmax.f32 %v406, 0.0
  %v541 = vmax.f32 %v409, 0.0
  %v542 = vmax.f32 %v411, 0.0
  %v543 = vmax.f32 %v414, 0.0
  %v544 = vmax.f32 %v416, 0.0
  %v545 = vmax.f32 %v419, 0.0
  %v546 = vmax.f32 %v421, 0.0
  %v547 = vmax.f32 %v424, 0.0
  %v548 = vmax.f32 %v426, 0.0
  %v549 = vmax.f32 %v429, 0.0
  %v550 = vmax.f32 %v431, 0.0
  %v551 = vmax.f32 %v434, 0.0
  %v552 = vmax.f32 %v436, 0.0
  %v553 = vmax.f32 %v439, 0.0
  %v554 = vmax.f32 %v441, 0.0
  %v555 = vmax.f32 %v444, 0.0
  %v556 = vmax.f32 %v446, 0.0
  %v557 = vmax.f32 %v449, 0.0
  %v558 = vmax.f32 %v451, 0.0
  %v559 = vmax.f32 %v454, 0.0
  %v560 = vmax.f32 %v456, 0.0
  %v561 = vmax.f32 %v459, 0.0
  %v562 = vmax.f32 %v461, 0.0
  %v563 = vmax.f32 %v464, 0.0
  %v564 = vmax.f32 %v466, 0.0
  %v565 = vmax.f32 %v469, 0.0
  %v566 = vmax.f32 %v471, 0.0
  %v567 = vmax.f32 %v474, 0.0
  %v568 = vmax.f32 %v476, 0.0
  %v569 = vmax.f32 %v479, 0.0
  %v570 = vmax.f32 %v481, 0.0
  %v571 = vmax.f32 %v484, 0.0
  %v572 = vmax.f32 %v486, 0.0
  %v573 = vmax.f32 %v489, 0.0
  %v574 = vmax.f32 %v491, 0.0
  %v575 = vmax.f32 %v494, 0.0
  %v576 = vmax.f32 %v496, 0.0
  %v577 = vmax.f32 %v499, 0.0
  %v578 = vmax.f32 %v501, 0.0
  %v579 = vmax.f32 %v504, 0.0
  %v580 = vmax.f32 %v506, 0.0
  %v581 = vmax.f32 %v509, 0.0
  %v582 = vmax.f32 %v511, 0.0
  %v583 = vmax.f32 %v514, 0.0
  %v584 = vmax.f32 %v516, 0.0
  %v585 = vmax.f32 %v519, 0.0
  %v586 = vmax.f32 %v521, 0.0
  %vm587 = vcmask 64512
  %588 = vst.msk [vmem:[%s3] sm:$0xff] %vm587, %v523
  %589 = vst.msk [vmem:[%s3 + $0x8] sm:$0xff] %vm587, %v524
  %590 = vst.msk [vmem:[%s3 + $0x10] sm:$0xff] %vm587, %v525
  %591 = vst.msk [vmem:[%s3 + $0x18] sm:$0xff] %vm587, %v526
  %592 = vst.msk [vmem:[%s3 + $0x20] sm:$0xff] %vm587, %v527
  %593 = vst.msk [vmem:[%s3 + $0x28] sm:$0xff] %vm587, %v528
  %594 = vst.msk [vmem:[%s3 + $0x30] sm:$0xff] %vm587, %v529
  %595 = vst.msk [vmem:[%s3 + $0x38] sm:$0xff] %vm587, %v530
  %596 = vst.msk [vmem:[%s3 + $0x40] sm:$0xff] %vm587, %v531
  %597 = vst.msk [vmem:[%s3 + $0x48] sm:$0xff] %vm587, %v532
  %598 = vst.msk [vmem:[%s3 + $0x50] sm:$0xff] %vm587, %v533
  %599 = vst.msk [vmem:[%s3 + $0x58] sm:$0xff] %vm587, %v534
  %600 = vst.msk [vmem:[%s3 + $0x60] sm:$0xff] %vm587, %v535
  %601 = vst.msk [vmem:[%s3 + $0x68] sm:$0xff] %vm587, %v536
  %602 = vst.msk [vmem:[%s3 + $0x70] sm:$0xff] %vm587, %v537
  %603 = vst.msk [vmem:[%s3 + $0x78] sm:$0xff] %vm587, %v538
  %604 = vst.msk [vmem:[%s3 + $0x80] sm:$0xff] %vm587, %v539
  %605 = vst.msk [vmem:[%s3 + $0x88] sm:$0xff] %vm587, %v540
  %606 = vst.msk [vmem:[%s3 + $0x90] sm:$0xff] %vm587, %v541
  %607 = vst.msk [vmem:[%s3 + $0x98] sm:$0xff] %vm587, %v542
  %608 = vst.msk [vmem:[%s3 + $0xa0] sm:$0xff] %vm587, %v543
  %609 = vst.msk [vmem:[%s3 + $0xa8] sm:$0xff] %vm587, %v544
  %610 = vst.msk [vmem:[%s3 + $0xb0] sm:$0xff] %vm587, %v545
  %611 = vst.msk [vmem:[%s3 + $0xb8] sm:$0xff] %vm587, %v546
  %612 = vst.msk [vmem:[%s3 + $0xc0] sm:$0xff] %vm587, %v547
  %613 = vst.msk [vmem:[%s3 + $0xc8] sm:$0xff] %vm587, %v548
  %614 = vst.msk [vmem:[%s3 + $0xd0] sm:$0xff] %vm587, %v549
  %615 = vst.msk [vmem:[%s3 + $0xd8] sm:$0xff] %vm587, %v550
  %616 = vst.msk [vmem:[%s3 + $0xe0] sm:$0xff] %vm587, %v551
  %617 = vst.msk [vmem:[%s3 + $0xe8] sm:$0xff] %vm587, %v552
  %618 = vst.msk [vmem:[%s3 + $0xf0] sm:$0xff] %vm587, %v553
  %619 = vst.msk [vmem:[%s3 + $0xf8] sm:$0xff] %vm587, %v554
  %620 = vst.msk [vmem:[%s3 + $0x100] sm:$0xff] %vm587, %v555
  %621 = vst.msk [vmem:[%s3 + $0x108] sm:$0xff] %vm587, %v556
  %622 = vst.msk [vmem:[%s3 + $0x110] sm:$0xff] %vm587, %v557
  %623 = vst.msk [vmem:[%s3 + $0x118] sm:$0xff] %vm587, %v558
  %624 = vst.msk [vmem:[%s3 + $0x120] sm:$0xff] %vm587, %v559
  %625 = vst.msk [vmem:[%s3 + $0x128] sm:$0xff] %vm587, %v560
  %626 = vst.msk [vmem:[%s3 + $0x130] sm:$0xff] %vm587, %v561
  %627 = vst.msk [vmem:[%s3 + $0x138] sm:$0xff] %vm587, %v562
  %628 = vst.msk [vmem:[%s3 + $0x140] sm:$0xff] %vm587, %v563
  %629 = vst.msk [vmem:[%s3 + $0x148] sm:$0xff] %vm587, %v564
  %630 = vst.msk [vmem:[%s3 + $0x150] sm:$0xff] %vm587, %v565
  %631 = vst.msk [vmem:[%s3 + $0x158] sm:$0xff] %vm587, %v566
  %632 = vst.msk [vmem:[%s3 + $0x160] sm:$0xff] %vm587, %v567
  %633 = vst.msk [vmem:[%s3 + $0x168] sm:$0xff] %vm587, %v568
  %634 = vst.msk [vmem:[%s3 + $0x170] sm:$0xff] %vm587, %v569
  %635 = vst.msk [vmem:[%s3 + $0x178] sm:$0xff] %vm587, %v570
  %636 = vst.msk [vmem:[%s3 + $0x180] sm:$0xff] %vm587, %v571
  %637 = vst.msk [vmem:[%s3 + $0x188] sm:$0xff] %vm587, %v572
  %638 = vst.msk [vmem:[%s3 + $0x190] sm:$0xff] %vm587, %v573
  %639 = vst.msk [vmem:[%s3 + $0x198] sm:$0xff] %vm587, %v574
  %640 = vst.msk [vmem:[%s3 + $0x1a0] sm:$0xff] %vm587, %v575
  %641 = vst.msk [vmem:[%s3 + $0x1a8] sm:$0xff] %vm587, %v576
  %642 = vst.msk [vmem:[%s3 + $0x1b0] sm:$0xff] %vm587, %v577
  %643 = vst.msk [vmem:[%s3 + $0x1b8] sm:$0xff] %vm587, %v578
  %644 = vst.msk [vmem:[%s3 + $0x1c0] sm:$0xff] %vm587, %v579
  %645 = vst.msk [vmem:[%s3 + $0x1c8] sm:$0xff] %vm587, %v580
  %646 = vst.msk [vmem:[%s3 + $0x1d0] sm:$0xff] %vm587, %v581
  %647 = vst.msk [vmem:[%s3 + $0x1d8] sm:$0xff] %vm587, %v582
  %648 = vst.msk [vmem:[%s3 + $0x1e0] sm:$0xff] %vm587, %v583
  %649 = vst.msk [vmem:[%s3 + $0x1e8] sm:$0xff] %vm587, %v584
  %650 = vst.msk [vmem:[%s3 + $0x1f0] sm:$0xff] %vm587, %v585
  %651 = vst.msk [vmem:[%s3 + $0x1f8] sm:$0xff] %vm587, %v586
  // Predicated region
  $region14: #{crnn_ggnn_forward.4} parent=0 // pred_check
    _
  $region15: #{crnn_ggnn_forward.4} parent=0 // pred_check_branch
    %653 = sbr.rel (0) target = $region17
  $region16: #{crnn_ggnn_forward.4} parent=0 // pred_region
    _
  $region17: #{crnn_ggnn_forward.4} parent=0 // pred_fallthru
    _
  // Predicated region
  $region18: #{crnn_ggnn_forward.4} parent=0 // pred_check
    _
  $region19: #{crnn_ggnn_forward.4} parent=0 // pred_check_branch
    %655 = sbr.rel (0) target = $region21
  $region20: #{crnn_ggnn_forward.4} parent=0 // pred_region
    _
  $region21: #{crnn_ggnn_forward.4} parent=0 // pred_fallthru
    _

// kernel: crnn_ggnn_forward.6
$region0: #{crnn_ggnn_forward.6}
  #allocation0 [shape = 'u32[]', space=smem, size = 0x4, offset = 0x4, fixed_abs, tag = 'smem constant byte address 0x4 - core index']
  #allocation1 [shape = 'u32[72,128]{1,0:T(1,128)}', space=vmem, size = 0x9000, scoped, tag = 'internal scratch']
  #allocation2 [shape = 'f32[2,32]{1,0:T(2,128)}', space=vmem, size = 0x400, scoped, tag = 'scratch operand']
  #allocation3 [shape = 'f32[2,32]{1,0:T(2,128)}', space=vmem, size = 0x400, scoped, tag = 'scratch operand']
  %s0 = inlined_call_operand.vmem [shape: bf16[4,2,64], index: 0, kind: input, shape index: {}]
  %s1 = inlined_call_operand.vmem [shape: bf16[3,64,32], index: 1, kind: input, shape index: {}]
  %s2 = inlined_call_operand.vmem [shape: bf16[3,32,32], index: 2, kind: input, shape index: {}]
  %s3 = inlined_call_operand.vmem [shape: f32[3,1,32], index: 3, kind: input, shape index: {}]
  %s4 = inlined_call_operand.vmem [shape: f32[3,1,32], index: 4, kind: input, shape index: {}]
  %s5 = inlined_call_operand.vmem [shape: bf16[32,32], index: 5, kind: input, shape index: {}]
  %s6 = inlined_call_operand.vmem [shape: f32[1,32], index: 6, kind: input, shape index: {}]
  %s7 = inlined_call_operand.vmem [shape: f32[2,32], index: 7, kind: output, shape index: {}]
  %s8 = sld [smem:[#allocation0]]
  $region69: #{crnn_ggnn_forward.6} parent=0
    _
  %s10 = ssub.s32 1, %s8
  %s11 = scalar_select 0, %s10, %s8
  loop: start=0, step=1, limit=6
  $region2: #{crnn_ggnn_forward.6} parent=0 // loop_pre_header
    _
  $region3: #{crnn_ggnn_forward.6} parent=0 // loop_header
    %s13 = sphi 0, %s17
    %p14 = scmp.ge.s32.totalorder %s13, 6
    %s23 = sphi 0, %s25
    %s26 = sphi 0, %s23
    %s27 = sphi 0, %s26
    %s43 = sphi 0, %s27
    %s47 = sphi 0, %s47
    %s49 = sphi 0, %s47
    %s50 = sphi 0, %s49
    %s64 = sphi 0, %s50
    %s68 = sphi 0, %s68
    %s70 = sphi 0, %s68
    %s71 = sphi 0, %s70
    %s85 = sphi 0, %s71
    %s89 = sphi 0, %s89
    %s91 = sphi 0, %s89
    %s92 = sphi 0, %s91
    %s106 = sphi 0, %s92
    %s110 = sphi 0, %s110
    %s112 = sphi 0, %s110
    %s113 = sphi 0, %s112
    %s127 = sphi 0, %s113
    %s131 = sphi 0, %s131
    %s133 = sphi 0, %s131
    %s134 = sphi 0, %s133
    %s148 = sphi 0, %s134
    %s152 = sphi 0, %s152
    %s154 = sphi 0, %s152
    %s155 = sphi 0, %s154
    %s169 = sphi 0, %s155
    %s173 = sphi 0, %s173
    %s175 = sphi 0, %s173
    %s176 = sphi 0, %s175
    %s190 = sphi 0, %s176
  $region4: #{crnn_ggnn_forward.6} parent=0 // loop_header_branch
    %16 = sbr.rel (%p14) target = $region8
  $region5: #{crnn_ggnn_forward.6} parent=0 // loop_body
    %s18 = ssub.s32 %s13, 1
    %s19 = ssub.s32 %s13, 2
    %s20 = sadd.s32 %s13, 1
    %s21 = ssub.s32 %s13, %s20
    %p22 = scmp.eq.s32.totalorder %s21, 0
    %s24 = sadd.s32 %s23, 1
    %s25 = scalar_select %p22, %s23, %s24
    %p28 = pneg %p22
    %p29 = scmp.eq.s32.totalorder %s13, 3
    %p30 = por %p28, %p29
    %p31 = scmp.ne.s32.totalorder %s23, %s26
    %p32 = scmp.eq.s32.totalorder %s13, 0
    %p33 = por %p31, %p32
    %p34 = scmp.ne.s32.totalorder %s23, %s26
    %p35 = scmp.eq.s32.totalorder %s18, 3
    %p36 = por %p34, %p35
    %p37 = scmp.ne.s32.totalorder %s26, %s27
    %p38 = scmp.eq.s32.totalorder %s18, 0
    %p39 = por %p37, %p38
    %p40 = scmp.ne.s32.totalorder %s26, %s27
    %p41 = scmp.eq.s32.totalorder %s19, 3
    %p42 = por %p40, %p41
    %p44 = scmp.ne.s32.totalorder %s27, %s43
    %p45 = scmp.eq.s32.totalorder %s19, 0
    %p46 = por %p44, %p45
    %s48 = sadd.s32 %s47, 1
    %p51 = scmp.eq.s32.totalorder %s13, 3
    %p52 = scmp.ne.s32.totalorder %s47, %s49
    %p53 = scmp.eq.s32.totalorder %s13, 0
    %p54 = por %p52, %p53
    %p55 = scmp.ne.s32.totalorder %s47, %s49
    %p56 = scmp.eq.s32.totalorder %s18, 3
    %p57 = por %p55, %p56
    %p58 = scmp.ne.s32.totalorder %s49, %s50
    %p59 = scmp.eq.s32.totalorder %s18, 0
    %p60 = por %p58, %p59
    %p61 = scmp.ne.s32.totalorder %s49, %s50
    %p62 = scmp.eq.s32.totalorder %s19, 3
    %p63 = por %p61, %p62
    %p65 = scmp.ne.s32.totalorder %s50, %s64
    %p66 = scmp.eq.s32.totalorder %s19, 0
    %p67 = por %p65, %p66
    %s69 = sadd.s32 %s68, 1
    %p72 = scmp.eq.s32.totalorder %s13, 3
    %p73 = scmp.ne.s32.totalorder %s68, %s70
    %p74 = scmp.eq.s32.totalorder %s13, 0
    %p75 = por %p73, %p74
    %p76 = scmp.ne.s32.totalorder %s68, %s70
    %p77 = scmp.eq.s32.totalorder %s18, 3
    %p78 = por %p76, %p77
    %p79 = scmp.ne.s32.totalorder %s70, %s71
    %p80 = scmp.eq.s32.totalorder %s18, 0
    %p81 = por %p79, %p80
    %p82 = scmp.ne.s32.totalorder %s70, %s71
    %p83 = scmp.eq.s32.totalorder %s19, 3
    %p84 = por %p82, %p83
    %p86 = scmp.ne.s32.totalorder %s71, %s85
    %p87 = scmp.eq.s32.totalorder %s19, 0
    %p88 = por %p86, %p87
    %s90 = sadd.s32 %s89, 1
    %p93 = scmp.eq.s32.totalorder %s13, 3
    %p94 = scmp.ne.s32.totalorder %s89, %s91
    %p95 = scmp.eq.s32.totalorder %s13, 0
    %p96 = por %p94, %p95
    %p97 = scmp.ne.s32.totalorder %s89, %s91
    %p98 = scmp.eq.s32.totalorder %s18, 3
    %p99 = por %p97, %p98
    %p100 = scmp.ne.s32.totalorder %s91, %s92
    %p101 = scmp.eq.s32.totalorder %s18, 0
    %p102 = por %p100, %p101
    %p103 = scmp.ne.s32.totalorder %s91, %s92
    %p104 = scmp.eq.s32.totalorder %s19, 3
    %p105 = por %p103, %p104
    %p107 = scmp.ne.s32.totalorder %s92, %s106
    %p108 = scmp.eq.s32.totalorder %s19, 0
    %p109 = por %p107, %p108
    %s111 = sadd.s32 %s110, 1
    %p114 = scmp.eq.s32.totalorder %s13, 3
    %p115 = scmp.ne.s32.totalorder %s110, %s112
    %p116 = scmp.eq.s32.totalorder %s13, 0
    %p117 = por %p115, %p116
    %p118 = scmp.ne.s32.totalorder %s110, %s112
    %p119 = scmp.eq.s32.totalorder %s18, 3
    %p120 = por %p118, %p119
    %p121 = scmp.ne.s32.totalorder %s112, %s113
    %p122 = scmp.eq.s32.totalorder %s18, 0
    %p123 = por %p121, %p122
    %p124 = scmp.ne.s32.totalorder %s112, %s113
    %p125 = scmp.eq.s32.totalorder %s19, 3
    %p126 = por %p124, %p125
    %p128 = scmp.ne.s32.totalorder %s113, %s127
    %p129 = scmp.eq.s32.totalorder %s19, 0
    %p130 = por %p128, %p129
    %s132 = sadd.s32 %s131, 1
    %p135 = scmp.eq.s32.totalorder %s13, 3
    %p136 = scmp.ne.s32.totalorder %s131, %s133
    %p137 = scmp.eq.s32.totalorder %s13, 0
    %p138 = por %p136, %p137
    %p139 = scmp.ne.s32.totalorder %s131, %s133
    %p140 = scmp.eq.s32.totalorder %s18, 3
    %p141 = por %p139, %p140
    %p142 = scmp.ne.s32.totalorder %s133, %s134
    %p143 = scmp.eq.s32.totalorder %s18, 0
    %p144 = por %p142, %p143
    %p145 = scmp.ne.s32.totalorder %s133, %s134
    %p146 = scmp.eq.s32.totalorder %s19, 3
    %p147 = por %p145, %p146
    %p149 = scmp.ne.s32.totalorder %s134, %s148
    %p150 = scmp.eq.s32.totalorder %s19, 0
    %p151 = por %p149, %p150
    %s153 = sadd.s32 %s152, 1
    %p156 = scmp.eq.s32.totalorder %s13, 3
    %p157 = scmp.ne.s32.totalorder %s152, %s154
    %p158 = scmp.eq.s32.totalorder %s13, 0
    %p159 = por %p157, %p158
    %p160 = scmp.ne.s32.totalorder %s152, %s154
    %p161 = scmp.eq.s32.totalorder %s18, 3
    %p162 = por %p160, %p161
    %p163 = scmp.ne.s32.totalorder %s154, %s155
    %p164 = scmp.eq.s32.totalorder %s18, 0
    %p165 = por %p163, %p164
    %p166 = scmp.ne.s32.totalorder %s154, %s155
    %p167 = scmp.eq.s32.totalorder %s19, 3
    %p168 = por %p166, %p167
    %p170 = scmp.ne.s32.totalorder %s155, %s169
    %p171 = scmp.eq.s32.totalorder %s19, 0
    %p172 = por %p170, %p171
    %s174 = sadd.s32 %s173, 1
    %p177 = scmp.eq.s32.totalorder %s13, 3
    %p178 = scmp.ne.s32.totalorder %s173, %s175
    %p179 = scmp.eq.s32.totalorder %s13, 0
    %p180 = por %p178, %p179
    %p181 = scmp.ne.s32.totalorder %s173, %s175
    %p182 = scmp.eq.s32.totalorder %s18, 3
    %p183 = por %p181, %p182
    %p184 = scmp.ne.s32.totalorder %s175, %s176
    %p185 = scmp.eq.s32.totalorder %s18, 0
    %p186 = por %p184, %p185
    %p187 = scmp.ne.s32.totalorder %s175, %s176
    %p188 = scmp.eq.s32.totalorder %s19, 3
    %p189 = por %p187, %p188
    %p191 = scmp.ne.s32.totalorder %s176, %s190
    %p192 = scmp.eq.s32.totalorder %s19, 0
    %p193 = por %p191, %p192
    %p194 = scmp.le.s32.totalorder 1, %s13
    %p195 = scmp.lt.s32.totalorder %s13, 5
    %p196 = pnand %p194, %p195
    %p197 = pneg %p196
    // Predicated region
    $region9: #{crnn_ggnn_forward.6} parent=5 // pred_check
      _
    $region10: #{crnn_ggnn_forward.6} parent=5 // pred_check_branch
      %199 = sbr.rel (%p196) target = $region12
    $region11: #{crnn_ggnn_forward.6} parent=5 // pred_region
      %s200 = ssub.s32 %s13, 1
      // Predicated region
      $region13: #{crnn_ggnn_forward.6} parent=11 // pred_check
        %p201 = pneg %p60
      $region14: #{crnn_ggnn_forward.6} parent=11 // pred_check_branch
        %203 = sbr.rel (%p201) target = $region16
      $region15: #{crnn_ggnn_forward.6} parent=11 // pred_region
        _
      $region16: #{crnn_ggnn_forward.6} parent=11 // pred_fallthru
        _
      // Predicated region
      $region17: #{crnn_ggnn_forward.6} parent=11 // pred_check
        %p204 = pneg %p81
      $region18: #{crnn_ggnn_forward.6} parent=11 // pred_check_branch
        %206 = sbr.rel (%p204) target = $region20
      $region19: #{crnn_ggnn_forward.6} parent=11 // pred_region
        _
      $region20: #{crnn_ggnn_forward.6} parent=11 // pred_fallthru
        _
      // Predicated region
      $region21: #{crnn_ggnn_forward.6} parent=11 // pred_check
        %p207 = pneg %p102
      $region22: #{crnn_ggnn_forward.6} parent=11 // pred_check_branch
        %209 = sbr.rel (%p207) target = $region24
      $region23: #{crnn_ggnn_forward.6} parent=11 // pred_region
        _
      $region24: #{crnn_ggnn_forward.6} parent=11 // pred_fallthru
        _
      // Predicated region
      $region25: #{crnn_ggnn_forward.6} parent=11 // pred_check
        %p210 = pneg %p123
      $region26: #{crnn_ggnn_forward.6} parent=11 // pred_check_branch
        %212 = sbr.rel (%p210) target = $region28
      $region27: #{crnn_ggnn_forward.6} parent=11 // pred_region
        _
      $region28: #{crnn_ggnn_forward.6} parent=11 // pred_fallthru
        _
      // Predicated region
      $region29: #{crnn_ggnn_forward.6} parent=11 // pred_check
        %p213 = pneg %p144
      $region30: #{crnn_ggnn_forward.6} parent=11 // pred_check_branch
        %215 = sbr.rel (%p213) target = $region32
      $region31: #{crnn_ggnn_forward.6} parent=11 // pred_region
        _
      $region32: #{crnn_ggnn_forward.6} parent=11 // pred_fallthru
        _
      // Predicated region
      $region33: #{crnn_ggnn_forward.6} parent=11 // pred_check
        %p216 = pneg %p165
      $region34: #{crnn_ggnn_forward.6} parent=11 // pred_check_branch
        %218 = sbr.rel (%p216) target = $region36
      $region35: #{crnn_ggnn_forward.6} parent=11 // pred_region
        _
      $region36: #{crnn_ggnn_forward.6} parent=11 // pred_fallthru
        _
    $region12: #{crnn_ggnn_forward.6} parent=5 // pred_fallthru
      _
    %p219 = scmp.lt.s32.totalorder %s13, 4
    // Predicated region
    $region37: #{crnn_ggnn_forward.6} parent=5 // pred_check
      %p220 = pneg %p219
    $region38: #{crnn_ggnn_forward.6} parent=5 // pred_check_branch
      %222 = sbr.rel (%p220) target = $region40
    $region39: #{crnn_ggnn_forward.6} parent=5 // pred_region
      // Predicated region
      $region41: #{crnn_ggnn_forward.6} parent=39 // pred_check
        %p223 = pneg %p33
      $region42: #{crnn_ggnn_forward.6} parent=39 // pred_check_branch
        %225 = sbr.rel (%p223) target = $region44
      $region43: #{crnn_ggnn_forward.6} parent=39 // pred_region
        %p226 = scmp.lt.s32.totalorder %s13, 3
        %s227 = scalar_select %p226, %s13, 3
        %s228 = scalar_lea.vmem %s0, %s227
      $region44: #{crnn_ggnn_forward.6} parent=39 // pred_fallthru
        _
    $region40: #{crnn_ggnn_forward.6} parent=5 // pred_fallthru
      _
    %p229 = scmp.le.s32.totalorder 1, %s13
    %p230 = scmp.lt.s32.totalorder %s13, 5
    %p231 = pnand %p229, %p230
    %p232 = pneg %p231
    // Predicated region
    $region45: #{crnn_ggnn_forward.6} parent=5 // pred_check
      _
    $region46: #{crnn_ggnn_forward.6} parent=5 // pred_check_branch
      %234 = sbr.rel (%p231) target = $region48
    $region47: #{crnn_ggnn_forward.6} parent=5 // pred_region
      %s235 = ssub.s32 %s13, 1
      %p236 = scmp.lt.s32.totalorder %s18, 3
      %s237 = scalar_select %p236, %s18, 3
      %s238 = scalar_lea.vmem %s0, %s237
      %p239 = pneg %p39
      %p240 = pneg %p36
      %p241 = pneg %p60
      %p242 = pneg %p57
      %p243 = pneg %p81
      %p244 = pneg %p78
      %p245 = pneg %p102
      %p246 = pneg %p99
      %p247 = pneg %p123
      %p248 = pneg %p120
      %p249 = pneg %p144
      %p250 = pneg %p141
      %p251 = pneg %p165
      %p252 = pneg %p162
      %p253 = pneg %p186
      %p254 = pneg %p183
      %p255 = scmp.lt.s32.totalorder %s18, 3
      %s256 = scalar_select %p255, %s18, 3
      %s257 = scalar_lea.vmem %s0, %s256
      %p259 = scmp.eq.s32.totalorder %s18, 0
      // Predicated region
      $region49: #{crnn_ggnn_forward.6} parent=47 // pred_check
        %p260 = pneg %p259
      $region50: #{crnn_ggnn_forward.6} parent=47 // pred_check_branch
        %262 = sbr.rel (%p260) target = $region52
      $region51: #{crnn_ggnn_forward.6} parent=47 // pred_region
        %vm263 = vcmask 254976
        %264 = vst.msk [vmem:[#allocation2] sm:$0x3] %vm263, 0.0
        %265 = vst.msk [vmem:[#allocation3] sm:$0x3] %vm263, 0.0
      $region52: #{crnn_ggnn_forward.6} parent=47 // pred_fallthru
        _
      %v266 = vld [vmem:[%s257] sm:$0x1]
      %v267 = vld [vmem:[#allocation2] sm:$0x3]
      %v268 = vpack.c.bf16 %v267, %v267
      %v269 = vld [vmem:[%s1] sm:$0xf]
      %v270 = vld [vmem:[%s1 + $0x4] sm:$0xf]
      %v271 = vld [vmem:[%s1 + $0x8] sm:$0xf]
      %v272 = vld [vmem:[%s1 + $0xc] sm:$0xf]
      %v273 = vld [vmem:[%s1 + $0x10] sm:$0xf]
      %v274 = vld [vmem:[%s1 + $0x14] sm:$0xf]
      %v275 = vld [vmem:[%s1 + $0x18] sm:$0xf]
      %v276 = vld [vmem:[%s1 + $0x1c] sm:$0xf]
      %v277 = vld [vmem:[%s3] sm:$0x1]
      %v279 = vperm.slane %v277, 0
      %v289 = vunpack.c.l.b16 %v269
      %v290 = vunpack.c.l.b16 %v270
      %v291 = vunpack.c.l.b16 %v271
      %v292 = vunpack.c.l.b16 %v272
      %v293 = vunpack.c.l.b16 %v273
      %v294 = vunpack.c.l.b16 %v274
      %v295 = vunpack.c.l.b16 %v275
      %v296 = vunpack.c.l.b16 %v276
      %v297 = vpack.c.b16 %v290, %v289
      %v298 = vpack.c.b16 %v292, %v291
      %v299 = vpack.c.b16 %v294, %v293
      %v300 = vpack.c.b16 %v296, %v295
      %vm305 = vcmask 523264
      %v307 = vsel %vm305, %v266, 0
      %309 = vmatpush.bf16.msra.mxu0 0
      %310 = vmatpush.bf16.msra.mxu0 0
      %311 = vmatpush.bf16.msra.mxu0 0
      %312 = vmatpush.bf16.msra.mxu0 0
      %313 = vmatpush.bf16.msra.mxu0 %v300
      %314 = vmatpush.bf16.msra.mxu0 %v299
      %315 = vmatpush.bf16.msra.mxu0 %v298
      %316 = vmatpush.bf16.msra.mxu0 %v297
      %317 = vmatmul.bf16.gmra.mxu0 %v307
      %v318 = vpop.f32.mrf.mxu0
      %v319 = vadd.f32 %v279, %v318
      %v320 = vpop.f32.mrf.mxu0
      %321 = vdwg.mxu0
      %v322 = vld [vmem:[%s2] sm:$0xf]
      %v323 = vld [vmem:[%s2 + $0x4] sm:$0xf]
      %v324 = vld [vmem:[%s2 + $0x8] sm:$0xf]
      %v325 = vld [vmem:[%s2 + $0xc] sm:$0xf]
      %v326 = vld [vmem:[%s4] sm:$0x1]
      %v328 = vperm.slane %v326, 0
      %v334 = vunpack.c.l.b16 %v322
      %v335 = vunpack.c.l.b16 %v323
      %v336 = vunpack.c.l.b16 %v324
      %v337 = vunpack.c.l.b16 %v325
      %v338 = vpack.c.b16 %v335, %v334
      %v339 = vpack.c.b16 %v337, %v336
      %vm342 = vcmask 261120
      %v344 = vsel %vm342, %v268, 0
      %346 = vmatpush.bf16.msra.mxu0 0
      %347 = vmatpush.bf16.msra.mxu0 0
      %348 = vmatpush.bf16.msra.mxu0 0
      %349 = vmatpush.bf16.msra.mxu0 0
      %350 = vmatpush.bf16.msra.mxu0 0
      %351 = vmatpush.bf16.msra.mxu0 0
      %352 = vmatpush.bf16.msra.mxu0 %v339
      %353 = vmatpush.bf16.msra.mxu0 %v338
      %354 = vmatmul.bf16.gmra.mxu0 %v344
      %v355 = vpop.f32.mrf.mxu0
      %v356 = vadd.f32 %v328, %v355
      %v357 = vpop.f32.mrf.mxu0
      %358 = vdwg.mxu0
      %s359 = scalar_lea.vmem %s1, 32
      %v360 = vld [vmem:[%s359] sm:$0xf]
      %v361 = vld [vmem:[%s359 + $0x4] sm:$0xf]
      %v362 = vld [vmem:[%s359 + $0x8] sm:$0xf]
      %v363 = vld [vmem:[%s359 + $0xc] sm:$0xf]
      %v364 = vld [vmem:[%s359 + $0x10] sm:$0xf]
      %v365 = vld [vmem:[%s359 + $0x14] sm:$0xf]
      %v366 = vld [vmem:[%s359 + $0x18] sm:$0xf]
      %v367 = vld [vmem:[%s359 + $0x1c] sm:$0xf]
      %s368 = scalar_lea.vmem %s3, 1
      %v369 = vld [vmem:[%s368] sm:$0x1]
      %v371 = vperm.slane %v369, 0
      %v381 = vunpack.c.l.b16 %v360
      %v382 = vunpack.c.l.b16 %v361
      %v383 = vunpack.c.l.b16 %v362
      %v384 = vunpack.c.l.b16 %v363
      %v385 = vunpack.c.l.b16 %v364
      %v386 = vunpack.c.l.b16 %v365
      %v387 = vunpack.c.l.b16 %v366
      %v388 = vunpack.c.l.b16 %v367
      %v389 = vpack.c.b16 %v382, %v381
      %v390 = vpack.c.b16 %v384, %v383
      %v391 = vpack.c.b16 %v386, %v385
      %v392 = vpack.c.b16 %v388, %v387
      %397 = vmatpush.bf16.msra.mxu0 0
      %398 = vmatpush.bf16.msra.mxu0 0
      %399 = vmatpush.bf16.msra.mxu0 0
      %400 = vmatpush.bf16.msra.mxu0 0
      %401 = vmatpush.bf16.msra.mxu0 %v392
      %402 = vmatpush.bf16.msra.mxu0 %v391
      %403 = vmatpush.bf16.msra.mxu0 %v390
      %404 = vmatpush.bf16.msra.mxu0 %v389
      %405 = vmatmul.bf16.gmra.mxu0 %v307
      %v406 = vpop.f32.mrf.mxu0
      %v407 = vadd.f32 %v371, %v406
      %v408 = vpop.f32.mrf.mxu0
      %409 = vdwg.mxu0
      %s410 = scalar_lea.vmem %s2, 16
      %v411 = vld [vmem:[%s410] sm:$0xf]
      %v412 = vld [vmem:[%s410 + $0x4] sm:$0xf]
      %v413 = vld [vmem:[%s410 + $0x8] sm:$0xf]
      %v414 = vld [vmem:[%s410 + $0xc] sm:$0xf]
      %s415 = scalar_lea.vmem %s4, 1
      %v416 = vld [vmem:[%s415] sm:$0x1]
      %v418 = vperm.slane %v416, 0
      %v424 = vunpack.c.l.b16 %v411
      %v425 = vunpack.c.l.b16 %v412
      %v426 = vunpack.c.l.b16 %v413
      %v427 = vunpack.c.l.b16 %v414
      %v428 = vpack.c.b16 %v425, %v424
      %v429 = vpack.c.b16 %v427, %v426
      %432 = vmatpush.bf16.msra.mxu0 0
      %433 = vmatpush.bf16.msra.mxu0 0
      %434 = vmatpush.bf16.msra.mxu0 0
      %435 = vmatpush.bf16.msra.mxu0 0
      %436 = vmatpush.bf16.msra.mxu0 0
      %437 = vmatpush.bf16.msra.mxu0 0
      %438 = vmatpush.bf16.msra.mxu0 %v429
      %439 = vmatpush.bf16.msra.mxu0 %v428
      %440 = vmatmul.bf16.gmra.mxu0 %v344
      %v441 = vpop.f32.mrf.mxu0
      %v442 = vadd.f32 %v418, %v441
      %v443 = vpop.f32.mrf.mxu0
      %444 = vdwg.mxu0
      %s445 = scalar_lea.vmem %s1, 64
      %v446 = vld [vmem:[%s445] sm:$0xf]
      %v447 = vld [vmem:[%s445 + $0x4] sm:$0xf]
      %v448 = vld [vmem:[%s445 + $0x8] sm:$0xf]
      %v449 = vld [vmem:[%s445 + $0xc] sm:$0xf]
      %v450 = vld [vmem:[%s445 + $0x10] sm:$0xf]
      %v451 = vld [vmem:[%s445 + $0x14] sm:$0xf]
      %v452 = vld [vmem:[%s445 + $0x18] sm:$0xf]
      %v453 = vld [vmem:[%s445 + $0x1c] sm:$0xf]
      %s454 = scalar_lea.vmem %s3, 2
      %v455 = vld [vmem:[%s454] sm:$0x1]
      %v457 = vperm.slane %v455, 0
      %v467 = vunpack.c.l.b16 %v446
      %v468 = vunpack.c.l.b16 %v447
      %v469 = vunpack.c.l.b16 %v448
      %v470 = vunpack.c.l.b16 %v449
      %v471 = vunpack.c.l.b16 %v450
      %v472 = vunpack.c.l.b16 %v451
      %v473 = vunpack.c.l.b16 %v452
      %v474 = vunpack.c.l.b16 %v453
      %v475 = vpack.c.b16 %v468, %v467
      %v476 = vpack.c.b16 %v470, %v469
      %v477 = vpack.c.b16 %v472, %v471
      %v478 = vpack.c.b16 %v474, %v473
      %483 = vmatpush.bf16.msra.mxu0 0
      %484 = vmatpush.bf16.msra.mxu0 0
      %485 = vmatpush.bf16.msra.mxu0 0
      %486 = vmatpush.bf16.msra.mxu0 0
      %487 = vmatpush.bf16.msra.mxu0 %v478
      %488 = vmatpush.bf16.msra.mxu0 %v477
      %489 = vmatpush.bf16.msra.mxu0 %v476
      %490 = vmatpush.bf16.msra.mxu0 %v475
      %491 = vmatmul.bf16.gmra.mxu0 %v307
      %v492 = vpop.f32.mrf.mxu0
      %v493 = vadd.f32 %v457, %v492
      %v494 = vpop.f32.mrf.mxu0
      %495 = vdwg.mxu0
      %s496 = scalar_lea.vmem %s2, 32
      %v497 = vld [vmem:[%s496] sm:$0xf]
      %v498 = vld [vmem:[%s496 + $0x4] sm:$0xf]
      %v499 = vld [vmem:[%s496 + $0x8] sm:$0xf]
      %v500 = vld [vmem:[%s496 + $0xc] sm:$0xf]
      %s501 = scalar_lea.vmem %s4, 2
      %v502 = vld [vmem:[%s501] sm:$0x1]
      %v504 = vperm.slane %v502, 0
      %v510 = vunpack.c.l.b16 %v497
      %v511 = vunpack.c.l.b16 %v498
      %v512 = vunpack.c.l.b16 %v499
      %v513 = vunpack.c.l.b16 %v500
      %v514 = vpack.c.b16 %v511, %v510
      %v515 = vpack.c.b16 %v513, %v512
      %518 = vmatpush.bf16.msra.mxu0 0
      %519 = vmatpush.bf16.msra.mxu0 0
      %520 = vmatpush.bf16.msra.mxu0 0
      %521 = vmatpush.bf16.msra.mxu0 0
      %522 = vmatpush.bf16.msra.mxu0 0
      %523 = vmatpush.bf16.msra.mxu0 0
      %524 = vmatpush.bf16.msra.mxu0 %v515
      %525 = vmatpush.bf16.msra.mxu0 %v514
      %526 = vmatmul.bf16.gmra.mxu0 %v344
      %v527 = vpop.f32.mrf.mxu0
      %v528 = vadd.f32 %v504, %v527
      %v529 = vpop.f32.mrf.mxu0
      %530 = vdwg.mxu0
      %v531 = vadd.f32 %v319, %v356
      %v532 = vxor.u32 %v531, 2147483648
      %v533 = vmul.f32 %v532, 1.442695
      %v534 = vpow.pop %v533
      %v535 = vadd.f32 %v534, 1.0
      %v536 = vrcp.pop %v535
      %v537 = vmul.f32 %v535, %v536
      %v538 = vsub.f32 1.0, %v537
      %v539 = vmul.f32 %v536, %v538
      %v540 = vadd.f32 %v536, %v539
      %vm541 = vweird.f32 %v535
      %vm542 = vweird.f32 %v536
      %vm543 = vmor %vm541, %vm542
      %v544 = vsel %vm543, %v536, %v540
      %v545 = vand.u32 2147483647, %v535
      %vm546 = vcmp.eq.f32.partialorder %v545, 8.507059e+37
      %v547 = vand.u32 %v535, 2147483648
      %v548 = vor.u32 1.1754944e-38, %v547
      %v549 = vsel %vm546, %v548, %v544
      %v550 = vmul.f32 1.0, %v549
      %v551 = vadd.f32 %v407, %v442
      %v552 = vxor.u32 %v551, 2147483648
      %v553 = vmul.f32 %v552, 1.442695
      %v554 = vpow.pop %v553
      %v555 = vadd.f32 %v554, 1.0
      %v556 = vrcp.pop %v555
      %v557 = vmul.f32 %v555, %v556
      %v558 = vsub.f32 1.0, %v557
      %v559 = vmul.f32 %v556, %v558
      %v560 = vadd.f32 %v556, %v559
      %vm561 = vweird.f32 %v555
      %vm562 = vweird.f32 %v556
      %vm563 = vmor %vm561, %vm562
      %v564 = vsel %vm563, %v556, %v560
      %v565 = vand.u32 2147483647, %v555
      %vm566 = vcmp.eq.f32.partialorder %v565, 8.507059e+37
      %v567 = vand.u32 %v555, 2147483648
      %v568 = vor.u32 1.1754944e-38, %v567
      %v569 = vsel %vm566, %v568, %v564
      %v570 = vmul.f32 1.0, %v569
      %v571 = vmul.f32 %v550, %v528
      %v572 = vadd.f32 %v493, %v571
      %v573 = vtanh.pop %v572
      %v574 = vsub.f32 1.0, %v570
      %v575 = vmul.f32 %v574, %v573
      %v576 = vmul.f32 %v570, %v267
      %v577 = vadd.f32 %v575, %v576
      %vm578 = vcmask 254976
      %579 = vst.msk [vmem:[#allocation2] sm:$0x3] %vm578, %v577
      %v580 = vld [vmem:[#allocation3] sm:$0x3]
      %v581 = vadd.f32 %v580, %v577
      %582 = vst.msk [vmem:[#allocation3] sm:$0x3] %vm578, %v581
      %p583 = scmp.eq.s32.totalorder %s18, 3
      // Predicated region
      $region53: #{crnn_ggnn_forward.6} parent=47 // pred_check
        %p584 = pneg %p583
      $region54: #{crnn_ggnn_forward.6} parent=47 // pred_check_branch
        %586 = sbr.rel (%p584) target = $region56
      $region55: #{crnn_ggnn_forward.6} parent=47 // pred_region
        %v587 = vld [vmem:[#allocation3] sm:$0x3]
        %v588 = vmul.f32 %v587, 0.25
        %v589 = vpack.c.bf16 %v588, %v588
        %v590 = vld [vmem:[%s5] sm:$0xf]
        %v591 = vld [vmem:[%s5 + $0x4] sm:$0xf]
        %v592 = vld [vmem:[%s5 + $0x8] sm:$0xf]
        %v593 = vld [vmem:[%s5 + $0xc] sm:$0xf]
        %v594 = vld [vmem:[%s6] sm:$0x1]
        %v596 = vperm.slane %v594, 0
        %v602 = vunpack.c.l.b16 %v590
        %v603 = vunpack.c.l.b16 %v591
        %v604 = vunpack.c.l.b16 %v592
        %v605 = vunpack.c.l.b16 %v593
        %v606 = vpack.c.b16 %v603, %v602
        %v607 = vpack.c.b16 %v605, %v604
        %v611 = vsel %vm342, %v589, 0
        %613 = vmatpush.bf16.msra.mxu0 0
        %614 = vmatpush.bf16.msra.mxu0 0
        %615 = vmatpush.bf16.msra.mxu0 0
        %616 = vmatpush.bf16.msra.mxu0 0
        %617 = vmatpush.bf16.msra.mxu0 0
        %618 = vmatpush.bf16.msra.mxu0 0
        %619 = vmatpush.bf16.msra.mxu0 %v607
        %620 = vmatpush.bf16.msra.mxu0 %v606
        %621 = vmatmul.bf16.gmra.mxu0 %v611
        %v622 = vpop.f32.mrf.mxu0
        %v623 = vadd.f32 %v596, %v622
        %v624 = vpop.f32.mrf.mxu0
        %625 = vdwg.mxu0
        %626 = vst.msk [vmem:[%s7] sm:$0x3] %vm578, %v623
      $region56: #{crnn_ggnn_forward.6} parent=47 // pred_fallthru
        _
      // Predicated region
      $region57: #{crnn_ggnn_forward.6} parent=47 // pred_check
        %p627 = pneg %p183
      $region58: #{crnn_ggnn_forward.6} parent=47 // pred_check_branch
        %629 = sbr.rel (%p627) target = $region60
      $region59: #{crnn_ggnn_forward.6} parent=47 // pred_region
        _
      $region60: #{crnn_ggnn_forward.6} parent=47 // pred_fallthru
        _
      // Predicated region
      $region61: #{crnn_ggnn_forward.6} parent=47 // pred_check
        %p630 = pneg %p183
      $region62: #{crnn_ggnn_forward.6} parent=47 // pred_check_branch
        %632 = sbr.rel (%p630) target = $region64
      $region63: #{crnn_ggnn_forward.6} parent=47 // pred_region
        _
      $region64: #{crnn_ggnn_forward.6} parent=47 // pred_fallthru
        _
    $region48: #{crnn_ggnn_forward.6} parent=5 // pred_fallthru
      _
    %p633 = scmp.le.s32.totalorder 2, %s13
    // Predicated region
    $region65: #{crnn_ggnn_forward.6} parent=5 // pred_check
      %p634 = pneg %p633
    $region66: #{crnn_ggnn_forward.6} parent=5 // pred_check_branch
      %636 = sbr.rel (%p634) target = $region68
    $region67: #{crnn_ggnn_forward.6} parent=5 // pred_region
      %s637 = ssub.s32 %s13, 2
    $region68: #{crnn_ggnn_forward.6} parent=5 // pred_fallthru
      _
  $region6: #{crnn_ggnn_forward.6} parent=0 // loop_footer
    %s17 = sadd.s32 1, %s13
  $region7: #{crnn_ggnn_forward.6} parent=0 // loop_footer_branch
    %12 = sbr.rel target = $region3
  $region8: #{crnn_ggnn_forward.6} parent=0 // loop_exit
    _

// kernel: crnn_ggnn_forward.7
$region0: #{crnn_ggnn_forward.7}
  #allocation0 [shape = 'u32[]', space=smem, size = 0x4, offset = 0x4, fixed_abs, tag = 'smem constant byte address 0x4 - core index']
  #allocation1 [shape = 'u32[72,128]{1,0:T(1,128)}', space=vmem, size = 0x9000, scoped, tag = 'internal scratch']
  %s0 = inlined_call_operand.vmem [shape: bf16[10,10], index: 0, kind: input, shape index: {}]
  %s1 = inlined_call_operand.vmem [shape: f32[10,32], index: 1, kind: input, shape index: {}]
  %s2 = inlined_call_operand.vmem [shape: bf16[3,32,32], index: 2, kind: input, shape index: {}]
  %s3 = inlined_call_operand.vmem [shape: bf16[3,32,32], index: 3, kind: input, shape index: {}]
  %s4 = inlined_call_operand.vmem [shape: bf16[3,32,32], index: 4, kind: input, shape index: {}]
  %s5 = inlined_call_operand.vmem [shape: f32[3,1,32], index: 5, kind: input, shape index: {}]
  %s6 = inlined_call_operand.vmem [shape: f32[3,1,32], index: 6, kind: input, shape index: {}]
  %s7 = inlined_call_operand.vmem [shape: bf16[2,32], index: 7, kind: input, shape index: {}]
  %s8 = inlined_call_operand.hbm [shape: f32[2,10], index: 8, kind: output, shape index: {}]
  %s9 = sld [smem:[#allocation0]]
  $region42: #{crnn_ggnn_forward.7} parent=0
    _
  %s11 = ssub.s32 1, %s9
  %s12 = scalar_select 0, %s11, %s9
  $region1: #{crnn_ggnn_forward.7} parent=0
    #allocation2 [shape = 'u8[1024]{0}', space=vmem, size = 0x400, scoped, tag = 'output window, operand 0, single buffered']
    #allocation3 [shape = 's32[1]{0}', space=sflag, size = 0x4, scoped, tag = 'scoped memory for crnn_ggnn_forward.7']
    %13 = vsyncpa [#allocation3], 0
    // Predicated region
    $region2: #{crnn_ggnn_forward.7} parent=1 // pred_check
      _
    $region3: #{crnn_ggnn_forward.7} parent=1 // pred_check_branch
      %15 = sbr.rel (0) target = $region5
    $region4: #{crnn_ggnn_forward.7} parent=1 // pred_region
      _
    $region5: #{crnn_ggnn_forward.7} parent=1 // pred_fallthru
      _
    // Predicated region
    $region6: #{crnn_ggnn_forward.7} parent=1 // pred_check
      _
    $region7: #{crnn_ggnn_forward.7} parent=1 // pred_check_branch
      %17 = sbr.rel (0) target = $region9
    $region8: #{crnn_ggnn_forward.7} parent=1 // pred_region
      _
    $region9: #{crnn_ggnn_forward.7} parent=1 // pred_fallthru
      _
    // Predicated region
    $region10: #{crnn_ggnn_forward.7} parent=1 // pred_check
      _
    $region11: #{crnn_ggnn_forward.7} parent=1 // pred_check_branch
      %19 = sbr.rel (0) target = $region13
    $region12: #{crnn_ggnn_forward.7} parent=1 // pred_region
      _
    $region13: #{crnn_ggnn_forward.7} parent=1 // pred_fallthru
      _
    // Predicated region
    $region14: #{crnn_ggnn_forward.7} parent=1 // pred_check
      _
    $region15: #{crnn_ggnn_forward.7} parent=1 // pred_check_branch
      %21 = sbr.rel (0) target = $region17
    $region16: #{crnn_ggnn_forward.7} parent=1 // pred_region
      _
    $region17: #{crnn_ggnn_forward.7} parent=1 // pred_fallthru
      _
    // Predicated region
    $region18: #{crnn_ggnn_forward.7} parent=1 // pred_check
      _
    $region19: #{crnn_ggnn_forward.7} parent=1 // pred_check_branch
      %23 = sbr.rel (0) target = $region21
    $region20: #{crnn_ggnn_forward.7} parent=1 // pred_region
      _
    $region21: #{crnn_ggnn_forward.7} parent=1 // pred_fallthru
      _
    // Predicated region
    $region22: #{crnn_ggnn_forward.7} parent=1 // pred_check
      _
    $region23: #{crnn_ggnn_forward.7} parent=1 // pred_check_branch
      %25 = sbr.rel (0) target = $region25
    $region24: #{crnn_ggnn_forward.7} parent=1 // pred_region
      _
    $region25: #{crnn_ggnn_forward.7} parent=1 // pred_fallthru
      _
    // Predicated region
    $region26: #{crnn_ggnn_forward.7} parent=1 // pred_check
      _
    $region27: #{crnn_ggnn_forward.7} parent=1 // pred_check_branch
      %27 = sbr.rel (0) target = $region29
    $region28: #{crnn_ggnn_forward.7} parent=1 // pred_region
      _
    $region29: #{crnn_ggnn_forward.7} parent=1 // pred_fallthru
      _
    // Predicated region
    $region30: #{crnn_ggnn_forward.7} parent=1 // pred_check
      _
    $region31: #{crnn_ggnn_forward.7} parent=1 // pred_check_branch
      %29 = sbr.rel (0) target = $region33
    $region32: #{crnn_ggnn_forward.7} parent=1 // pred_region
      _
    $region33: #{crnn_ggnn_forward.7} parent=1 // pred_fallthru
      _
    %v31 = vld [vmem:[%s0] sm:$0xf]
    %v32 = vld [vmem:[%s0 + $0x4] sm:$0x1]
    %v33 = vld [vmem:[%s1] sm:$0xff]
    %v34 = vld [vmem:[%s1 + $0x8] sm:$0x3]
    %v35 = vpack.c.bf16 %v34, %v33
    %v36 = vld [vmem:[%s2] sm:$0xf]
    %v37 = vld [vmem:[%s2 + $0x4] sm:$0xf]
    %v38 = vld [vmem:[%s2 + $0x8] sm:$0xf]
    %v39 = vld [vmem:[%s2 + $0xc] sm:$0xf]
    %v44 = vunpack.c.l.b16 %v36
    %v45 = vunpack.c.l.b16 %v37
    %v46 = vunpack.c.l.b16 %v38
    %v47 = vunpack.c.l.b16 %v39
    %v48 = vpack.c.b16 %v45, %v44
    %v49 = vpack.c.b16 %v47, %v46
    %vm52 = vcmask 261120
    %v54 = vsel %vm52, %v35, 0
    %56 = vmatpush.bf16.msra.mxu0 0
    %57 = vmatpush.bf16.msra.mxu0 0
    %58 = vmatpush.bf16.msra.mxu0 0
    %59 = vmatpush.bf16.msra.mxu0 0
    %60 = vmatpush.bf16.msra.mxu0 0
    %61 = vmatpush.bf16.msra.mxu0 0
    %62 = vmatpush.bf16.msra.mxu0 %v49
    %63 = vmatpush.bf16.msra.mxu0 %v48
    %64 = vmatmul.bf16.gmra.mxu0 %v54
    %v65 = vpop.f32.mrf.mxu0
    %v66 = vadd.f32 0.0, %v65
    %v67 = vpop.f32.mrf.mxu0
    %v68 = vadd.f32 0.0, %v67
    %69 = vdwg.mxu0
    %v70 = vpack.c.bf16 %v68, %v66
    %v73 = vunpack.c.l.b16 %v31
    %v74 = vunpack.c.l.b16 %v32
    %v75 = vpack.c.b16 %v74, %v73
    %vm76 = vcmask 80896
    %v78 = vsel %vm76, %v75, 0
    %vm80 = vcmask 1044480
    %v82 = vsel %vm80, %v70, 0
    %84 = vmatpush.bf16.msra.mxu0 0
    %85 = vmatpush.bf16.msra.mxu0 0
    %86 = vmatpush.bf16.msra.mxu0 0
    %87 = vmatpush.bf16.msra.mxu0 0
    %88 = vmatpush.bf16.msra.mxu0 0
    %89 = vmatpush.bf16.msra.mxu0 0
    %90 = vmatpush.bf16.msra.mxu0 0
    %91 = vmatpush.bf16.msra.mxu0 %v82
    %92 = vmatmul.bf16.gmra.mxu0 %v78
    %v93 = vpop.f32.mrf.mxu0
    %v94 = vadd.f32 0.0, %v93
    %v95 = vpop.f32.mrf.mxu0
    %v96 = vadd.f32 0.0, %v95
    %97 = vdwg.mxu0
    %v98 = vpack.c.bf16 %v96, %v94
    %v99 = vld [vmem:[%s3] sm:$0xf]
    %v100 = vld [vmem:[%s3 + $0x4] sm:$0xf]
    %v101 = vld [vmem:[%s3 + $0x8] sm:$0xf]
    %v102 = vld [vmem:[%s3 + $0xc] sm:$0xf]
    %v103 = vld [vmem:[%s5] sm:$0x1]
    %v105 = vperm.slane %v103, 0
    %v111 = vunpack.c.l.b16 %v99
    %v112 = vunpack.c.l.b16 %v100
    %v113 = vunpack.c.l.b16 %v101
    %v114 = vunpack.c.l.b16 %v102
    %v115 = vpack.c.b16 %v112, %v111
    %v116 = vpack.c.b16 %v114, %v113
    %v120 = vsel %vm52, %v98, 0
    %122 = vmatpush.bf16.msra.mxu0 0
    %123 = vmatpush.bf16.msra.mxu0 0
    %124 = vmatpush.bf16.msra.mxu0 0
    %125 = vmatpush.bf16.msra.mxu0 0
    %126 = vmatpush.bf16.msra.mxu0 0
    %127 = vmatpush.bf16.msra.mxu0 0
    %128 = vmatpush.bf16.msra.mxu0 %v116
    %129 = vmatpush.bf16.msra.mxu0 %v115
    %130 = vmatmul.bf16.gmra.mxu0 %v120
    %v131 = vpop.f32.mrf.mxu0
    %v132 = vadd.f32 %v105, %v131
    %v133 = vpop.f32.mrf.mxu0
    %v134 = vadd.f32 %v105, %v133
    %135 = vdwg.mxu0
    %v136 = vld [vmem:[%s4] sm:$0xf]
    %v137 = vld [vmem:[%s4 + $0x4] sm:$0xf]
    %v138 = vld [vmem:[%s4 + $0x8] sm:$0xf]
    %v139 = vld [vmem:[%s4 + $0xc] sm:$0xf]
    %v140 = vld [vmem:[%s6] sm:$0x1]
    %v142 = vperm.slane %v140, 0
    %v148 = vunpack.c.l.b16 %v136
    %v149 = vunpack.c.l.b16 %v137
    %v150 = vunpack.c.l.b16 %v138
    %v151 = vunpack.c.l.b16 %v139
    %v152 = vpack.c.b16 %v149, %v148
    %v153 = vpack.c.b16 %v151, %v150
    %156 = vmatpush.bf16.msra.mxu0 0
    %157 = vmatpush.bf16.msra.mxu0 0
    %158 = vmatpush.bf16.msra.mxu0 0
    %159 = vmatpush.bf16.msra.mxu0 0
    %160 = vmatpush.bf16.msra.mxu0 0
    %161 = vmatpush.bf16.msra.mxu0 0
    %162 = vmatpush.bf16.msra.mxu0 %v153
    %163 = vmatpush.bf16.msra.mxu0 %v152
    %164 = vmatmul.bf16.gmra.mxu0 %v54
    %v165 = vpop.f32.mrf.mxu0
    %v166 = vadd.f32 %v142, %v165
    %v167 = vpop.f32.mrf.mxu0
    %v168 = vadd.f32 %v142, %v167
    %169 = vdwg.mxu0
    %s170 = scalar_lea.vmem %s3, 16
    %v171 = vld [vmem:[%s170] sm:$0xf]
    %v172 = vld [vmem:[%s170 + $0x4] sm:$0xf]
    %v173 = vld [vmem:[%s170 + $0x8] sm:$0xf]
    %v174 = vld [vmem:[%s170 + $0xc] sm:$0xf]
    %s175 = scalar_lea.vmem %s5, 1
    %v176 = vld [vmem:[%s175] sm:$0x1]
    %v178 = vperm.slane %v176, 0
    %v184 = vunpack.c.l.b16 %v171
    %v185 = vunpack.c.l.b16 %v172
    %v186 = vunpack.c.l.b16 %v173
    %v187 = vunpack.c.l.b16 %v174
    %v188 = vpack.c.b16 %v185, %v184
    %v189 = vpack.c.b16 %v187, %v186
    %192 = vmatpush.bf16.msra.mxu0 0
    %193 = vmatpush.bf16.msra.mxu0 0
    %194 = vmatpush.bf16.msra.mxu0 0
    %195 = vmatpush.bf16.msra.mxu0 0
    %196 = vmatpush.bf16.msra.mxu0 0
    %197 = vmatpush.bf16.msra.mxu0 0
    %198 = vmatpush.bf16.msra.mxu0 %v189
    %199 = vmatpush.bf16.msra.mxu0 %v188
    %200 = vmatmul.bf16.gmra.mxu0 %v120
    %v201 = vpop.f32.mrf.mxu0
    %v202 = vadd.f32 %v178, %v201
    %v203 = vpop.f32.mrf.mxu0
    %v204 = vadd.f32 %v178, %v203
    %205 = vdwg.mxu0
    %s206 = scalar_lea.vmem %s4, 16
    %v207 = vld [vmem:[%s206] sm:$0xf]
    %v208 = vld [vmem:[%s206 + $0x4] sm:$0xf]
    %v209 = vld [vmem:[%s206 + $0x8] sm:$0xf]
    %v210 = vld [vmem:[%s206 + $0xc] sm:$0xf]
    %s211 = scalar_lea.vmem %s6, 1
    %v212 = vld [vmem:[%s211] sm:$0x1]
    %v214 = vperm.slane %v212, 0
    %v220 = vunpack.c.l.b16 %v207
    %v221 = vunpack.c.l.b16 %v208
    %v222 = vunpack.c.l.b16 %v209
    %v223 = vunpack.c.l.b16 %v210
    %v224 = vpack.c.b16 %v221, %v220
    %v225 = vpack.c.b16 %v223, %v222
    %228 = vmatpush.bf16.msra.mxu0 0
    %229 = vmatpush.bf16.msra.mxu0 0
    %230 = vmatpush.bf16.msra.mxu0 0
    %231 = vmatpush.bf16.msra.mxu0 0
    %232 = vmatpush.bf16.msra.mxu0 0
    %233 = vmatpush.bf16.msra.mxu0 0
    %234 = vmatpush.bf16.msra.mxu0 %v225
    %235 = vmatpush.bf16.msra.mxu0 %v224
    %236 = vmatmul.bf16.gmra.mxu0 %v54
    %v237 = vpop.f32.mrf.mxu0
    %v238 = vadd.f32 %v214, %v237
    %v239 = vpop.f32.mrf.mxu0
    %v240 = vadd.f32 %v214, %v239
    %241 = vdwg.mxu0
    %s242 = scalar_lea.vmem %s3, 32
    %v243 = vld [vmem:[%s242] sm:$0xf]
    %v244 = vld [vmem:[%s242 + $0x4] sm:$0xf]
    %v245 = vld [vmem:[%s242 + $0x8] sm:$0xf]
    %v246 = vld [vmem:[%s242 + $0xc] sm:$0xf]
    %s247 = scalar_lea.vmem %s5, 2
    %v248 = vld [vmem:[%s247] sm:$0x1]
    %v250 = vperm.slane %v248, 0
    %v256 = vunpack.c.l.b16 %v243
    %v257 = vunpack.c.l.b16 %v244
    %v258 = vunpack.c.l.b16 %v245
    %v259 = vunpack.c.l.b16 %v246
    %v260 = vpack.c.b16 %v257, %v256
    %v261 = vpack.c.b16 %v259, %v258
    %264 = vmatpush.bf16.msra.mxu0 0
    %265 = vmatpush.bf16.msra.mxu0 0
    %266 = vmatpush.bf16.msra.mxu0 0
    %267 = vmatpush.bf16.msra.mxu0 0
    %268 = vmatpush.bf16.msra.mxu0 0
    %269 = vmatpush.bf16.msra.mxu0 0
    %270 = vmatpush.bf16.msra.mxu0 %v261
    %271 = vmatpush.bf16.msra.mxu0 %v260
    %272 = vmatmul.bf16.gmra.mxu0 %v120
    %v273 = vpop.f32.mrf.mxu0
    %v274 = vadd.f32 %v250, %v273
    %v275 = vpop.f32.mrf.mxu0
    %v276 = vadd.f32 %v250, %v275
    %277 = vdwg.mxu0
    %s278 = scalar_lea.vmem %s4, 32
    %v279 = vld [vmem:[%s278] sm:$0xf]
    %v280 = vld [vmem:[%s278 + $0x4] sm:$0xf]
    %v281 = vld [vmem:[%s278 + $0x8] sm:$0xf]
    %v282 = vld [vmem:[%s278 + $0xc] sm:$0xf]
    %s283 = scalar_lea.vmem %s6, 2
    %v284 = vld [vmem:[%s283] sm:$0x1]
    %v286 = vperm.slane %v284, 0
    %v292 = vunpack.c.l.b16 %v279
    %v293 = vunpack.c.l.b16 %v280
    %v294 = vunpack.c.l.b16 %v281
    %v295 = vunpack.c.l.b16 %v282
    %v296 = vpack.c.b16 %v293, %v292
    %v297 = vpack.c.b16 %v295, %v294
    %300 = vmatpush.bf16.msra.mxu0 0
    %301 = vmatpush.bf16.msra.mxu0 0
    %302 = vmatpush.bf16.msra.mxu0 0
    %303 = vmatpush.bf16.msra.mxu0 0
    %304 = vmatpush.bf16.msra.mxu0 0
    %305 = vmatpush.bf16.msra.mxu0 0
    %306 = vmatpush.bf16.msra.mxu0 %v297
    %307 = vmatpush.bf16.msra.mxu0 %v296
    %308 = vmatmul.bf16.gmra.mxu0 %v54
    %v309 = vpop.f32.mrf.mxu0
    %v310 = vadd.f32 %v286, %v309
    %v311 = vpop.f32.mrf.mxu0
    %v312 = vadd.f32 %v286, %v311
    %313 = vdwg.mxu0
    %v314 = vadd.f32 %v132, %v166
    %v315 = vadd.f32 %v134, %v168
    %v316 = vxor.u32 %v314, 2147483648
    %v317 = vxor.u32 %v315, 2147483648
    %v318 = vmul.f32 %v316, 1.442695
    %v319 = vpow.pop %v318
    %v320 = vmul.f32 %v317, 1.442695
    %v321 = vpow.pop %v320
    %v322 = vadd.f32 %v319, 1.0
    %v323 = vadd.f32 %v321, 1.0
    %v324 = vrcp.pop %v322
    %v325 = vmul.f32 %v322, %v324
    %v326 = vsub.f32 1.0, %v325
    %v327 = vmul.f32 %v324, %v326
    %v328 = vadd.f32 %v324, %v327
    %vm329 = vweird.f32 %v322
    %vm330 = vweird.f32 %v324
    %vm331 = vmor %vm329, %vm330
    %v332 = vsel %vm331, %v324, %v328
    %v333 = vand.u32 2147483647, %v322
    %vm334 = vcmp.eq.f32.partialorder %v333, 8.507059e+37
    %v335 = vand.u32 %v322, 2147483648
    %v336 = vor.u32 1.1754944e-38, %v335
    %v337 = vsel %vm334, %v336, %v332
    %v338 = vmul.f32 1.0, %v337
    %v339 = vrcp.pop %v323
    %v340 = vmul.f32 %v323, %v339
    %v341 = vsub.f32 1.0, %v340
    %v342 = vmul.f32 %v339, %v341
    %v343 = vadd.f32 %v339, %v342
    %vm344 = vweird.f32 %v323
    %vm345 = vweird.f32 %v339
    %vm346 = vmor %vm344, %vm345
    %v347 = vsel %vm346, %v339, %v343
    %v348 = vand.u32 2147483647, %v323
    %vm349 = vcmp.eq.f32.partialorder %v348, 8.507059e+37
    %v350 = vand.u32 %v323, 2147483648
    %v351 = vor.u32 1.1754944e-38, %v350
    %v352 = vsel %vm349, %v351, %v347
    %v353 = vmul.f32 1.0, %v352
    %v354 = vadd.f32 %v202, %v238
    %v355 = vadd.f32 %v204, %v240
    %v356 = vxor.u32 %v354, 2147483648
    %v357 = vxor.u32 %v355, 2147483648
    %v358 = vmul.f32 %v356, 1.442695
    %v359 = vpow.pop %v358
    %v360 = vmul.f32 %v357, 1.442695
    %v361 = vpow.pop %v360
    %v362 = vadd.f32 %v359, 1.0
    %v363 = vadd.f32 %v361, 1.0
    %v364 = vrcp.pop %v362
    %v365 = vmul.f32 %v362, %v364
    %v366 = vsub.f32 1.0, %v365
    %v367 = vmul.f32 %v364, %v366
    %v368 = vadd.f32 %v364, %v367
    %vm369 = vweird.f32 %v362
    %vm370 = vweird.f32 %v364
    %vm371 = vmor %vm369, %vm370
    %v372 = vsel %vm371, %v364, %v368
    %v373 = vand.u32 2147483647, %v362
    %vm374 = vcmp.eq.f32.partialorder %v373, 8.507059e+37
    %v375 = vand.u32 %v362, 2147483648
    %v376 = vor.u32 1.1754944e-38, %v375
    %v377 = vsel %vm374, %v376, %v372
    %v378 = vmul.f32 1.0, %v377
    %v379 = vrcp.pop %v363
    %v380 = vmul.f32 %v363, %v379
    %v381 = vsub.f32 1.0, %v380
    %v382 = vmul.f32 %v379, %v381
    %v383 = vadd.f32 %v379, %v382
    %vm384 = vweird.f32 %v363
    %vm385 = vweird.f32 %v379
    %vm386 = vmor %vm384, %vm385
    %v387 = vsel %vm386, %v379, %v383
    %v388 = vand.u32 2147483647, %v363
    %vm389 = vcmp.eq.f32.partialorder %v388, 8.507059e+37
    %v390 = vand.u32 %v363, 2147483648
    %v391 = vor.u32 1.1754944e-38, %v390
    %v392 = vsel %vm389, %v391, %v387
    %v393 = vmul.f32 1.0, %v392
    %v394 = vmul.f32 %v338, %v310
    %v395 = vmul.f32 %v353, %v312
    %v396 = vadd.f32 %v274, %v394
    %v397 = vadd.f32 %v276, %v395
    %v398 = vtanh.pop %v396
    %v399 = vtanh.pop %v397
    %v400 = vsub.f32 1.0, %v378
    %v401 = vsub.f32 1.0, %v393
    %v402 = vmul.f32 %v400, %v398
    %v403 = vmul.f32 %v401, %v399
    %v404 = vmul.f32 %v378, %v33
    %v405 = vmul.f32 %v393, %v34
    %v406 = vadd.f32 %v402, %v404
    %v407 = vadd.f32 %v403, %v405
    %v408 = vpack.c.bf16 %v407, %v406
    %s409 = scalar_lea.vmem %s2, 16
    %v410 = vld [vmem:[%s409] sm:$0xf]
    %v411 = vld [vmem:[%s409 + $0x4] sm:$0xf]
    %v412 = vld [vmem:[%s409 + $0x8] sm:$0xf]
    %v413 = vld [vmem:[%s409 + $0xc] sm:$0xf]
    %v418 = vunpack.c.l.b16 %v410
    %v419 = vunpack.c.l.b16 %v411
    %v420 = vunpack.c.l.b16 %v412
    %v421 = vunpack.c.l.b16 %v413
    %v422 = vpack.c.b16 %v419, %v418
    %v423 = vpack.c.b16 %v421, %v420
    %v427 = vsel %vm52, %v408, 0
    %429 = vmatpush.bf16.msra.mxu0 0
    %430 = vmatpush.bf16.msra.mxu0 0
    %431 = vmatpush.bf16.msra.mxu0 0
    %432 = vmatpush.bf16.msra.mxu0 0
    %433 = vmatpush.bf16.msra.mxu0 0
    %434 = vmatpush.bf16.msra.mxu0 0
    %435 = vmatpush.bf16.msra.mxu0 %v423
    %436 = vmatpush.bf16.msra.mxu0 %v422
    %437 = vmatmul.bf16.gmra.mxu0 %v427
    %v438 = vpop.f32.mrf.mxu0
    %v439 = vadd.f32 0.0, %v438
    %v440 = vpop.f32.mrf.mxu0
    %v441 = vadd.f32 0.0, %v440
    %442 = vdwg.mxu0
    %v443 = vpack.c.bf16 %v441, %v439
    %v445 = vsel %vm80, %v443, 0
    %447 = vmatpush.bf16.msra.mxu0 0
    %448 = vmatpush.bf16.msra.mxu0 0
    %449 = vmatpush.bf16.msra.mxu0 0
    %450 = vmatpush.bf16.msra.mxu0 0
    %451 = vmatpush.bf16.msra.mxu0 0
    %452 = vmatpush.bf16.msra.mxu0 0
    %453 = vmatpush.bf16.msra.mxu0 0
    %454 = vmatpush.bf16.msra.mxu0 %v445
    %455 = vmatmul.bf16.gmra.mxu0 %v78
    %v456 = vpop.f32.mrf.mxu0
    %v457 = vadd.f32 0.0, %v456
    %v458 = vpop.f32.mrf.mxu0
    %v459 = vadd.f32 0.0, %v458
    %460 = vdwg.mxu0
    %v461 = vpack.c.bf16 %v459, %v457
    %v463 = vsel %vm52, %v461, 0
    %465 = vmatpush.bf16.msra.mxu0 0
    %466 = vmatpush.bf16.msra.mxu0 0
    %467 = vmatpush.bf16.msra.mxu0 0
    %468 = vmatpush.bf16.msra.mxu0 0
    %469 = vmatpush.bf16.msra.mxu0 0
    %470 = vmatpush.bf16.msra.mxu0 0
    %471 = vmatpush.bf16.msra.mxu0 %v116
    %472 = vmatpush.bf16.msra.mxu0 %v115
    %473 = vmatmul.bf16.gmra.mxu0 %v463
    %v474 = vpop.f32.mrf.mxu0
    %v475 = vadd.f32 %v105, %v474
    %v476 = vpop.f32.mrf.mxu0
    %v477 = vadd.f32 %v105, %v476
    %478 = vdwg.mxu0
    %479 = vmatpush.bf16.msra.mxu0 0
    %480 = vmatpush.bf16.msra.mxu0 0
    %481 = vmatpush.bf16.msra.mxu0 0
    %482 = vmatpush.bf16.msra.mxu0 0
    %483 = vmatpush.bf16.msra.mxu0 0
    %484 = vmatpush.bf16.msra.mxu0 0
    %485 = vmatpush.bf16.msra.mxu0 %v153
    %486 = vmatpush.bf16.msra.mxu0 %v152
    %487 = vmatmul.bf16.gmra.mxu0 %v427
    %v488 = vpop.f32.mrf.mxu0
    %v489 = vadd.f32 %v142, %v488
    %v490 = vpop.f32.mrf.mxu0
    %v491 = vadd.f32 %v142, %v490
    %492 = vdwg.mxu0
    %493 = vmatpush.bf16.msra.mxu0 0
    %494 = vmatpush.bf16.msra.mxu0 0
    %495 = vmatpush.bf16.msra.mxu0 0
    %496 = vmatpush.bf16.msra.mxu0 0
    %497 = vmatpush.bf16.msra.mxu0 0
    %498 = vmatpush.bf16.msra.mxu0 0
    %499 = vmatpush.bf16.msra.mxu0 %v189
    %500 = vmatpush.bf16.msra.mxu0 %v188
    %501 = vmatmul.bf16.gmra.mxu0 %v463
    %v502 = vpop.f32.mrf.mxu0
    %v503 = vadd.f32 %v178, %v502
    %v504 = vpop.f32.mrf.mxu0
    %v505 = vadd.f32 %v178, %v504
    %506 = vdwg.mxu0
    %507 = vmatpush.bf16.msra.mxu0 0
    %508 = vmatpush.bf16.msra.mxu0 0
    %509 = vmatpush.bf16.msra.mxu0 0
    %510 = vmatpush.bf16.msra.mxu0 0
    %511 = vmatpush.bf16.msra.mxu0 0
    %512 = vmatpush.bf16.msra.mxu0 0
    %513 = vmatpush.bf16.msra.mxu0 %v225
    %514 = vmatpush.bf16.msra.mxu0 %v224
    %515 = vmatmul.bf16.gmra.mxu0 %v427
    %v516 = vpop.f32.mrf.mxu0
    %v517 = vadd.f32 %v214, %v516
    %v518 = vpop.f32.mrf.mxu0
    %v519 = vadd.f32 %v214, %v518
    %520 = vdwg.mxu0
    %521 = vmatpush.bf16.msra.mxu0 0
    %522 = vmatpush.bf16.msra.mxu0 0
    %523 = vmatpush.bf16.msra.mxu0 0
    %524 = vmatpush.bf16.msra.mxu0 0
    %525 = vmatpush.bf16.msra.mxu0 0
    %526 = vmatpush.bf16.msra.mxu0 0
    %527 = vmatpush.bf16.msra.mxu0 %v261
    %528 = vmatpush.bf16.msra.mxu0 %v260
    %529 = vmatmul.bf16.gmra.mxu0 %v463
    %v530 = vpop.f32.mrf.mxu0
    %v531 = vadd.f32 %v250, %v530
    %v532 = vpop.f32.mrf.mxu0
    %v533 = vadd.f32 %v250, %v532
    %534 = vdwg.mxu0
    %535 = vmatpush.bf16.msra.mxu0 0
    %536 = vmatpush.bf16.msra.mxu0 0
    %537 = vmatpush.bf16.msra.mxu0 0
    %538 = vmatpush.bf16.msra.mxu0 0
    %539 = vmatpush.bf16.msra.mxu0 0
    %540 = vmatpush.bf16.msra.mxu0 0
    %541 = vmatpush.bf16.msra.mxu0 %v297
    %542 = vmatpush.bf16.msra.mxu0 %v296
    %543 = vmatmul.bf16.gmra.mxu0 %v427
    %v544 = vpop.f32.mrf.mxu0
    %v545 = vadd.f32 %v286, %v544
    %v546 = vpop.f32.mrf.mxu0
    %v547 = vadd.f32 %v286, %v546
    %548 = vdwg.mxu0
    %v549 = vadd.f32 %v475, %v489
    %v550 = vadd.f32 %v477, %v491
    %v551 = vxor.u32 %v549, 2147483648
    %v552 = vxor.u32 %v550, 2147483648
    %v553 = vmul.f32 %v551, 1.442695
    %v554 = vpow.pop %v553
    %v555 = vmul.f32 %v552, 1.442695
    %v556 = vpow.pop %v555
    %v557 = vadd.f32 %v554, 1.0
    %v558 = vadd.f32 %v556, 1.0
    %v559 = vrcp.pop %v557
    %v560 = vmul.f32 %v557, %v559
    %v561 = vsub.f32 1.0, %v560
    %v562 = vmul.f32 %v559, %v561
    %v563 = vadd.f32 %v559, %v562
    %vm564 = vweird.f32 %v557
    %vm565 = vweird.f32 %v559
    %vm566 = vmor %vm564, %vm565
    %v567 = vsel %vm566, %v559, %v563
    %v568 = vand.u32 2147483647, %v557
    %vm569 = vcmp.eq.f32.partialorder %v568, 8.507059e+37
    %v570 = vand.u32 %v557, 2147483648
    %v571 = vor.u32 1.1754944e-38, %v570
    %v572 = vsel %vm569, %v571, %v567
    %v573 = vmul.f32 1.0, %v572
    %v574 = vrcp.pop %v558
    %v575 = vmul.f32 %v558, %v574
    %v576 = vsub.f32 1.0, %v575
    %v577 = vmul.f32 %v574, %v576
    %v578 = vadd.f32 %v574, %v577
    %vm579 = vweird.f32 %v558
    %vm580 = vweird.f32 %v574
    %vm581 = vmor %vm579, %vm580
    %v582 = vsel %vm581, %v574, %v578
    %v583 = vand.u32 2147483647, %v558
    %vm584 = vcmp.eq.f32.partialorder %v583, 8.507059e+37
    %v585 = vand.u32 %v558, 2147483648
    %v586 = vor.u32 1.1754944e-38, %v585
    %v587 = vsel %vm584, %v586, %v582
    %v588 = vmul.f32 1.0, %v587
    %v589 = vadd.f32 %v503, %v517
    %v590 = vadd.f32 %v505, %v519
    %v591 = vxor.u32 %v589, 2147483648
    %v592 = vxor.u32 %v590, 2147483648
    %v593 = vmul.f32 %v591, 1.442695
    %v594 = vpow.pop %v593
    %v595 = vmul.f32 %v592, 1.442695
    %v596 = vpow.pop %v595
    %v597 = vadd.f32 %v594, 1.0
    %v598 = vadd.f32 %v596, 1.0
    %v599 = vrcp.pop %v597
    %v600 = vmul.f32 %v597, %v599
    %v601 = vsub.f32 1.0, %v600
    %v602 = vmul.f32 %v599, %v601
    %v603 = vadd.f32 %v599, %v602
    %vm604 = vweird.f32 %v597
    %vm605 = vweird.f32 %v599
    %vm606 = vmor %vm604, %vm605
    %v607 = vsel %vm606, %v599, %v603
    %v608 = vand.u32 2147483647, %v597
    %vm609 = vcmp.eq.f32.partialorder %v608, 8.507059e+37
    %v610 = vand.u32 %v597, 2147483648
    %v611 = vor.u32 1.1754944e-38, %v610
    %v612 = vsel %vm609, %v611, %v607
    %v613 = vmul.f32 1.0, %v612
    %v614 = vrcp.pop %v598
    %v615 = vmul.f32 %v598, %v614
    %v616 = vsub.f32 1.0, %v615
    %v617 = vmul.f32 %v614, %v616
    %v618 = vadd.f32 %v614, %v617
    %vm619 = vweird.f32 %v598
    %vm620 = vweird.f32 %v614
    %vm621 = vmor %vm619, %vm620
    %v622 = vsel %vm621, %v614, %v618
    %v623 = vand.u32 2147483647, %v598
    %vm624 = vcmp.eq.f32.partialorder %v623, 8.507059e+37
    %v625 = vand.u32 %v598, 2147483648
    %v626 = vor.u32 1.1754944e-38, %v625
    %v627 = vsel %vm624, %v626, %v622
    %v628 = vmul.f32 1.0, %v627
    %v629 = vmul.f32 %v573, %v545
    %v630 = vmul.f32 %v588, %v547
    %v631 = vadd.f32 %v531, %v629
    %v632 = vadd.f32 %v533, %v630
    %v633 = vtanh.pop %v631
    %v634 = vtanh.pop %v632
    %v635 = vsub.f32 1.0, %v613
    %v636 = vsub.f32 1.0, %v628
    %v637 = vmul.f32 %v635, %v633
    %v638 = vmul.f32 %v636, %v634
    %v639 = vmul.f32 %v613, %v406
    %v640 = vmul.f32 %v628, %v407
    %v641 = vadd.f32 %v637, %v639
    %v642 = vadd.f32 %v638, %v640
    %v643 = vpack.c.bf16 %v642, %v641
    %s644 = scalar_lea.vmem %s2, 32
    %v645 = vld [vmem:[%s644] sm:$0xf]
    %v646 = vld [vmem:[%s644 + $0x4] sm:$0xf]
    %v647 = vld [vmem:[%s644 + $0x8] sm:$0xf]
    %v648 = vld [vmem:[%s644 + $0xc] sm:$0xf]
    %v653 = vunpack.c.l.b16 %v645
    %v654 = vunpack.c.l.b16 %v646
    %v655 = vunpack.c.l.b16 %v647
    %v656 = vunpack.c.l.b16 %v648
    %v657 = vpack.c.b16 %v654, %v653
    %v658 = vpack.c.b16 %v656, %v655
    %v662 = vsel %vm52, %v643, 0
    %664 = vmatpush.bf16.msra.mxu0 0
    %665 = vmatpush.bf16.msra.mxu0 0
    %666 = vmatpush.bf16.msra.mxu0 0
    %667 = vmatpush.bf16.msra.mxu0 0
    %668 = vmatpush.bf16.msra.mxu0 0
    %669 = vmatpush.bf16.msra.mxu0 0
    %670 = vmatpush.bf16.msra.mxu0 %v658
    %671 = vmatpush.bf16.msra.mxu0 %v657
    %672 = vmatmul.bf16.gmra.mxu0 %v662
    %v673 = vpop.f32.mrf.mxu0
    %v674 = vadd.f32 0.0, %v673
    %v675 = vpop.f32.mrf.mxu0
    %v676 = vadd.f32 0.0, %v675
    %677 = vdwg.mxu0
    %v678 = vpack.c.bf16 %v676, %v674
    %v680 = vsel %vm80, %v678, 0
    %682 = vmatpush.bf16.msra.mxu0 0
    %683 = vmatpush.bf16.msra.mxu0 0
    %684 = vmatpush.bf16.msra.mxu0 0
    %685 = vmatpush.bf16.msra.mxu0 0
    %686 = vmatpush.bf16.msra.mxu0 0
    %687 = vmatpush.bf16.msra.mxu0 0
    %688 = vmatpush.bf16.msra.mxu0 0
    %689 = vmatpush.bf16.msra.mxu0 %v680
    %690 = vmatmul.bf16.gmra.mxu0 %v78
    %v691 = vpop.f32.mrf.mxu0
    %v692 = vadd.f32 0.0, %v691
    %v693 = vpop.f32.mrf.mxu0
    %v694 = vadd.f32 0.0, %v693
    %695 = vdwg.mxu0
    %v696 = vpack.c.bf16 %v694, %v692
    %v698 = vsel %vm52, %v696, 0
    %700 = vmatpush.bf16.msra.mxu0 0
    %701 = vmatpush.bf16.msra.mxu0 0
    %702 = vmatpush.bf16.msra.mxu0 0
    %703 = vmatpush.bf16.msra.mxu0 0
    %704 = vmatpush.bf16.msra.mxu0 0
    %705 = vmatpush.bf16.msra.mxu0 0
    %706 = vmatpush.bf16.msra.mxu0 %v116
    %707 = vmatpush.bf16.msra.mxu0 %v115
    %708 = vmatmul.bf16.gmra.mxu0 %v698
    %v709 = vpop.f32.mrf.mxu0
    %v710 = vadd.f32 %v105, %v709
    %v711 = vpop.f32.mrf.mxu0
    %v712 = vadd.f32 %v105, %v711
    %713 = vdwg.mxu0
    %714 = vmatpush.bf16.msra.mxu0 0
    %715 = vmatpush.bf16.msra.mxu0 0
    %716 = vmatpush.bf16.msra.mxu0 0
    %717 = vmatpush.bf16.msra.mxu0 0
    %718 = vmatpush.bf16.msra.mxu0 0
    %719 = vmatpush.bf16.msra.mxu0 0
    %720 = vmatpush.bf16.msra.mxu0 %v153
    %721 = vmatpush.bf16.msra.mxu0 %v152
    %722 = vmatmul.bf16.gmra.mxu0 %v662
    %v723 = vpop.f32.mrf.mxu0
    %v724 = vadd.f32 %v142, %v723
    %v725 = vpop.f32.mrf.mxu0
    %v726 = vadd.f32 %v142, %v725
    %727 = vdwg.mxu0
    %728 = vmatpush.bf16.msra.mxu0 0
    %729 = vmatpush.bf16.msra.mxu0 0
    %730 = vmatpush.bf16.msra.mxu0 0
    %731 = vmatpush.bf16.msra.mxu0 0
    %732 = vmatpush.bf16.msra.mxu0 0
    %733 = vmatpush.bf16.msra.mxu0 0
    %734 = vmatpush.bf16.msra.mxu0 %v189
    %735 = vmatpush.bf16.msra.mxu0 %v188
    %736 = vmatmul.bf16.gmra.mxu0 %v698
    %v737 = vpop.f32.mrf.mxu0
    %v738 = vadd.f32 %v178, %v737
    %v739 = vpop.f32.mrf.mxu0
    %v740 = vadd.f32 %v178, %v739
    %741 = vdwg.mxu0
    %742 = vmatpush.bf16.msra.mxu0 0
    %743 = vmatpush.bf16.msra.mxu0 0
    %744 = vmatpush.bf16.msra.mxu0 0
    %745 = vmatpush.bf16.msra.mxu0 0
    %746 = vmatpush.bf16.msra.mxu0 0
    %747 = vmatpush.bf16.msra.mxu0 0
    %748 = vmatpush.bf16.msra.mxu0 %v225
    %749 = vmatpush.bf16.msra.mxu0 %v224
    %750 = vmatmul.bf16.gmra.mxu0 %v662
    %v751 = vpop.f32.mrf.mxu0
    %v752 = vadd.f32 %v214, %v751
    %v753 = vpop.f32.mrf.mxu0
    %v754 = vadd.f32 %v214, %v753
    %755 = vdwg.mxu0
    %756 = vmatpush.bf16.msra.mxu0 0
    %757 = vmatpush.bf16.msra.mxu0 0
    %758 = vmatpush.bf16.msra.mxu0 0
    %759 = vmatpush.bf16.msra.mxu0 0
    %760 = vmatpush.bf16.msra.mxu0 0
    %761 = vmatpush.bf16.msra.mxu0 0
    %762 = vmatpush.bf16.msra.mxu0 %v261
    %763 = vmatpush.bf16.msra.mxu0 %v260
    %764 = vmatmul.bf16.gmra.mxu0 %v698
    %v765 = vpop.f32.mrf.mxu0
    %v766 = vadd.f32 %v250, %v765
    %v767 = vpop.f32.mrf.mxu0
    %v768 = vadd.f32 %v250, %v767
    %769 = vdwg.mxu0
    %770 = vmatpush.bf16.msra.mxu0 0
    %771 = vmatpush.bf16.msra.mxu0 0
    %772 = vmatpush.bf16.msra.mxu0 0
    %773 = vmatpush.bf16.msra.mxu0 0
    %774 = vmatpush.bf16.msra.mxu0 0
    %775 = vmatpush.bf16.msra.mxu0 0
    %776 = vmatpush.bf16.msra.mxu0 %v297
    %777 = vmatpush.bf16.msra.mxu0 %v296
    %778 = vmatmul.bf16.gmra.mxu0 %v662
    %v779 = vpop.f32.mrf.mxu0
    %v780 = vadd.f32 %v286, %v779
    %v781 = vpop.f32.mrf.mxu0
    %v782 = vadd.f32 %v286, %v781
    %783 = vdwg.mxu0
    %v784 = vadd.f32 %v710, %v724
    %v785 = vadd.f32 %v712, %v726
    %v786 = vxor.u32 %v784, 2147483648
    %v787 = vxor.u32 %v785, 2147483648
    %v788 = vmul.f32 %v786, 1.442695
    %v789 = vpow.pop %v788
    %v790 = vmul.f32 %v787, 1.442695
    %v791 = vpow.pop %v790
    %v792 = vadd.f32 %v789, 1.0
    %v793 = vadd.f32 %v791, 1.0
    %v794 = vrcp.pop %v792
    %v795 = vmul.f32 %v792, %v794
    %v796 = vsub.f32 1.0, %v795
    %v797 = vmul.f32 %v794, %v796
    %v798 = vadd.f32 %v794, %v797
    %vm799 = vweird.f32 %v792
    %vm800 = vweird.f32 %v794
    %vm801 = vmor %vm799, %vm800
    %v802 = vsel %vm801, %v794, %v798
    %v803 = vand.u32 2147483647, %v792
    %vm804 = vcmp.eq.f32.partialorder %v803, 8.507059e+37
    %v805 = vand.u32 %v792, 2147483648
    %v806 = vor.u32 1.1754944e-38, %v805
    %v807 = vsel %vm804, %v806, %v802
    %v808 = vmul.f32 1.0, %v807
    %v809 = vrcp.pop %v793
    %v810 = vmul.f32 %v793, %v809
    %v811 = vsub.f32 1.0, %v810
    %v812 = vmul.f32 %v809, %v811
    %v813 = vadd.f32 %v809, %v812
    %vm814 = vweird.f32 %v793
    %vm815 = vweird.f32 %v809
    %vm816 = vmor %vm814, %vm815
    %v817 = vsel %vm816, %v809, %v813
    %v818 = vand.u32 2147483647, %v793
    %vm819 = vcmp.eq.f32.partialorder %v818, 8.507059e+37
    %v820 = vand.u32 %v793, 2147483648
    %v821 = vor.u32 1.1754944e-38, %v820
    %v822 = vsel %vm819, %v821, %v817
    %v823 = vmul.f32 1.0, %v822
    %v824 = vadd.f32 %v738, %v752
    %v825 = vadd.f32 %v740, %v754
    %v826 = vxor.u32 %v824, 2147483648
    %v827 = vxor.u32 %v825, 2147483648
    %v828 = vmul.f32 %v826, 1.442695
    %v829 = vpow.pop %v828
    %v830 = vmul.f32 %v827, 1.442695
    %v831 = vpow.pop %v830
    %v832 = vadd.f32 %v829, 1.0
    %v833 = vadd.f32 %v831, 1.0
    %v834 = vrcp.pop %v832
    %v835 = vmul.f32 %v832, %v834
    %v836 = vsub.f32 1.0, %v835
    %v837 = vmul.f32 %v834, %v836
    %v838 = vadd.f32 %v834, %v837
    %vm839 = vweird.f32 %v832
    %vm840 = vweird.f32 %v834
    %vm841 = vmor %vm839, %vm840
    %v842 = vsel %vm841, %v834, %v838
    %v843 = vand.u32 2147483647, %v832
    %vm844 = vcmp.eq.f32.partialorder %v843, 8.507059e+37
    %v845 = vand.u32 %v832, 2147483648
    %v846 = vor.u32 1.1754944e-38, %v845
    %v847 = vsel %vm844, %v846, %v842
    %v848 = vmul.f32 1.0, %v847
    %v849 = vrcp.pop %v833
    %v850 = vmul.f32 %v833, %v849
    %v851 = vsub.f32 1.0, %v850
    %v852 = vmul.f32 %v849, %v851
    %v853 = vadd.f32 %v849, %v852
    %vm854 = vweird.f32 %v833
    %vm855 = vweird.f32 %v849
    %vm856 = vmor %vm854, %vm855
    %v857 = vsel %vm856, %v849, %v853
    %v858 = vand.u32 2147483647, %v833
    %vm859 = vcmp.eq.f32.partialorder %v858, 8.507059e+37
    %v860 = vand.u32 %v833, 2147483648
    %v861 = vor.u32 1.1754944e-38, %v860
    %v862 = vsel %vm859, %v861, %v857
    %v863 = vmul.f32 1.0, %v862
    %v864 = vmul.f32 %v808, %v780
    %v865 = vmul.f32 %v823, %v782
    %v866 = vadd.f32 %v766, %v864
    %v867 = vadd.f32 %v768, %v865
    %v868 = vtanh.pop %v866
    %v869 = vtanh.pop %v867
    %v870 = vsub.f32 1.0, %v848
    %v871 = vsub.f32 1.0, %v863
    %v872 = vmul.f32 %v870, %v868
    %v873 = vmul.f32 %v871, %v869
    %v874 = vmul.f32 %v848, %v641
    %v875 = vmul.f32 %v863, %v642
    %v876 = vadd.f32 %v872, %v874
    %v877 = vadd.f32 %v873, %v875
    %v878 = vld [vmem:[%s7] sm:$0x1]
    %v879 = vpack.c.bf16 %v877, %v876
    %v881 = vsel %vm52, %v878, 0
    %v884 = vsel %vm52, %v879, 0
    %886 = vmatpush.bf16.xpose.msra.mxu0 0
    %887 = vmatpush.bf16.xpose.msra.mxu0 0
    %888 = vmatpush.bf16.xpose.msra.mxu0 0
    %889 = vmatpush.bf16.xpose.msra.mxu0 0
    %890 = vmatpush.bf16.xpose.msra.mxu0 0
    %891 = vmatpush.bf16.xpose.msra.mxu0 0
    %892 = vmatpush.bf16.xpose.msra.mxu0 0
    %893 = vmatpush.bf16.xpose.msra.mxu0 %v884
    %894 = vmatmul.bf16.gmra.mxu0 %v881
    %v895 = vpop.f32.mrf.mxu0
    %v896 = vadd.f32 0.0, %v895
    %v897 = vpop.f32.mrf.mxu0
    %898 = vdwg.mxu0
    %vm899 = vcmask 74752
    %900 = vst.msk [vmem:[#allocation2] sm:$0x3] %vm899, %v896
    // Predicated region
    $region34: #{crnn_ggnn_forward.7} parent=1 // pred_check
      _
    $region35: #{crnn_ggnn_forward.7} parent=1 // pred_check_branch
      %902 = sbr.rel (0) target = $region37
    $region36: #{crnn_ggnn_forward.7} parent=1 // pred_region
      %904 = vsyncadd [#allocation3], 0
      %s906 = sshll.u32 [#allocation2], 4
      %s907 = int_to_ptr.vmem [resolvable:$true] %s906
      %s908 = sshll.u32 %s8, 4
      %s909 = int_to_ptr.hbm [resolvable:$true] %s908
      %911 = dma.vmem_to_hbm [thread:$0]  %s907, 32, %s909, [#allocation3]
    $region37: #{crnn_ggnn_forward.7} parent=1 // pred_fallthru
      _
    // Predicated region
    $region38: #{crnn_ggnn_forward.7} parent=1 // pred_check
      _
    $region39: #{crnn_ggnn_forward.7} parent=1 // pred_check_branch
      %913 = sbr.rel (0) target = $region41
    $region40: #{crnn_ggnn_forward.7} parent=1 // pred_region
      %915 = dma.done [#allocation3], 32
    $region41: #{crnn_ggnn_forward.7} parent=1 // pred_fallthru
      _
    %916 = vsyncpa [#allocation3], 1

</llo_original>
